<compile_context>
chip_gen: v6e
topology: v6e:2x2x1
jax: 0.10.0
libtpu: 0.0.40
codegen_flags: <defaults>
</compile_context>

<pallas_src>
import functools

import jax
import jax.numpy as jnp
from jax.experimental import pallas as pl
from jax.experimental.pallas import tpu as pltpu

KSIZE = 7
PAD = KSIZE // 2


def _spatial_attention_kernel(x_ref, idx_ref, w_ref, b_ref, o_ref,
                              max_acc, sum_acc, *, H, W, c_tile, tail):
    # x_ref   : (c_tile, HW) VMEM  -- one channel chunk of one image (lane-dense)
    # idx_ref : (2, HW) int32 VMEM -- [row index, col index] of each flat position
    # w_ref   : (2*K*K,) f32 SMEM  -- conv weights, avg branch pre-scaled by 1/C
    # b_ref   : (1,)     f32 SMEM  -- conv bias
    # o_ref   : (1, HW)      VMEM  -- output (resident across the c grid axis)
    # max_acc : (8, HW) f32  VMEM scratch -- per-sublane running channel max
    # sum_acc : (8, HW) f32  VMEM scratch -- per-sublane running channel sum
    c = pl.program_id(1)
    nc = pl.num_programs(1)
    HW = H * W

    # ---------------- channel reduction (every grid step) -------------------
    @pl.when(c == 0)
    def _init():
        max_acc[...] = jnp.full((8, HW), -jnp.inf, dtype=jnp.float32)
        sum_acc[...] = jnp.zeros((8, HW), dtype=jnp.float32)

    def _accumulate(nvalid):
        # Fused max+sum: a single pass over the block; one load + one convert
        # per 8-channel chunk, then pure element-wise updates of the (8, HW)
        # partial accumulators (no per-step cross-sublane reduce).
        n8 = nvalid // 8
        rem = nvalid - n8 * 8
        if n8 > 0:
            def body(i, carry):
                base = pl.multiple_of(i * 8, 8)
                blk = x_ref[pl.ds(base, 8), :].astype(jnp.float32)
                max_acc[...] = jnp.maximum(max_acc[...], blk)
                sum_acc[...] = sum_acc[...] + blk
                return carry
            jax.lax.fori_loop(0, n8, body, 0, unroll=min(n8, 8))
        if rem > 0:
            blk = x_ref[n8 * 8:n8 * 8 + rem, :].astype(jnp.float32)
            max_acc[0:rem, :] = jnp.maximum(max_acc[0:rem, :], blk)
            sum_acc[0:rem, :] = sum_acc[0:rem, :] + blk

    if tail != c_tile:
        # Ragged last channel chunk: only its first `tail` rows are valid
        # (out-of-bounds block padding is never read).
        @pl.when(c < nc - 1)
        def _full_chunks():
            _accumulate(c_tile)

        @pl.when(c == nc - 1)
        def _tail_chunk():
            _accumulate(tail)
    else:
        _accumulate(c_tile)

    # ---------------- 7x7 conv + sigmoid (last channel chunk only) ----------
    @pl.when(c == nc - 1)
    def _finalize():
        row_idx = idx_ref[0:1, :]                     # (1, HW) int32
        col_idx = idx_ref[1:2, :]                     # (1, HW) int32
        # Collapse the 8 sublane partials once per image; 1/C is already
        # folded into the avg-branch weights so the raw sum is used directly.
        maps = (jnp.max(max_acc[...], axis=0, keepdims=True),
                jnp.sum(sum_acc[...], axis=0, keepdims=True))

        acc = jnp.full((1, HW), b_ref[0], dtype=jnp.float32)
        for ci in range(2):
            base = maps[ci]
            for ki in range(KSIZE):
                dy = ki - PAD
                partial = jnp.zeros((1, HW), dtype=jnp.float32)
                for kj in range(KSIZE):
                    dx = kj - PAD
                    w = w_ref[ci * KSIZE * KSIZE + ki * KSIZE + kj]
                    if dx == 0:
                        v = base
                    else:
                        rolled = pltpu.roll(base, shift=(-dx) % HW, axis=1)
                        cmask = (col_idx < W - dx) if dx > 0 else (col_idx >= -dx)
                        v = jnp.where(cmask, rolled, 0.0)
                    partial = partial + w * v
                if dy == 0:
                    acc = acc + partial
                else:
                    rolled = pltpu.roll(partial, shift=(-dy * W) % HW, axis=1)
                    rmask = (row_idx < H - dy) if dy > 0 else (row_idx >= -dy)
                    acc = acc + jnp.where(rmask, rolled, 0.0)

        o_ref[...] = jax.nn.sigmoid(acc).astype(o_ref.dtype)


def _vmem_capacity_bytes(default=64 * 1024 * 1024):
    try:
        info = pltpu.get_tpu_info()
    except Exception:
        return default
    for name in ("vmem_capacity_bytes", "vmem_size_bytes", "vmem_bytes"):
        val = getattr(info, name, None)
        if isinstance(val, int) and val > 0:
            return val
    return default


def _choose_c_tile(C, HW, itemsize, target_bytes):
    """Channel tile: a multiple of 8 (or the full C), sized near target_bytes."""
    t = max(1, target_bytes // max(1, HW * itemsize))
    if t >= C:
        return C
    return min(max(8, (t // 8) * 8), C)
    # TODO(synk): for very large H*W (8*HW*itemsize approaching VMEM) add a
    # spatial (HW) grid axis with a PAD-row halo instead of shrinking c_tile.


def spatial_attention(x, weight, bias, *, c_tile=None):
    """x: (N, C, H, W); weight: (1, 2, K, K) OIHW; bias: (1,) -> (N, 1, H, W)."""
    N, C, H, W = x.shape
    HW = H * W
    itemsize = x.dtype.itemsize

    # Lane-dense layout: the HBM-level reshapes are free.
    x_flat = x.reshape(N, C, HW)

    # Flat row/col indices for the stencil edge masks (avoids any in-kernel
    # reshape or integer division).
    flat = jnp.arange(HW, dtype=jnp.int32)
    idx2 = jnp.stack([flat // W, flat % W], axis=0)          # (2, HW) int32

    # Flatten conv weights; fold the channel-mean's 1/C into the avg branch.
    w2 = weight.astype(jnp.float32).reshape(2, KSIZE * KSIZE)
    w2 = w2 * jnp.array([[1.0], [1.0 / C]], dtype=jnp.float32)
    w_flat = w2.reshape(-1)                                  # (2*K*K,)
    b = bias.reshape(1).astype(jnp.float32)                  # (1,)

    # Per-generation sizing: big channel tiles (~VMEM/5, <=24 MiB) amortize the
    # ~0.35us/step grid overhead; vmem_limit follows the real footprint.
    vmem_cap = _vmem_capacity_bytes()
    target = min(24 << 20, max(2 << 20, vmem_cap // 5))
    if c_tile is None:
        c_tile = _choose_c_tile(C, HW, itemsize, target)
    num_c = pl.cdiv(C, c_tile)
    tail = C - (num_c - 1) * c_tile

    block_bytes = c_tile * HW * itemsize
    need = (2 * block_bytes            # double-buffered x blocks
            + 2 * (2 * HW * 4)         # idx
            + 2 * (1 * HW * itemsize)  # output slab
            + 2 * (8 * HW * 4)         # max/sum accumulators
            + (4 << 20))               # headroom
    vmem_limit = int(min(max(need, 32 << 20), (vmem_cap * 3) // 4))

    kernel = functools.partial(_spatial_attention_kernel,
                               H=H, W=W, c_tile=c_tile, tail=tail)

    # TODO(synk): for N==1 on v7x, split C (or rows with a 3-row halo) across
    # the two TensorCores; currently only the batch axis is "parallel".
    out_flat = pl.pallas_call(
        kernel,
        out_shape=jax.ShapeDtypeStruct((N, 1, HW), x.dtype),
        grid_spec=pltpu.PrefetchScalarGridSpec(
            num_scalar_prefetch=0,
            grid=(N, num_c),
            in_specs=[
                pl.BlockSpec((None, c_tile, HW), lambda n, c: (n, c, 0)),
                pl.BlockSpec((2, HW), lambda n, c: (0, 0)),
                pl.BlockSpec(memory_space=pltpu.MemorySpace.SMEM),
                pl.BlockSpec(memory_space=pltpu.MemorySpace.SMEM),
            ],
            out_specs=pl.BlockSpec((None, 1, HW), lambda n, c: (n, 0, 0)),
            scratch_shapes=[
                pltpu.VMEM((8, HW), jnp.float32),   # running channel max
                pltpu.VMEM((8, HW), jnp.float32),   # running channel sum
            ],
        ),
        compiler_params=pltpu.CompilerParams(
            dimension_semantics=("parallel", "arbitrary"),
            vmem_limit_bytes=vmem_limit,
        ),
    )(x_flat, idx2, w_flat, b)

    return out_flat.reshape(N, 1, H, W)


def reference(x, weight, bias):
    max_map = jnp.max(x, axis=1, keepdims=True)
    avg_map = jnp.mean(x, axis=1, keepdims=True)
    feat = jnp.concatenate([max_map, avg_map], axis=1)  # (N, 2, H, W)
    out = jax.lax.conv_general_dilated(
        feat.astype(jnp.float32), weight.astype(jnp.float32),
        window_strides=(1, 1), padding=((PAD, PAD), (PAD, PAD)),
        dimension_numbers=("NCHW", "OIHW", "NCHW"))
    out = out + bias.reshape(1, 1, 1, 1)
    return jax.nn.sigmoid(out).astype(x.dtype)


if __name__ == "__main__":
    key = jax.random.PRNGKey(0)
    kx, kw, kb, kx2 = jax.random.split(key, 4)

    # Deterministic synthetic parameters (Conv2d(2, 1, kernel_size=7, pad=3)).
    weight = jax.random.normal(kw, (1, 2, KSIZE, KSIZE), dtype=jnp.float32) * 0.1
    bias = jax.random.normal(kb, (1,), dtype=jnp.float32) * 0.1

    # Primary small test.
    N, C, H, W = 2, 4, 16, 16
    x = jax.random.normal(kx, (N, C, H, W), dtype=jnp.float32)
    out = jax.block_until_ready(spatial_attention(x, weight, bias))
    ref = reference(x, weight, bias)
    assert out.shape == (N, 1, H, W), out.shape
    assert jnp.allclose(out, ref, atol=1e-5, rtol=1e-5), float(
        jnp.max(jnp.abs(out - ref)))

    # Secondary test: forces multiple channel chunks + a ragged tail chunk.
    x2 = jax.random.normal(kx2, (1, 20, 8, 16), dtype=jnp.float32)
    out2 = jax.block_until_ready(spatial_attention(x2, weight, bias, c_tile=8))
    ref2 = reference(x2, weight, bias)
    assert jnp.allclose(out2, ref2, atol=1e-5, rtol=1e-5), float(
        jnp.max(jnp.abs(out2 - ref2)))

    print("KERNEL_OK")
</pallas_src>

<mosaic_0001>
module attributes {stable_mosaic.version = 11 : i64} {
  func.func @_spatial_attention_kernel(%arg0: i32, %arg1: i32, %arg2: memref<1x4x256xf32, #tpu.memory_space<vmem>>, %arg3: memref<2x256xi32, #tpu.memory_space<vmem>>, %arg4: memref<98xf32, #tpu.memory_space<smem>>, %arg5: memref<1xf32, #tpu.memory_space<smem>>, %arg6: memref<1x1x256xf32, #tpu.memory_space<vmem>>, %arg7: memref<8x256xf32, #tpu.memory_space<vmem>>, %arg8: memref<8x256xf32, #tpu.memory_space<vmem>>) attributes {dimension_semantics = [#tpu.dimension_semantics<parallel>, #tpu.dimension_semantics<arbitrary>], iteration_bounds = array<i64: 2, 1>, scalar_prefetch = 0 : i64, scratch_operands = 2 : i64, tpu.core_type = #tpu.core_type<tc>, window_params = [{transform_indices = @transform_0, window_bounds = array<i64: 1, 4, 256>}, {pipeline_mode = #tpu.pipeline_mode<synchronous>, transform_indices = @transform_1, window_bounds = array<i64: 2, 256>}, {transform_indices = @transform_2, window_bounds = array<i64: 98>}, {transform_indices = @transform_3, window_bounds = array<i64: 1>}, {transform_indices = @transform_4, window_bounds = array<i64: 1, 1, 256>}]} {
    %c0_i32 = arith.constant 0 : i32
    %0 = arith.cmpi eq, %arg1, %c0_i32 : i32
    %1 = arith.extui %0 : i1 to i32
    %c0_i32_0 = arith.constant 0 : i32
    %2 = arith.cmpi ne, %1, %c0_i32_0 : i32
    scf.if %2 {
      %cst = arith.constant 0xFF800000 : f32
      %14 = vector.broadcast %cst : f32 to vector<8x256xf32>
      %c0_13 = arith.constant 0 : index
      %c0_14 = arith.constant 0 : index
      %15 = vector.load %arg7[%c0_13, %c0_14] : memref<8x256xf32, #tpu.memory_space<vmem>>, vector<8x256xf32>
      tpu.vector_store %arg7[%c0_13, %c0_14], %14 {strides = array<i32>} : memref<8x256xf32, #tpu.memory_space<vmem>>, vector<8x256xf32>,
      %cst_15 = arith.constant 0.000000e+00 : f32
      %16 = vector.broadcast %cst_15 : f32 to vector<8x256xf32>
      %c0_16 = arith.constant 0 : index
      %c0_17 = arith.constant 0 : index
      %17 = vector.load %arg8[%c0_16, %c0_17] : memref<8x256xf32, #tpu.memory_space<vmem>>, vector<8x256xf32>
      tpu.vector_store %arg8[%c0_16, %c0_17], %16 {strides = array<i32>} : memref<8x256xf32, #tpu.memory_space<vmem>>, vector<8x256xf32>,
    } else {
    }
    %c0 = arith.constant 0 : index
    %c0_1 = arith.constant 0 : index
    %c0_2 = arith.constant 0 : index
    %3 = vector.load %arg2[%c0, %c0_1, %c0_2] : memref<1x4x256xf32, #tpu.memory_space<vmem>>, vector<1x4x256xf32>
    %4 = vector.shape_cast %3 : vector<1x4x256xf32> to vector<4x256xf32>
    %c0_3 = arith.constant 0 : index
    %c0_4 = arith.constant 0 : index
    %5 = vector.load %arg7[%c0_3, %c0_4] : memref<8x256xf32, #tpu.memory_space<vmem>>, vector<4x256xf32>
    %6 = arith.maximumf %5, %4 : vector<4x256xf32>
    %c0_5 = arith.constant 0 : index
    %c0_6 = arith.constant 0 : index
    %7 = vector.load %arg7[%c0_5, %c0_6] : memref<8x256xf32, #tpu.memory_space<vmem>>, vector<4x256xf32>
    tpu.vector_store %arg7[%c0_5, %c0_6], %6 {strides = array<i32>} : memref<8x256xf32, #tpu.memory_space<vmem>>, vector<4x256xf32>,
    %c0_7 = arith.constant 0 : index
    %c0_8 = arith.constant 0 : index
    %8 = vector.load %arg8[%c0_7, %c0_8] : memref<8x256xf32, #tpu.memory_space<vmem>>, vector<4x256xf32>
    %9 = arith.addf %8, %4 : vector<4x256xf32>
    %c0_9 = arith.constant 0 : index
    %c0_10 = arith.constant 0 : index
    %10 = vector.load %arg8[%c0_9, %c0_10] : memref<8x256xf32, #tpu.memory_space<vmem>>, vector<4x256xf32>
    tpu.vector_store %arg8[%c0_9, %c0_10], %9 {strides = array<i32>} : memref<8x256xf32, #tpu.memory_space<vmem>>, vector<4x256xf32>,
    %c0_i32_11 = arith.constant 0 : i32
    %11 = arith.cmpi eq, %arg1, %c0_i32_11 : i32
    %12 = arith.extui %11 : i1 to i32
    %c0_i32_12 = arith.constant 0 : i32
    %13 = arith.cmpi ne, %12, %c0_i32_12 : i32
    scf.if %13 {
      %c0_13 = arith.constant 0 : index
      %c0_14 = arith.constant 0 : index
      %14 = vector.load %arg3[%c0_13, %c0_14] : memref<2x256xi32, #tpu.memory_space<vmem>>, vector<1x256xi32>
      %c1 = arith.constant 1 : index
      %c0_15 = arith.constant 0 : index
      %15 = vector.load %arg3[%c1, %c0_15] : memref<2x256xi32, #tpu.memory_space<vmem>>, vector<1x256xi32>
      %c0_16 = arith.constant 0 : index
      %c0_17 = arith.constant 0 : index
      %16 = vector.load %arg7[%c0_16, %c0_17] : memref<8x256xf32, #tpu.memory_space<vmem>>, vector<8x256xf32>
      %cst = arith.constant dense<0xFF800000> : vector<256xf32>
      %17 = vector.multi_reduction <maximumf>, %16, %cst [0] : vector<8x256xf32> to vector<256xf32>
      %18 = vector.shape_cast %17 : vector<256xf32> to vector<1x256xf32>
      %c0_18 = arith.constant 0 : index
      %c0_19 = arith.constant 0 : index
      %19 = vector.load %arg8[%c0_18, %c0_19] : memref<8x256xf32, #tpu.memory_space<vmem>>, vector<8x256xf32>
      %cst_20 = arith.constant dense<0.000000e+00> : vector<256xf32>
      %20 = vector.multi_reduction <add>, %19, %cst_20 [0] : vector<8x256xf32> to vector<256xf32>
      %21 = vector.shape_cast %20 : vector<256xf32> to vector<1x256xf32>
      %c0_21 = arith.constant 0 : index
      %22 = memref.load %arg5[%c0_21] : memref<1xf32, #tpu.memory_space<smem>>
      %23 = vector.broadcast %22 : f32 to vector<1x256xf32>
      %cst_22 = arith.constant 0.000000e+00 : f32
      %24 = vector.broadcast %cst_22 : f32 to vector<1x256xf32>
      %c0_23 = arith.constant 0 : index
      %25 = memref.load %arg4[%c0_23] : memref<98xf32, #tpu.memory_space<smem>>
      %c3_i32 = arith.constant 3 : i32
      %26 = tpu.dynamic_rotate %18 by %c3_i32 dim 1 : vector<1x256xf32>, i32 -> vector<1x256xf32>
      %c3_i32_24 = arith.constant 3 : i32
      %27 = vector.broadcast %c3_i32_24 : i32 to vector<1x256xi32>
      %28 = arith.cmpi sge, %15, %27 : vector<1x256xi32>
      %cst_25 = arith.constant 0.000000e+00 : f32
      %29 = vector.broadcast %cst_25 : f32 to vector<1x256xf32>
      %30 = arith.select %28, %26, %29 : vector<1x256xi1>, vector<1x256xf32>
      %31 = vector.broadcast %25 : f32 to vector<1x256xf32>
      %32 = arith.mulf %31, %30 : vector<1x256xf32>
      %33 = arith.addf %24, %32 : vector<1x256xf32>
      %c1_26 = arith.constant 1 : index
      %34 = memref.load %arg4[%c1_26] : memref<98xf32, #tpu.memory_space<smem>>
      %c2_i32 = arith.constant 2 : i32
      %35 = tpu.dynamic_rotate %18 by %c2_i32 dim 1 : vector<1x256xf32>, i32 -> vector<1x256xf32>
      %c2_i32_27 = arith.constant 2 : i32
      %36 = vector.broadcast %c2_i32_27 : i32 to vector<1x256xi32>
      %37 = arith.cmpi sge, %15, %36 : vector<1x256xi32>
      %cst_28 = arith.constant 0.000000e+00 : f32
      %38 = vector.broadcast %cst_28 : f32 to vector<1x256xf32>
      %39 = arith.select %37, %35, %38 : vector<1x256xi1>, vector<1x256xf32>
      %40 = vector.broadcast %34 : f32 to vector<1x256xf32>
      %41 = arith.mulf %40, %39 : vector<1x256xf32>
      %42 = arith.addf %33, %41 : vector<1x256xf32>
      %c2 = arith.constant 2 : index
      %43 = memref.load %arg4[%c2] : memref<98xf32, #tpu.memory_space<smem>>
      %c1_i32 = arith.constant 1 : i32
      %44 = tpu.dynamic_rotate %18 by %c1_i32 dim 1 : vector<1x256xf32>, i32 -> vector<1x256xf32>
      %c1_i32_29 = arith.constant 1 : i32
      %45 = vector.broadcast %c1_i32_29 : i32 to vector<1x256xi32>
      %46 = arith.cmpi sge, %15, %45 : vector<1x256xi32>
      %cst_30 = arith.constant 0.000000e+00 : f32
      %47 = vector.broadcast %cst_30 : f32 to vector<1x256xf32>
      %48 = arith.select %46, %44, %47 : vector<1x256xi1>, vector<1x256xf32>
      %49 = vector.broadcast %43 : f32 to vector<1x256xf32>
      %50 = arith.mulf %49, %48 : vector<1x256xf32>
      %51 = arith.addf %42, %50 : vector<1x256xf32>
      %c3 = arith.constant 3 : index
      %52 = memref.load %arg4[%c3] : memref<98xf32, #tpu.memory_space<smem>>
      %53 = vector.broadcast %52 : f32 to vector<1x256xf32>
      %54 = arith.mulf %53, %18 : vector<1x256xf32>
      %55 = arith.addf %51, %54 : vector<1x256xf32>
      %c4 = arith.constant 4 : index
      %56 = memref.load %arg4[%c4] : memref<98xf32, #tpu.memory_space<smem>>
      %c255_i32 = arith.constant 255 : i32
      %57 = tpu.dynamic_rotate %18 by %c255_i32 dim 1 : vector<1x256xf32>, i32 -> vector<1x256xf32>
      %c15_i32 = arith.constant 15 : i32
      %58 = vector.broadcast %c15_i32 : i32 to vector<1x256xi32>
      %59 = arith.cmpi slt, %15, %58 : vector<1x256xi32>
      %cst_31 = arith.constant 0.000000e+00 : f32
      %60 = vector.broadcast %cst_31 : f32 to vector<1x256xf32>
      %61 = arith.select %59, %57, %60 : vector<1x256xi1>, vector<1x256xf32>
      %62 = vector.broadcast %56 : f32 to vector<1x256xf32>
      %63 = arith.mulf %62, %61 : vector<1x256xf32>
      %64 = arith.addf %55, %63 : vector<1x256xf32>
      %c5 = arith.constant 5 : index
      %65 = memref.load %arg4[%c5] : memref<98xf32, #tpu.memory_space<smem>>
      %c254_i32 = arith.constant 254 : i32
      %66 = tpu.dynamic_rotate %18 by %c254_i32 dim 1 : vector<1x256xf32>, i32 -> vector<1x256xf32>
      %c14_i32 = arith.constant 14 : i32
      %67 = vector.broadcast %c14_i32 : i32 to vector<1x256xi32>
      %68 = arith.cmpi slt, %15, %67 : vector<1x256xi32>
      %cst_32 = arith.constant 0.000000e+00 : f32
      %69 = vector.broadcast %cst_32 : f32 to vector<1x256xf32>
      %70 = arith.select %68, %66, %69 : vector<1x256xi1>, vector<1x256xf32>
      %71 = vector.broadcast %65 : f32 to vector<1x256xf32>
      %72 = arith.mulf %71, %70 : vector<1x256xf32>
      %73 = arith.addf %64, %72 : vector<1x256xf32>
      %c6 = arith.constant 6 : index
      %74 = memref.load %arg4[%c6] : memref<98xf32, #tpu.memory_space<smem>>
      %c253_i32 = arith.constant 253 : i32
      %75 = tpu.dynamic_rotate %18 by %c253_i32 dim 1 : vector<1x256xf32>, i32 -> vector<1x256xf32>
      %c13_i32 = arith.constant 13 : i32
      %76 = vector.broadcast %c13_i32 : i32 to vector<1x256xi32>
      %77 = arith.cmpi slt, %15, %76 : vector<1x256xi32>
      %cst_33 = arith.constant 0.000000e+00 : f32
      %78 = vector.broadcast %cst_33 : f32 to vector<1x256xf32>
      %79 = arith.select %77, %75, %78 : vector<1x256xi1>, vector<1x256xf32>
      %80 = vector.broadcast %74 : f32 to vector<1x256xf32>
      %81 = arith.mulf %80, %79 : vector<1x256xf32>
      %82 = arith.addf %73, %81 : vector<1x256xf32>
      %c48_i32 = arith.constant 48 : i32
      %83 = tpu.dynamic_rotate %82 by %c48_i32 dim 1 : vector<1x256xf32>, i32 -> vector<1x256xf32>
      %c3_i32_34 = arith.constant 3 : i32
      %84 = vector.broadcast %c3_i32_34 : i32 to vector<1x256xi32>
      %85 = arith.cmpi sge, %14, %84 : vector<1x256xi32>
      %cst_35 = arith.constant 0.000000e+00 : f32
      %86 = vector.broadcast %cst_35 : f32 to vector<1x256xf32>
      %87 = arith.select %85, %83, %86 : vector<1x256xi1>, vector<1x256xf32>
      %88 = arith.addf %23, %87 : vector<1x256xf32>
      %cst_36 = arith.constant 0.000000e+00 : f32
      %89 = vector.broadcast %cst_36 : f32 to vector<1x256xf32>
      %c7 = arith.constant 7 : index
      %90 = memref.load %arg4[%c7] : memref<98xf32, #tpu.memory_space<smem>>
      %c3_i32_37 = arith.constant 3 : i32
      %91 = tpu.dynamic_rotate %18 by %c3_i32_37 dim 1 : vector<1x256xf32>, i32 -> vector<1x256xf32>
      %c3_i32_38 = arith.constant 3 : i32
      %92 = vector.broadcast %c3_i32_38 : i32 to vector<1x256xi32>
      %93 = arith.cmpi sge, %15, %92 : vector<1x256xi32>
      %cst_39 = arith.constant 0.000000e+00 : f32
      %94 = vector.broadcast %cst_39 : f32 to vector<1x256xf32>
      %95 = arith.select %93, %91, %94 : vector<1x256xi1>, vector<1x256xf32>
      %96 = vector.broadcast %90 : f32 to vector<1x256xf32>
      %97 = arith.mulf %96, %95 : vector<1x256xf32>
      %98 = arith.addf %89, %97 : vector<1x256xf32>
      %c8 = arith.constant 8 : index
      %99 = memref.load %arg4[%c8] : memref<98xf32, #tpu.memory_space<smem>>
      %c2_i32_40 = arith.constant 2 : i32
      %100 = tpu.dynamic_rotate %18 by %c2_i32_40 dim 1 : vector<1x256xf32>, i32 -> vector<1x256xf32>
      %c2_i32_41 = arith.constant 2 : i32
      %101 = vector.broadcast %c2_i32_41 : i32 to vector<1x256xi32>
      %102 = arith.cmpi sge, %15, %101 : vector<1x256xi32>
      %cst_42 = arith.constant 0.000000e+00 : f32
      %103 = vector.broadcast %cst_42 : f32 to vector<1x256xf32>
      %104 = arith.select %102, %100, %103 : vector<1x256xi1>, vector<1x256xf32>
      %105 = vector.broadcast %99 : f32 to vector<1x256xf32>
      %106 = arith.mulf %105, %104 : vector<1x256xf32>
      %107 = arith.addf %98, %106 : vector<1x256xf32>
      %c9 = arith.constant 9 : index
      %108 = memref.load %arg4[%c9] : memref<98xf32, #tpu.memory_space<smem>>
      %c1_i32_43 = arith.constant 1 : i32
      %109 = tpu.dynamic_rotate %18 by %c1_i32_43 dim 1 : vector<1x256xf32>, i32 -> vector<1x256xf32>
      %c1_i32_44 = arith.constant 1 : i32
      %110 = vector.broadcast %c1_i32_44 : i32 to vector<1x256xi32>
      %111 = arith.cmpi sge, %15, %110 : vector<1x256xi32>
      %cst_45 = arith.constant 0.000000e+00 : f32
      %112 = vector.broadcast %cst_45 : f32 to vector<1x256xf32>
      %113 = arith.select %111, %109, %112 : vector<1x256xi1>, vector<1x256xf32>
      %114 = vector.broadcast %108 : f32 to vector<1x256xf32>
      %115 = arith.mulf %114, %113 : vector<1x256xf32>
      %116 = arith.addf %107, %115 : vector<1x256xf32>
      %c10 = arith.constant 10 : index
      %117 = memref.load %arg4[%c10] : memref<98xf32, #tpu.memory_space<smem>>
      %118 = vector.broadcast %117 : f32 to vector<1x256xf32>
      %119 = arith.mulf %118, %18 : vector<1x256xf32>
      %120 = arith.addf %116, %119 : vector<1x256xf32>
      %c11 = arith.constant 11 : index
      %121 = memref.load %arg4[%c11] : memref<98xf32, #tpu.memory_space<smem>>
      %c255_i32_46 = arith.constant 255 : i32
      %122 = tpu.dynamic_rotate %18 by %c255_i32_46 dim 1 : vector<1x256xf32>, i32 -> vector<1x256xf32>
      %c15_i32_47 = arith.constant 15 : i32
      %123 = vector.broadcast %c15_i32_47 : i32 to vector<1x256xi32>
      %124 = arith.cmpi slt, %15, %123 : vector<1x256xi32>
      %cst_48 = arith.constant 0.000000e+00 : f32
      %125 = vector.broadcast %cst_48 : f32 to vector<1x256xf32>
      %126 = arith.select %124, %122, %125 : vector<1x256xi1>, vector<1x256xf32>
      %127 = vector.broadcast %121 : f32 to vector<1x256xf32>
      %128 = arith.mulf %127, %126 : vector<1x256xf32>
      %129 = arith.addf %120, %128 : vector<1x256xf32>
      %c12 = arith.constant 12 : index
      %130 = memref.load %arg4[%c12] : memref<98xf32, #tpu.memory_space<smem>>
      %c254_i32_49 = arith.constant 254 : i32
      %131 = tpu.dynamic_rotate %18 by %c254_i32_49 dim 1 : vector<1x256xf32>, i32 -> vector<1x256xf32>
      %c14_i32_50 = arith.constant 14 : i32
      %132 = vector.broadcast %c14_i32_50 : i32 to vector<1x256xi32>
      %133 = arith.cmpi slt, %15, %132 : vector<1x256xi32>
      %cst_51 = arith.constant 0.000000e+00 : f32
      %134 = vector.broadcast %cst_51 : f32 to vector<1x256xf32>
      %135 = arith.select %133, %131, %134 : vector<1x256xi1>, vector<1x256xf32>
      %136 = vector.broadcast %130 : f32 to vector<1x256xf32>
      %137 = arith.mulf %136, %135 : vector<1x256xf32>
      %138 = arith.addf %129, %137 : vector<1x256xf32>
      %c13 = arith.constant 13 : index
      %139 = memref.load %arg4[%c13] : memref<98xf32, #tpu.memory_space<smem>>
      %c253_i32_52 = arith.constant 253 : i32
      %140 = tpu.dynamic_rotate %18 by %c253_i32_52 dim 1 : vector<1x256xf32>, i32 -> vector<1x256xf32>
      %c13_i32_53 = arith.constant 13 : i32
      %141 = vector.broadcast %c13_i32_53 : i32 to vector<1x256xi32>
      %142 = arith.cmpi slt, %15, %141 : vector<1x256xi32>
      %cst_54 = arith.constant 0.000000e+00 : f32
      %143 = vector.broadcast %cst_54 : f32 to vector<1x256xf32>
      %144 = arith.select %142, %140, %143 : vector<1x256xi1>, vector<1x256xf32>
      %145 = vector.broadcast %139 : f32 to vector<1x256xf32>
      %146 = arith.mulf %145, %144 : vector<1x256xf32>
      %147 = arith.addf %138, %146 : vector<1x256xf32>
      %c32_i32 = arith.constant 32 : i32
      %148 = tpu.dynamic_rotate %147 by %c32_i32 dim 1 : vector<1x256xf32>, i32 -> vector<1x256xf32>
      %c2_i32_55 = arith.constant 2 : i32
      %149 = vector.broadcast %c2_i32_55 : i32 to vector<1x256xi32>
      %150 = arith.cmpi sge, %14, %149 : vector<1x256xi32>
      %cst_56 = arith.constant 0.000000e+00 : f32
      %151 = vector.broadcast %cst_56 : f32 to vector<1x256xf32>
      %152 = arith.select %150, %148, %151 : vector<1x256xi1>, vector<1x256xf32>
      %153 = arith.addf %88, %152 : vector<1x256xf32>
      %cst_57 = arith.constant 0.000000e+00 : f32
      %154 = vector.broadcast %cst_57 : f32 to vector<1x256xf32>
      %c14 = arith.constant 14 : index
      %155 = memref.load %arg4[%c14] : memref<98xf32, #tpu.memory_space<smem>>
      %c3_i32_58 = arith.constant 3 : i32
      %156 = tpu.dynamic_rotate %18 by %c3_i32_58 dim 1 : vector<1x256xf32>, i32 -> vector<1x256xf32>
      %c3_i32_59 = arith.constant 3 : i32
      %157 = vector.broadcast %c3_i32_59 : i32 to vector<1x256xi32>
      %158 = arith.cmpi sge, %15, %157 : vector<1x256xi32>
      %cst_60 = arith.constant 0.000000e+00 : f32
      %159 = vector.broadcast %cst_60 : f32 to vector<1x256xf32>
      %160 = arith.select %158, %156, %159 : vector<1x256xi1>, vector<1x256xf32>
      %161 = vector.broadcast %155 : f32 to vector<1x256xf32>
      %162 = arith.mulf %161, %160 : vector<1x256xf32>
      %163 = arith.addf %154, %162 : vector<1x256xf32>
      %c15 = arith.constant 15 : index
      %164 = memref.load %arg4[%c15] : memref<98xf32, #tpu.memory_space<smem>>
      %c2_i32_61 = arith.constant 2 : i32
      %165 = tpu.dynamic_rotate %18 by %c2_i32_61 dim 1 : vector<1x256xf32>, i32 -> vector<1x256xf32>
      %c2_i32_62 = arith.constant 2 : i32
      %166 = vector.broadcast %c2_i32_62 : i32 to vector<1x256xi32>
      %167 = arith.cmpi sge, %15, %166 : vector<1x256xi32>
      %cst_63 = arith.constant 0.000000e+00 : f32
      %168 = vector.broadcast %cst_63 : f32 to vector<1x256xf32>
      %169 = arith.select %167, %165, %168 : vector<1x256xi1>, vector<1x256xf32>
      %170 = vector.broadcast %164 : f32 to vector<1x256xf32>
      %171 = arith.mulf %170, %169 : vector<1x256xf32>
      %172 = arith.addf %163, %171 : vector<1x256xf32>
      %c16 = arith.constant 16 : index
      %173 = memref.load %arg4[%c16] : memref<98xf32, #tpu.memory_space<smem>>
      %c1_i32_64 = arith.constant 1 : i32
      %174 = tpu.dynamic_rotate %18 by %c1_i32_64 dim 1 : vector<1x256xf32>, i32 -> vector<1x256xf32>
      %c1_i32_65 = arith.constant 1 : i32
      %175 = vector.broadcast %c1_i32_65 : i32 to vector<1x256xi32>
      %176 = arith.cmpi sge, %15, %175 : vector<1x256xi32>
      %cst_66 = arith.constant 0.000000e+00 : f32
      %177 = vector.broadcast %cst_66 : f32 to vector<1x256xf32>
      %178 = arith.select %176, %174, %177 : vector<1x256xi1>, vector<1x256xf32>
      %179 = vector.broadcast %173 : f32 to vector<1x256xf32>
      %180 = arith.mulf %179, %178 : vector<1x256xf32>
      %181 = arith.addf %172, %180 : vector<1x256xf32>
      %c17 = arith.constant 17 : index
      %182 = memref.load %arg4[%c17] : memref<98xf32, #tpu.memory_space<smem>>
      %183 = vector.broadcast %182 : f32 to vector<1x256xf32>
      %184 = arith.mulf %183, %18 : vector<1x256xf32>
      %185 = arith.addf %181, %184 : vector<1x256xf32>
      %c18 = arith.constant 18 : index
      %186 = memref.load %arg4[%c18] : memref<98xf32, #tpu.memory_space<smem>>
      %c255_i32_67 = arith.constant 255 : i32
      %187 = tpu.dynamic_rotate %18 by %c255_i32_67 dim 1 : vector<1x256xf32>, i32 -> vector<1x256xf32>
      %c15_i32_68 = arith.constant 15 : i32
      %188 = vector.broadcast %c15_i32_68 : i32 to vector<1x256xi32>
      %189 = arith.cmpi slt, %15, %188 : vector<1x256xi32>
      %cst_69 = arith.constant 0.000000e+00 : f32
      %190 = vector.broadcast %cst_69 : f32 to vector<1x256xf32>
      %191 = arith.select %189, %187, %190 : vector<1x256xi1>, vector<1x256xf32>
      %192 = vector.broadcast %186 : f32 to vector<1x256xf32>
      %193 = arith.mulf %192, %191 : vector<1x256xf32>
      %194 = arith.addf %185, %193 : vector<1x256xf32>
      %c19 = arith.constant 19 : index
      %195 = memref.load %arg4[%c19] : memref<98xf32, #tpu.memory_space<smem>>
      %c254_i32_70 = arith.constant 254 : i32
      %196 = tpu.dynamic_rotate %18 by %c254_i32_70 dim 1 : vector<1x256xf32>, i32 -> vector<1x256xf32>
      %c14_i32_71 = arith.constant 14 : i32
      %197 = vector.broadcast %c14_i32_71 : i32 to vector<1x256xi32>
      %198 = arith.cmpi slt, %15, %197 : vector<1x256xi32>
      %cst_72 = arith.constant 0.000000e+00 : f32
      %199 = vector.broadcast %cst_72 : f32 to vector<1x256xf32>
      %200 = arith.select %198, %196, %199 : vector<1x256xi1>, vector<1x256xf32>
      %201 = vector.broadcast %195 : f32 to vector<1x256xf32>
      %202 = arith.mulf %201, %200 : vector<1x256xf32>
      %203 = arith.addf %194, %202 : vector<1x256xf32>
      %c20 = arith.constant 20 : index
      %204 = memref.load %arg4[%c20] : memref<98xf32, #tpu.memory_space<smem>>
      %c253_i32_73 = arith.constant 253 : i32
      %205 = tpu.dynamic_rotate %18 by %c253_i32_73 dim 1 : vector<1x256xf32>, i32 -> vector<1x256xf32>
      %c13_i32_74 = arith.constant 13 : i32
      %206 = vector.broadcast %c13_i32_74 : i32 to vector<1x256xi32>
      %207 = arith.cmpi slt, %15, %206 : vector<1x256xi32>
      %cst_75 = arith.constant 0.000000e+00 : f32
      %208 = vector.broadcast %cst_75 : f32 to vector<1x256xf32>
      %209 = arith.select %207, %205, %208 : vector<1x256xi1>, vector<1x256xf32>
      %210 = vector.broadcast %204 : f32 to vector<1x256xf32>
      %211 = arith.mulf %210, %209 : vector<1x256xf32>
      %212 = arith.addf %203, %211 : vector<1x256xf32>
      %c16_i32 = arith.constant 16 : i32
      %213 = tpu.dynamic_rotate %212 by %c16_i32 dim 1 : vector<1x256xf32>, i32 -> vector<1x256xf32>
      %c1_i32_76 = arith.constant 1 : i32
      %214 = vector.broadcast %c1_i32_76 : i32 to vector<1x256xi32>
      %215 = arith.cmpi sge, %14, %214 : vector<1x256xi32>
      %cst_77 = arith.constant 0.000000e+00 : f32
      %216 = vector.broadcast %cst_77 : f32 to vector<1x256xf32>
      %217 = arith.select %215, %213, %216 : vector<1x256xi1>, vector<1x256xf32>
      %218 = arith.addf %153, %217 : vector<1x256xf32>
      %cst_78 = arith.constant 0.000000e+00 : f32
      %219 = vector.broadcast %cst_78 : f32 to vector<1x256xf32>
      %c21 = arith.constant 21 : index
      %220 = memref.load %arg4[%c21] : memref<98xf32, #tpu.memory_space<smem>>
      %c3_i32_79 = arith.constant 3 : i32
      %221 = tpu.dynamic_rotate %18 by %c3_i32_79 dim 1 : vector<1x256xf32>, i32 -> vector<1x256xf32>
      %c3_i32_80 = arith.constant 3 : i32
      %222 = vector.broadcast %c3_i32_80 : i32 to vector<1x256xi32>
      %223 = arith.cmpi sge, %15, %222 : vector<1x256xi32>
      %cst_81 = arith.constant 0.000000e+00 : f32
      %224 = vector.broadcast %cst_81 : f32 to vector<1x256xf32>
      %225 = arith.select %223, %221, %224 : vector<1x256xi1>, vector<1x256xf32>
      %226 = vector.broadcast %220 : f32 to vector<1x256xf32>
      %227 = arith.mulf %226, %225 : vector<1x256xf32>
      %228 = arith.addf %219, %227 : vector<1x256xf32>
      %c22 = arith.constant 22 : index
      %229 = memref.load %arg4[%c22] : memref<98xf32, #tpu.memory_space<smem>>
      %c2_i32_82 = arith.constant 2 : i32
      %230 = tpu.dynamic_rotate %18 by %c2_i32_82 dim 1 : vector<1x256xf32>, i32 -> vector<1x256xf32>
      %c2_i32_83 = arith.constant 2 : i32
      %231 = vector.broadcast %c2_i32_83 : i32 to vector<1x256xi32>
      %232 = arith.cmpi sge, %15, %231 : vector<1x256xi32>
      %cst_84 = arith.constant 0.000000e+00 : f32
      %233 = vector.broadcast %cst_84 : f32 to vector<1x256xf32>
      %234 = arith.select %232, %230, %233 : vector<1x256xi1>, vector<1x256xf32>
      %235 = vector.broadcast %229 : f32 to vector<1x256xf32>
      %236 = arith.mulf %235, %234 : vector<1x256xf32>
      %237 = arith.addf %228, %236 : vector<1x256xf32>
      %c23 = arith.constant 23 : index
      %238 = memref.load %arg4[%c23] : memref<98xf32, #tpu.memory_space<smem>>
      %c1_i32_85 = arith.constant 1 : i32
      %239 = tpu.dynamic_rotate %18 by %c1_i32_85 dim 1 : vector<1x256xf32>, i32 -> vector<1x256xf32>
      %c1_i32_86 = arith.constant 1 : i32
      %240 = vector.broadcast %c1_i32_86 : i32 to vector<1x256xi32>
      %241 = arith.cmpi sge, %15, %240 : vector<1x256xi32>
      %cst_87 = arith.constant 0.000000e+00 : f32
      %242 = vector.broadcast %cst_87 : f32 to vector<1x256xf32>
      %243 = arith.select %241, %239, %242 : vector<1x256xi1>, vector<1x256xf32>
      %244 = vector.broadcast %238 : f32 to vector<1x256xf32>
      %245 = arith.mulf %244, %243 : vector<1x256xf32>
      %246 = arith.addf %237, %245 : vector<1x256xf32>
      %c24 = arith.constant 24 : index
      %247 = memref.load %arg4[%c24] : memref<98xf32, #tpu.memory_space<smem>>
      %248 = vector.broadcast %247 : f32 to vector<1x256xf32>
      %249 = arith.mulf %248, %18 : vector<1x256xf32>
      %250 = arith.addf %246, %249 : vector<1x256xf32>
      %c25 = arith.constant 25 : index
      %251 = memref.load %arg4[%c25] : memref<98xf32, #tpu.memory_space<smem>>
      %c255_i32_88 = arith.constant 255 : i32
      %252 = tpu.dynamic_rotate %18 by %c255_i32_88 dim 1 : vector<1x256xf32>, i32 -> vector<1x256xf32>
      %c15_i32_89 = arith.constant 15 : i32
      %253 = vector.broadcast %c15_i32_89 : i32 to vector<1x256xi32>
      %254 = arith.cmpi slt, %15, %253 : vector<1x256xi32>
      %cst_90 = arith.constant 0.000000e+00 : f32
      %255 = vector.broadcast %cst_90 : f32 to vector<1x256xf32>
      %256 = arith.select %254, %252, %255 : vector<1x256xi1>, vector<1x256xf32>
      %257 = vector.broadcast %251 : f32 to vector<1x256xf32>
      %258 = arith.mulf %257, %256 : vector<1x256xf32>
      %259 = arith.addf %250, %258 : vector<1x256xf32>
      %c26 = arith.constant 26 : index
      %260 = memref.load %arg4[%c26] : memref<98xf32, #tpu.memory_space<smem>>
      %c254_i32_91 = arith.constant 254 : i32
      %261 = tpu.dynamic_rotate %18 by %c254_i32_91 dim 1 : vector<1x256xf32>, i32 -> vector<1x256xf32>
      %c14_i32_92 = arith.constant 14 : i32
      %262 = vector.broadcast %c14_i32_92 : i32 to vector<1x256xi32>
      %263 = arith.cmpi slt, %15, %262 : vector<1x256xi32>
      %cst_93 = arith.constant 0.000000e+00 : f32
      %264 = vector.broadcast %cst_93 : f32 to vector<1x256xf32>
      %265 = arith.select %263, %261, %264 : vector<1x256xi1>, vector<1x256xf32>
      %266 = vector.broadcast %260 : f32 to vector<1x256xf32>
      %267 = arith.mulf %266, %265 : vector<1x256xf32>
      %268 = arith.addf %259, %267 : vector<1x256xf32>
      %c27 = arith.constant 27 : index
      %269 = memref.load %arg4[%c27] : memref<98xf32, #tpu.memory_space<smem>>
      %c253_i32_94 = arith.constant 253 : i32
      %270 = tpu.dynamic_rotate %18 by %c253_i32_94 dim 1 : vector<1x256xf32>, i32 -> vector<1x256xf32>
      %c13_i32_95 = arith.constant 13 : i32
      %271 = vector.broadcast %c13_i32_95 : i32 to vector<1x256xi32>
      %272 = arith.cmpi slt, %15, %271 : vector<1x256xi32>
      %cst_96 = arith.constant 0.000000e+00 : f32
      %273 = vector.broadcast %cst_96 : f32 to vector<1x256xf32>
      %274 = arith.select %272, %270, %273 : vector<1x256xi1>, vector<1x256xf32>
      %275 = vector.broadcast %269 : f32 to vector<1x256xf32>
      %276 = arith.mulf %275, %274 : vector<1x256xf32>
      %277 = arith.addf %268, %276 : vector<1x256xf32>
      %278 = arith.addf %218, %277 : vector<1x256xf32>
      %cst_97 = arith.constant 0.000000e+00 : f32
      %279 = vector.broadcast %cst_97 : f32 to vector<1x256xf32>
      %c28 = arith.constant 28 : index
      %280 = memref.load %arg4[%c28] : memref<98xf32, #tpu.memory_space<smem>>
      %c3_i32_98 = arith.constant 3 : i32
      %281 = tpu.dynamic_rotate %18 by %c3_i32_98 dim 1 : vector<1x256xf32>, i32 -> vector<1x256xf32>
      %c3_i32_99 = arith.constant 3 : i32
      %282 = vector.broadcast %c3_i32_99 : i32 to vector<1x256xi32>
      %283 = arith.cmpi sge, %15, %282 : vector<1x256xi32>
      %cst_100 = arith.constant 0.000000e+00 : f32
      %284 = vector.broadcast %cst_100 : f32 to vector<1x256xf32>
      %285 = arith.select %283, %281, %284 : vector<1x256xi1>, vector<1x256xf32>
      %286 = vector.broadcast %280 : f32 to vector<1x256xf32>
      %287 = arith.mulf %286, %285 : vector<1x256xf32>
      %288 = arith.addf %279, %287 : vector<1x256xf32>
      %c29 = arith.constant 29 : index
      %289 = memref.load %arg4[%c29] : memref<98xf32, #tpu.memory_space<smem>>
      %c2_i32_101 = arith.constant 2 : i32
      %290 = tpu.dynamic_rotate %18 by %c2_i32_101 dim 1 : vector<1x256xf32>, i32 -> vector<1x256xf32>
      %c2_i32_102 = arith.constant 2 : i32
      %291 = vector.broadcast %c2_i32_102 : i32 to vector<1x256xi32>
      %292 = arith.cmpi sge, %15, %291 : vector<1x256xi32>
      %cst_103 = arith.constant 0.000000e+00 : f32
      %293 = vector.broadcast %cst_103 : f32 to vector<1x256xf32>
      %294 = arith.select %292, %290, %293 : vector<1x256xi1>, vector<1x256xf32>
      %295 = vector.broadcast %289 : f32 to vector<1x256xf32>
      %296 = arith.mulf %295, %294 : vector<1x256xf32>
      %297 = arith.addf %288, %296 : vector<1x256xf32>
      %c30 = arith.constant 30 : index
      %298 = memref.load %arg4[%c30] : memref<98xf32, #tpu.memory_space<smem>>
      %c1_i32_104 = arith.constant 1 : i32
      %299 = tpu.dynamic_rotate %18 by %c1_i32_104 dim 1 : vector<1x256xf32>, i32 -> vector<1x256xf32>
      %c1_i32_105 = arith.constant 1 : i32
      %300 = vector.broadcast %c1_i32_105 : i32 to vector<1x256xi32>
      %301 = arith.cmpi sge, %15, %300 : vector<1x256xi32>
      %cst_106 = arith.constant 0.000000e+00 : f32
      %302 = vector.broadcast %cst_106 : f32 to vector<1x256xf32>
      %303 = arith.select %301, %299, %302 : vector<1x256xi1>, vector<1x256xf32>
      %304 = vector.broadcast %298 : f32 to vector<1x256xf32>
      %305 = arith.mulf %304, %303 : vector<1x256xf32>
      %306 = arith.addf %297, %305 : vector<1x256xf32>
      %c31 = arith.constant 31 : index
      %307 = memref.load %arg4[%c31] : memref<98xf32, #tpu.memory_space<smem>>
      %308 = vector.broadcast %307 : f32 to vector<1x256xf32>
      %309 = arith.mulf %308, %18 : vector<1x256xf32>
      %310 = arith.addf %306, %309 : vector<1x256xf32>
      %c32 = arith.constant 32 : index
      %311 = memref.load %arg4[%c32] : memref<98xf32, #tpu.memory_space<smem>>
      %c255_i32_107 = arith.constant 255 : i32
      %312 = tpu.dynamic_rotate %18 by %c255_i32_107 dim 1 : vector<1x256xf32>, i32 -> vector<1x256xf32>
      %c15_i32_108 = arith.constant 15 : i32
      %313 = vector.broadcast %c15_i32_108 : i32 to vector<1x256xi32>
      %314 = arith.cmpi slt, %15, %313 : vector<1x256xi32>
      %cst_109 = arith.constant 0.000000e+00 : f32
      %315 = vector.broadcast %cst_109 : f32 to vector<1x256xf32>
      %316 = arith.select %314, %312, %315 : vector<1x256xi1>, vector<1x256xf32>
      %317 = vector.broadcast %311 : f32 to vector<1x256xf32>
      %318 = arith.mulf %317, %316 : vector<1x256xf32>
      %319 = arith.addf %310, %318 : vector<1x256xf32>
      %c33 = arith.constant 33 : index
      %320 = memref.load %arg4[%c33] : memref<98xf32, #tpu.memory_space<smem>>
      %c254_i32_110 = arith.constant 254 : i32
      %321 = tpu.dynamic_rotate %18 by %c254_i32_110 dim 1 : vector<1x256xf32>, i32 -> vector<1x256xf32>
      %c14_i32_111 = arith.constant 14 : i32
      %322 = vector.broadcast %c14_i32_111 : i32 to vector<1x256xi32>
      %323 = arith.cmpi slt, %15, %322 : vector<1x256xi32>
      %cst_112 = arith.constant 0.000000e+00 : f32
      %324 = vector.broadcast %cst_112 : f32 to vector<1x256xf32>
      %325 = arith.select %323, %321, %324 : vector<1x256xi1>, vector<1x256xf32>
      %326 = vector.broadcast %320 : f32 to vector<1x256xf32>
      %327 = arith.mulf %326, %325 : vector<1x256xf32>
      %328 = arith.addf %319, %327 : vector<1x256xf32>
      %c34 = arith.constant 34 : index
      %329 = memref.load %arg4[%c34] : memref<98xf32, #tpu.memory_space<smem>>
      %c253_i32_113 = arith.constant 253 : i32
      %330 = tpu.dynamic_rotate %18 by %c253_i32_113 dim 1 : vector<1x256xf32>, i32 -> vector<1x256xf32>
      %c13_i32_114 = arith.constant 13 : i32
      %331 = vector.broadcast %c13_i32_114 : i32 to vector<1x256xi32>
      %332 = arith.cmpi slt, %15, %331 : vector<1x256xi32>
      %cst_115 = arith.constant 0.000000e+00 : f32
      %333 = vector.broadcast %cst_115 : f32 to vector<1x256xf32>
      %334 = arith.select %332, %330, %333 : vector<1x256xi1>, vector<1x256xf32>
      %335 = vector.broadcast %329 : f32 to vector<1x256xf32>
      %336 = arith.mulf %335, %334 : vector<1x256xf32>
      %337 = arith.addf %328, %336 : vector<1x256xf32>
      %c240_i32 = arith.constant 240 : i32
      %338 = tpu.dynamic_rotate %337 by %c240_i32 dim 1 : vector<1x256xf32>, i32 -> vector<1x256xf32>
      %c15_i32_116 = arith.constant 15 : i32
      %339 = vector.broadcast %c15_i32_116 : i32 to vector<1x256xi32>
      %340 = arith.cmpi slt, %14, %339 : vector<1x256xi32>
      %cst_117 = arith.constant 0.000000e+00 : f32
      %341 = vector.broadcast %cst_117 : f32 to vector<1x256xf32>
      %342 = arith.select %340, %338, %341 : vector<1x256xi1>, vector<1x256xf32>
      %343 = arith.addf %278, %342 : vector<1x256xf32>
      %cst_118 = arith.constant 0.000000e+00 : f32
      %344 = vector.broadcast %cst_118 : f32 to vector<1x256xf32>
      %c35 = arith.constant 35 : index
      %345 = memref.load %arg4[%c35] : memref<98xf32, #tpu.memory_space<smem>>
      %c3_i32_119 = arith.constant 3 : i32
      %346 = tpu.dynamic_rotate %18 by %c3_i32_119 dim 1 : vector<1x256xf32>, i32 -> vector<1x256xf32>
      %c3_i32_120 = arith.constant 3 : i32
      %347 = vector.broadcast %c3_i32_120 : i32 to vector<1x256xi32>
      %348 = arith.cmpi sge, %15, %347 : vector<1x256xi32>
      %cst_121 = arith.constant 0.000000e+00 : f32
      %349 = vector.broadcast %cst_121 : f32 to vector<1x256xf32>
      %350 = arith.select %348, %346, %349 : vector<1x256xi1>, vector<1x256xf32>
      %351 = vector.broadcast %345 : f32 to vector<1x256xf32>
      %352 = arith.mulf %351, %350 : vector<1x256xf32>
      %353 = arith.addf %344, %352 : vector<1x256xf32>
      %c36 = arith.constant 36 : index
      %354 = memref.load %arg4[%c36] : memref<98xf32, #tpu.memory_space<smem>>
      %c2_i32_122 = arith.constant 2 : i32
      %355 = tpu.dynamic_rotate %18 by %c2_i32_122 dim 1 : vector<1x256xf32>, i32 -> vector<1x256xf32>
      %c2_i32_123 = arith.constant 2 : i32
      %356 = vector.broadcast %c2_i32_123 : i32 to vector<1x256xi32>
      %357 = arith.cmpi sge, %15, %356 : vector<1x256xi32>
      %cst_124 = arith.constant 0.000000e+00 : f32
      %358 = vector.broadcast %cst_124 : f32 to vector<1x256xf32>
      %359 = arith.select %357, %355, %358 : vector<1x256xi1>, vector<1x256xf32>
      %360 = vector.broadcast %354 : f32 to vector<1x256xf32>
      %361 = arith.mulf %360, %359 : vector<1x256xf32>
      %362 = arith.addf %353, %361 : vector<1x256xf32>
      %c37 = arith.constant 37 : index
      %363 = memref.load %arg4[%c37] : memref<98xf32, #tpu.memory_space<smem>>
      %c1_i32_125 = arith.constant 1 : i32
      %364 = tpu.dynamic_rotate %18 by %c1_i32_125 dim 1 : vector<1x256xf32>, i32 -> vector<1x256xf32>
      %c1_i32_126 = arith.constant 1 : i32
      %365 = vector.broadcast %c1_i32_126 : i32 to vector<1x256xi32>
      %366 = arith.cmpi sge, %15, %365 : vector<1x256xi32>
      %cst_127 = arith.constant 0.000000e+00 : f32
      %367 = vector.broadcast %cst_127 : f32 to vector<1x256xf32>
      %368 = arith.select %366, %364, %367 : vector<1x256xi1>, vector<1x256xf32>
      %369 = vector.broadcast %363 : f32 to vector<1x256xf32>
      %370 = arith.mulf %369, %368 : vector<1x256xf32>
      %371 = arith.addf %362, %370 : vector<1x256xf32>
      %c38 = arith.constant 38 : index
      %372 = memref.load %arg4[%c38] : memref<98xf32, #tpu.memory_space<smem>>
      %373 = vector.broadcast %372 : f32 to vector<1x256xf32>
      %374 = arith.mulf %373, %18 : vector<1x256xf32>
      %375 = arith.addf %371, %374 : vector<1x256xf32>
      %c39 = arith.constant 39 : index
      %376 = memref.load %arg4[%c39] : memref<98xf32, #tpu.memory_space<smem>>
      %c255_i32_128 = arith.constant 255 : i32
      %377 = tpu.dynamic_rotate %18 by %c255_i32_128 dim 1 : vector<1x256xf32>, i32 -> vector<1x256xf32>
      %c15_i32_129 = arith.constant 15 : i32
      %378 = vector.broadcast %c15_i32_129 : i32 to vector<1x256xi32>
      %379 = arith.cmpi slt, %15, %378 : vector<1x256xi32>
      %cst_130 = arith.constant 0.000000e+00 : f32
      %380 = vector.broadcast %cst_130 : f32 to vector<1x256xf32>
      %381 = arith.select %379, %377, %380 : vector<1x256xi1>, vector<1x256xf32>
      %382 = vector.broadcast %376 : f32 to vector<1x256xf32>
      %383 = arith.mulf %382, %381 : vector<1x256xf32>
      %384 = arith.addf %375, %383 : vector<1x256xf32>
      %c40 = arith.constant 40 : index
      %385 = memref.load %arg4[%c40] : memref<98xf32, #tpu.memory_space<smem>>
      %c254_i32_131 = arith.constant 254 : i32
      %386 = tpu.dynamic_rotate %18 by %c254_i32_131 dim 1 : vector<1x256xf32>, i32 -> vector<1x256xf32>
      %c14_i32_132 = arith.constant 14 : i32
      %387 = vector.broadcast %c14_i32_132 : i32 to vector<1x256xi32>
      %388 = arith.cmpi slt, %15, %387 : vector<1x256xi32>
      %cst_133 = arith.constant 0.000000e+00 : f32
      %389 = vector.broadcast %cst_133 : f32 to vector<1x256xf32>
      %390 = arith.select %388, %386, %389 : vector<1x256xi1>, vector<1x256xf32>
      %391 = vector.broadcast %385 : f32 to vector<1x256xf32>
      %392 = arith.mulf %391, %390 : vector<1x256xf32>
      %393 = arith.addf %384, %392 : vector<1x256xf32>
      %c41 = arith.constant 41 : index
      %394 = memref.load %arg4[%c41] : memref<98xf32, #tpu.memory_space<smem>>
      %c253_i32_134 = arith.constant 253 : i32
      %395 = tpu.dynamic_rotate %18 by %c253_i32_134 dim 1 : vector<1x256xf32>, i32 -> vector<1x256xf32>
      %c13_i32_135 = arith.constant 13 : i32
      %396 = vector.broadcast %c13_i32_135 : i32 to vector<1x256xi32>
      %397 = arith.cmpi slt, %15, %396 : vector<1x256xi32>
      %cst_136 = arith.constant 0.000000e+00 : f32
      %398 = vector.broadcast %cst_136 : f32 to vector<1x256xf32>
      %399 = arith.select %397, %395, %398 : vector<1x256xi1>, vector<1x256xf32>
      %400 = vector.broadcast %394 : f32 to vector<1x256xf32>
      %401 = arith.mulf %400, %399 : vector<1x256xf32>
      %402 = arith.addf %393, %401 : vector<1x256xf32>
      %c224_i32 = arith.constant 224 : i32
      %403 = tpu.dynamic_rotate %402 by %c224_i32 dim 1 : vector<1x256xf32>, i32 -> vector<1x256xf32>
      %c14_i32_137 = arith.constant 14 : i32
      %404 = vector.broadcast %c14_i32_137 : i32 to vector<1x256xi32>
      %405 = arith.cmpi slt, %14, %404 : vector<1x256xi32>
      %cst_138 = arith.constant 0.000000e+00 : f32
      %406 = vector.broadcast %cst_138 : f32 to vector<1x256xf32>
      %407 = arith.select %405, %403, %406 : vector<1x256xi1>, vector<1x256xf32>
      %408 = arith.addf %343, %407 : vector<1x256xf32>
      %cst_139 = arith.constant 0.000000e+00 : f32
      %409 = vector.broadcast %cst_139 : f32 to vector<1x256xf32>
      %c42 = arith.constant 42 : index
      %410 = memref.load %arg4[%c42] : memref<98xf32, #tpu.memory_space<smem>>
      %c3_i32_140 = arith.constant 3 : i32
      %411 = tpu.dynamic_rotate %18 by %c3_i32_140 dim 1 : vector<1x256xf32>, i32 -> vector<1x256xf32>
      %c3_i32_141 = arith.constant 3 : i32
      %412 = vector.broadcast %c3_i32_141 : i32 to vector<1x256xi32>
      %413 = arith.cmpi sge, %15, %412 : vector<1x256xi32>
      %cst_142 = arith.constant 0.000000e+00 : f32
      %414 = vector.broadcast %cst_142 : f32 to vector<1x256xf32>
      %415 = arith.select %413, %411, %414 : vector<1x256xi1>, vector<1x256xf32>
      %416 = vector.broadcast %410 : f32 to vector<1x256xf32>
      %417 = arith.mulf %416, %415 : vector<1x256xf32>
      %418 = arith.addf %409, %417 : vector<1x256xf32>
      %c43 = arith.constant 43 : index
      %419 = memref.load %arg4[%c43] : memref<98xf32, #tpu.memory_space<smem>>
      %c2_i32_143 = arith.constant 2 : i32
      %420 = tpu.dynamic_rotate %18 by %c2_i32_143 dim 1 : vector<1x256xf32>, i32 -> vector<1x256xf32>
      %c2_i32_144 = arith.constant 2 : i32
      %421 = vector.broadcast %c2_i32_144 : i32 to vector<1x256xi32>
      %422 = arith.cmpi sge, %15, %421 : vector<1x256xi32>
      %cst_145 = arith.constant 0.000000e+00 : f32
      %423 = vector.broadcast %cst_145 : f32 to vector<1x256xf32>
      %424 = arith.select %422, %420, %423 : vector<1x256xi1>, vector<1x256xf32>
      %425 = vector.broadcast %419 : f32 to vector<1x256xf32>
      %426 = arith.mulf %425, %424 : vector<1x256xf32>
      %427 = arith.addf %418, %426 : vector<1x256xf32>
      %c44 = arith.constant 44 : index
      %428 = memref.load %arg4[%c44] : memref<98xf32, #tpu.memory_space<smem>>
      %c1_i32_146 = arith.constant 1 : i32
      %429 = tpu.dynamic_rotate %18 by %c1_i32_146 dim 1 : vector<1x256xf32>, i32 -> vector<1x256xf32>
      %c1_i32_147 = arith.constant 1 : i32
      %430 = vector.broadcast %c1_i32_147 : i32 to vector<1x256xi32>
      %431 = arith.cmpi sge, %15, %430 : vector<1x256xi32>
      %cst_148 = arith.constant 0.000000e+00 : f32
      %432 = vector.broadcast %cst_148 : f32 to vector<1x256xf32>
      %433 = arith.select %431, %429, %432 : vector<1x256xi1>, vector<1x256xf32>
      %434 = vector.broadcast %428 : f32 to vector<1x256xf32>
      %435 = arith.mulf %434, %433 : vector<1x256xf32>
      %436 = arith.addf %427, %435 : vector<1x256xf32>
      %c45 = arith.constant 45 : index
      %437 = memref.load %arg4[%c45] : memref<98xf32, #tpu.memory_space<smem>>
      %438 = vector.broadcast %437 : f32 to vector<1x256xf32>
      %439 = arith.mulf %438, %18 : vector<1x256xf32>
      %440 = arith.addf %436, %439 : vector<1x256xf32>
      %c46 = arith.constant 46 : index
      %441 = memref.load %arg4[%c46] : memref<98xf32, #tpu.memory_space<smem>>
      %c255_i32_149 = arith.constant 255 : i32
      %442 = tpu.dynamic_rotate %18 by %c255_i32_149 dim 1 : vector<1x256xf32>, i32 -> vector<1x256xf32>
      %c15_i32_150 = arith.constant 15 : i32
      %443 = vector.broadcast %c15_i32_150 : i32 to vector<1x256xi32>
      %444 = arith.cmpi slt, %15, %443 : vector<1x256xi32>
      %cst_151 = arith.constant 0.000000e+00 : f32
      %445 = vector.broadcast %cst_151 : f32 to vector<1x256xf32>
      %446 = arith.select %444, %442, %445 : vector<1x256xi1>, vector<1x256xf32>
      %447 = vector.broadcast %441 : f32 to vector<1x256xf32>
      %448 = arith.mulf %447, %446 : vector<1x256xf32>
      %449 = arith.addf %440, %448 : vector<1x256xf32>
      %c47 = arith.constant 47 : index
      %450 = memref.load %arg4[%c47] : memref<98xf32, #tpu.memory_space<smem>>
      %c254_i32_152 = arith.constant 254 : i32
      %451 = tpu.dynamic_rotate %18 by %c254_i32_152 dim 1 : vector<1x256xf32>, i32 -> vector<1x256xf32>
      %c14_i32_153 = arith.constant 14 : i32
      %452 = vector.broadcast %c14_i32_153 : i32 to vector<1x256xi32>
      %453 = arith.cmpi slt, %15, %452 : vector<1x256xi32>
      %cst_154 = arith.constant 0.000000e+00 : f32
      %454 = vector.broadcast %cst_154 : f32 to vector<1x256xf32>
      %455 = arith.select %453, %451, %454 : vector<1x256xi1>, vector<1x256xf32>
      %456 = vector.broadcast %450 : f32 to vector<1x256xf32>
      %457 = arith.mulf %456, %455 : vector<1x256xf32>
      %458 = arith.addf %449, %457 : vector<1x256xf32>
      %c48 = arith.constant 48 : index
      %459 = memref.load %arg4[%c48] : memref<98xf32, #tpu.memory_space<smem>>
      %c253_i32_155 = arith.constant 253 : i32
      %460 = tpu.dynamic_rotate %18 by %c253_i32_155 dim 1 : vector<1x256xf32>, i32 -> vector<1x256xf32>
      %c13_i32_156 = arith.constant 13 : i32
      %461 = vector.broadcast %c13_i32_156 : i32 to vector<1x256xi32>
      %462 = arith.cmpi slt, %15, %461 : vector<1x256xi32>
      %cst_157 = arith.constant 0.000000e+00 : f32
      %463 = vector.broadcast %cst_157 : f32 to vector<1x256xf32>
      %464 = arith.select %462, %460, %463 : vector<1x256xi1>, vector<1x256xf32>
      %465 = vector.broadcast %459 : f32 to vector<1x256xf32>
      %466 = arith.mulf %465, %464 : vector<1x256xf32>
      %467 = arith.addf %458, %466 : vector<1x256xf32>
      %c208_i32 = arith.constant 208 : i32
      %468 = tpu.dynamic_rotate %467 by %c208_i32 dim 1 : vector<1x256xf32>, i32 -> vector<1x256xf32>
      %c13_i32_158 = arith.constant 13 : i32
      %469 = vector.broadcast %c13_i32_158 : i32 to vector<1x256xi32>
      %470 = arith.cmpi slt, %14, %469 : vector<1x256xi32>
      %cst_159 = arith.constant 0.000000e+00 : f32
      %471 = vector.broadcast %cst_159 : f32 to vector<1x256xf32>
      %472 = arith.select %470, %468, %471 : vector<1x256xi1>, vector<1x256xf32>
      %473 = arith.addf %408, %472 : vector<1x256xf32>
      %cst_160 = arith.constant 0.000000e+00 : f32
      %474 = vector.broadcast %cst_160 : f32 to vector<1x256xf32>
      %c49 = arith.constant 49 : index
      %475 = memref.load %arg4[%c49] : memref<98xf32, #tpu.memory_space<smem>>
      %c3_i32_161 = arith.constant 3 : i32
      %476 = tpu.dynamic_rotate %21 by %c3_i32_161 dim 1 : vector<1x256xf32>, i32 -> vector<1x256xf32>
      %c3_i32_162 = arith.constant 3 : i32
      %477 = vector.broadcast %c3_i32_162 : i32 to vector<1x256xi32>
      %478 = arith.cmpi sge, %15, %477 : vector<1x256xi32>
      %cst_163 = arith.constant 0.000000e+00 : f32
      %479 = vector.broadcast %cst_163 : f32 to vector<1x256xf32>
      %480 = arith.select %478, %476, %479 : vector<1x256xi1>, vector<1x256xf32>
      %481 = vector.broadcast %475 : f32 to vector<1x256xf32>
      %482 = arith.mulf %481, %480 : vector<1x256xf32>
      %483 = arith.addf %474, %482 : vector<1x256xf32>
      %c50 = arith.constant 50 : index
      %484 = memref.load %arg4[%c50] : memref<98xf32, #tpu.memory_space<smem>>
      %c2_i32_164 = arith.constant 2 : i32
      %485 = tpu.dynamic_rotate %21 by %c2_i32_164 dim 1 : vector<1x256xf32>, i32 -> vector<1x256xf32>
      %c2_i32_165 = arith.constant 2 : i32
      %486 = vector.broadcast %c2_i32_165 : i32 to vector<1x256xi32>
      %487 = arith.cmpi sge, %15, %486 : vector<1x256xi32>
      %cst_166 = arith.constant 0.000000e+00 : f32
      %488 = vector.broadcast %cst_166 : f32 to vector<1x256xf32>
      %489 = arith.select %487, %485, %488 : vector<1x256xi1>, vector<1x256xf32>
      %490 = vector.broadcast %484 : f32 to vector<1x256xf32>
      %491 = arith.mulf %490, %489 : vector<1x256xf32>
      %492 = arith.addf %483, %491 : vector<1x256xf32>
      %c51 = arith.constant 51 : index
      %493 = memref.load %arg4[%c51] : memref<98xf32, #tpu.memory_space<smem>>
      %c1_i32_167 = arith.constant 1 : i32
      %494 = tpu.dynamic_rotate %21 by %c1_i32_167 dim 1 : vector<1x256xf32>, i32 -> vector<1x256xf32>
      %c1_i32_168 = arith.constant 1 : i32
      %495 = vector.broadcast %c1_i32_168 : i32 to vector<1x256xi32>
      %496 = arith.cmpi sge, %15, %495 : vector<1x256xi32>
      %cst_169 = arith.constant 0.000000e+00 : f32
      %497 = vector.broadcast %cst_169 : f32 to vector<1x256xf32>
      %498 = arith.select %496, %494, %497 : vector<1x256xi1>, vector<1x256xf32>
      %499 = vector.broadcast %493 : f32 to vector<1x256xf32>
      %500 = arith.mulf %499, %498 : vector<1x256xf32>
      %501 = arith.addf %492, %500 : vector<1x256xf32>
      %c52 = arith.constant 52 : index
      %502 = memref.load %arg4[%c52] : memref<98xf32, #tpu.memory_space<smem>>
      %503 = vector.broadcast %502 : f32 to vector<1x256xf32>
      %504 = arith.mulf %503, %21 : vector<1x256xf32>
      %505 = arith.addf %501, %504 : vector<1x256xf32>
      %c53 = arith.constant 53 : index
      %506 = memref.load %arg4[%c53] : memref<98xf32, #tpu.memory_space<smem>>
      %c255_i32_170 = arith.constant 255 : i32
      %507 = tpu.dynamic_rotate %21 by %c255_i32_170 dim 1 : vector<1x256xf32>, i32 -> vector<1x256xf32>
      %c15_i32_171 = arith.constant 15 : i32
      %508 = vector.broadcast %c15_i32_171 : i32 to vector<1x256xi32>
      %509 = arith.cmpi slt, %15, %508 : vector<1x256xi32>
      %cst_172 = arith.constant 0.000000e+00 : f32
      %510 = vector.broadcast %cst_172 : f32 to vector<1x256xf32>
      %511 = arith.select %509, %507, %510 : vector<1x256xi1>, vector<1x256xf32>
      %512 = vector.broadcast %506 : f32 to vector<1x256xf32>
      %513 = arith.mulf %512, %511 : vector<1x256xf32>
      %514 = arith.addf %505, %513 : vector<1x256xf32>
      %c54 = arith.constant 54 : index
      %515 = memref.load %arg4[%c54] : memref<98xf32, #tpu.memory_space<smem>>
      %c254_i32_173 = arith.constant 254 : i32
      %516 = tpu.dynamic_rotate %21 by %c254_i32_173 dim 1 : vector<1x256xf32>, i32 -> vector<1x256xf32>
      %c14_i32_174 = arith.constant 14 : i32
      %517 = vector.broadcast %c14_i32_174 : i32 to vector<1x256xi32>
      %518 = arith.cmpi slt, %15, %517 : vector<1x256xi32>
      %cst_175 = arith.constant 0.000000e+00 : f32
      %519 = vector.broadcast %cst_175 : f32 to vector<1x256xf32>
      %520 = arith.select %518, %516, %519 : vector<1x256xi1>, vector<1x256xf32>
      %521 = vector.broadcast %515 : f32 to vector<1x256xf32>
      %522 = arith.mulf %521, %520 : vector<1x256xf32>
      %523 = arith.addf %514, %522 : vector<1x256xf32>
      %c55 = arith.constant 55 : index
      %524 = memref.load %arg4[%c55] : memref<98xf32, #tpu.memory_space<smem>>
      %c253_i32_176 = arith.constant 253 : i32
      %525 = tpu.dynamic_rotate %21 by %c253_i32_176 dim 1 : vector<1x256xf32>, i32 -> vector<1x256xf32>
      %c13_i32_177 = arith.constant 13 : i32
      %526 = vector.broadcast %c13_i32_177 : i32 to vector<1x256xi32>
      %527 = arith.cmpi slt, %15, %526 : vector<1x256xi32>
      %cst_178 = arith.constant 0.000000e+00 : f32
      %528 = vector.broadcast %cst_178 : f32 to vector<1x256xf32>
      %529 = arith.select %527, %525, %528 : vector<1x256xi1>, vector<1x256xf32>
      %530 = vector.broadcast %524 : f32 to vector<1x256xf32>
      %531 = arith.mulf %530, %529 : vector<1x256xf32>
      %532 = arith.addf %523, %531 : vector<1x256xf32>
      %c48_i32_179 = arith.constant 48 : i32
      %533 = tpu.dynamic_rotate %532 by %c48_i32_179 dim 1 : vector<1x256xf32>, i32 -> vector<1x256xf32>
      %c3_i32_180 = arith.constant 3 : i32
      %534 = vector.broadcast %c3_i32_180 : i32 to vector<1x256xi32>
      %535 = arith.cmpi sge, %14, %534 : vector<1x256xi32>
      %cst_181 = arith.constant 0.000000e+00 : f32
      %536 = vector.broadcast %cst_181 : f32 to vector<1x256xf32>
      %537 = arith.select %535, %533, %536 : vector<1x256xi1>, vector<1x256xf32>
      %538 = arith.addf %473, %537 : vector<1x256xf32>
      %cst_182 = arith.constant 0.000000e+00 : f32
      %539 = vector.broadcast %cst_182 : f32 to vector<1x256xf32>
      %c56 = arith.constant 56 : index
      %540 = memref.load %arg4[%c56] : memref<98xf32, #tpu.memory_space<smem>>
      %c3_i32_183 = arith.constant 3 : i32
      %541 = tpu.dynamic_rotate %21 by %c3_i32_183 dim 1 : vector<1x256xf32>, i32 -> vector<1x256xf32>
      %c3_i32_184 = arith.constant 3 : i32
      %542 = vector.broadcast %c3_i32_184 : i32 to vector<1x256xi32>
      %543 = arith.cmpi sge, %15, %542 : vector<1x256xi32>
      %cst_185 = arith.constant 0.000000e+00 : f32
      %544 = vector.broadcast %cst_185 : f32 to vector<1x256xf32>
      %545 = arith.select %543, %541, %544 : vector<1x256xi1>, vector<1x256xf32>
      %546 = vector.broadcast %540 : f32 to vector<1x256xf32>
      %547 = arith.mulf %546, %545 : vector<1x256xf32>
      %548 = arith.addf %539, %547 : vector<1x256xf32>
      %c57 = arith.constant 57 : index
      %549 = memref.load %arg4[%c57] : memref<98xf32, #tpu.memory_space<smem>>
      %c2_i32_186 = arith.constant 2 : i32
      %550 = tpu.dynamic_rotate %21 by %c2_i32_186 dim 1 : vector<1x256xf32>, i32 -> vector<1x256xf32>
      %c2_i32_187 = arith.constant 2 : i32
      %551 = vector.broadcast %c2_i32_187 : i32 to vector<1x256xi32>
      %552 = arith.cmpi sge, %15, %551 : vector<1x256xi32>
      %cst_188 = arith.constant 0.000000e+00 : f32
      %553 = vector.broadcast %cst_188 : f32 to vector<1x256xf32>
      %554 = arith.select %552, %550, %553 : vector<1x256xi1>, vector<1x256xf32>
      %555 = vector.broadcast %549 : f32 to vector<1x256xf32>
      %556 = arith.mulf %555, %554 : vector<1x256xf32>
      %557 = arith.addf %548, %556 : vector<1x256xf32>
      %c58 = arith.constant 58 : index
      %558 = memref.load %arg4[%c58] : memref<98xf32, #tpu.memory_space<smem>>
      %c1_i32_189 = arith.constant 1 : i32
      %559 = tpu.dynamic_rotate %21 by %c1_i32_189 dim 1 : vector<1x256xf32>, i32 -> vector<1x256xf32>
      %c1_i32_190 = arith.constant 1 : i32
      %560 = vector.broadcast %c1_i32_190 : i32 to vector<1x256xi32>
      %561 = arith.cmpi sge, %15, %560 : vector<1x256xi32>
      %cst_191 = arith.constant 0.000000e+00 : f32
      %562 = vector.broadcast %cst_191 : f32 to vector<1x256xf32>
      %563 = arith.select %561, %559, %562 : vector<1x256xi1>, vector<1x256xf32>
      %564 = vector.broadcast %558 : f32 to vector<1x256xf32>
      %565 = arith.mulf %564, %563 : vector<1x256xf32>
      %566 = arith.addf %557, %565 : vector<1x256xf32>
      %c59 = arith.constant 59 : index
      %567 = memref.load %arg4[%c59] : memref<98xf32, #tpu.memory_space<smem>>
      %568 = vector.broadcast %567 : f32 to vector<1x256xf32>
      %569 = arith.mulf %568, %21 : vector<1x256xf32>
      %570 = arith.addf %566, %569 : vector<1x256xf32>
      %c60 = arith.constant 60 : index
      %571 = memref.load %arg4[%c60] : memref<98xf32, #tpu.memory_space<smem>>
      %c255_i32_192 = arith.constant 255 : i32
      %572 = tpu.dynamic_rotate %21 by %c255_i32_192 dim 1 : vector<1x256xf32>, i32 -> vector<1x256xf32>
      %c15_i32_193 = arith.constant 15 : i32
      %573 = vector.broadcast %c15_i32_193 : i32 to vector<1x256xi32>
      %574 = arith.cmpi slt, %15, %573 : vector<1x256xi32>
      %cst_194 = arith.constant 0.000000e+00 : f32
      %575 = vector.broadcast %cst_194 : f32 to vector<1x256xf32>
      %576 = arith.select %574, %572, %575 : vector<1x256xi1>, vector<1x256xf32>
      %577 = vector.broadcast %571 : f32 to vector<1x256xf32>
      %578 = arith.mulf %577, %576 : vector<1x256xf32>
      %579 = arith.addf %570, %578 : vector<1x256xf32>
      %c61 = arith.constant 61 : index
      %580 = memref.load %arg4[%c61] : memref<98xf32, #tpu.memory_space<smem>>
      %c254_i32_195 = arith.constant 254 : i32
      %581 = tpu.dynamic_rotate %21 by %c254_i32_195 dim 1 : vector<1x256xf32>, i32 -> vector<1x256xf32>
      %c14_i32_196 = arith.constant 14 : i32
      %582 = vector.broadcast %c14_i32_196 : i32 to vector<1x256xi32>
      %583 = arith.cmpi slt, %15, %582 : vector<1x256xi32>
      %cst_197 = arith.constant 0.000000e+00 : f32
      %584 = vector.broadcast %cst_197 : f32 to vector<1x256xf32>
      %585 = arith.select %583, %581, %584 : vector<1x256xi1>, vector<1x256xf32>
      %586 = vector.broadcast %580 : f32 to vector<1x256xf32>
      %587 = arith.mulf %586, %585 : vector<1x256xf32>
      %588 = arith.addf %579, %587 : vector<1x256xf32>
      %c62 = arith.constant 62 : index
      %589 = memref.load %arg4[%c62] : memref<98xf32, #tpu.memory_space<smem>>
      %c253_i32_198 = arith.constant 253 : i32
      %590 = tpu.dynamic_rotate %21 by %c253_i32_198 dim 1 : vector<1x256xf32>, i32 -> vector<1x256xf32>
      %c13_i32_199 = arith.constant 13 : i32
      %591 = vector.broadcast %c13_i32_199 : i32 to vector<1x256xi32>
      %592 = arith.cmpi slt, %15, %591 : vector<1x256xi32>
      %cst_200 = arith.constant 0.000000e+00 : f32
      %593 = vector.broadcast %cst_200 : f32 to vector<1x256xf32>
      %594 = arith.select %592, %590, %593 : vector<1x256xi1>, vector<1x256xf32>
      %595 = vector.broadcast %589 : f32 to vector<1x256xf32>
      %596 = arith.mulf %595, %594 : vector<1x256xf32>
      %597 = arith.addf %588, %596 : vector<1x256xf32>
      %c32_i32_201 = arith.constant 32 : i32
      %598 = tpu.dynamic_rotate %597 by %c32_i32_201 dim 1 : vector<1x256xf32>, i32 -> vector<1x256xf32>
      %c2_i32_202 = arith.constant 2 : i32
      %599 = vector.broadcast %c2_i32_202 : i32 to vector<1x256xi32>
      %600 = arith.cmpi sge, %14, %599 : vector<1x256xi32>
      %cst_203 = arith.constant 0.000000e+00 : f32
      %601 = vector.broadcast %cst_203 : f32 to vector<1x256xf32>
      %602 = arith.select %600, %598, %601 : vector<1x256xi1>, vector<1x256xf32>
      %603 = arith.addf %538, %602 : vector<1x256xf32>
      %cst_204 = arith.constant 0.000000e+00 : f32
      %604 = vector.broadcast %cst_204 : f32 to vector<1x256xf32>
      %c63 = arith.constant 63 : index
      %605 = memref.load %arg4[%c63] : memref<98xf32, #tpu.memory_space<smem>>
      %c3_i32_205 = arith.constant 3 : i32
      %606 = tpu.dynamic_rotate %21 by %c3_i32_205 dim 1 : vector<1x256xf32>, i32 -> vector<1x256xf32>
      %c3_i32_206 = arith.constant 3 : i32
      %607 = vector.broadcast %c3_i32_206 : i32 to vector<1x256xi32>
      %608 = arith.cmpi sge, %15, %607 : vector<1x256xi32>
      %cst_207 = arith.constant 0.000000e+00 : f32
      %609 = vector.broadcast %cst_207 : f32 to vector<1x256xf32>
      %610 = arith.select %608, %606, %609 : vector<1x256xi1>, vector<1x256xf32>
      %611 = vector.broadcast %605 : f32 to vector<1x256xf32>
      %612 = arith.mulf %611, %610 : vector<1x256xf32>
      %613 = arith.addf %604, %612 : vector<1x256xf32>
      %c64 = arith.constant 64 : index
      %614 = memref.load %arg4[%c64] : memref<98xf32, #tpu.memory_space<smem>>
      %c2_i32_208 = arith.constant 2 : i32
      %615 = tpu.dynamic_rotate %21 by %c2_i32_208 dim 1 : vector<1x256xf32>, i32 -> vector<1x256xf32>
      %c2_i32_209 = arith.constant 2 : i32
      %616 = vector.broadcast %c2_i32_209 : i32 to vector<1x256xi32>
      %617 = arith.cmpi sge, %15, %616 : vector<1x256xi32>
      %cst_210 = arith.constant 0.000000e+00 : f32
      %618 = vector.broadcast %cst_210 : f32 to vector<1x256xf32>
      %619 = arith.select %617, %615, %618 : vector<1x256xi1>, vector<1x256xf32>
      %620 = vector.broadcast %614 : f32 to vector<1x256xf32>
      %621 = arith.mulf %620, %619 : vector<1x256xf32>
      %622 = arith.addf %613, %621 : vector<1x256xf32>
      %c65 = arith.constant 65 : index
      %623 = memref.load %arg4[%c65] : memref<98xf32, #tpu.memory_space<smem>>
      %c1_i32_211 = arith.constant 1 : i32
      %624 = tpu.dynamic_rotate %21 by %c1_i32_211 dim 1 : vector<1x256xf32>, i32 -> vector<1x256xf32>
      %c1_i32_212 = arith.constant 1 : i32
      %625 = vector.broadcast %c1_i32_212 : i32 to vector<1x256xi32>
      %626 = arith.cmpi sge, %15, %625 : vector<1x256xi32>
      %cst_213 = arith.constant 0.000000e+00 : f32
      %627 = vector.broadcast %cst_213 : f32 to vector<1x256xf32>
      %628 = arith.select %626, %624, %627 : vector<1x256xi1>, vector<1x256xf32>
      %629 = vector.broadcast %623 : f32 to vector<1x256xf32>
      %630 = arith.mulf %629, %628 : vector<1x256xf32>
      %631 = arith.addf %622, %630 : vector<1x256xf32>
      %c66 = arith.constant 66 : index
      %632 = memref.load %arg4[%c66] : memref<98xf32, #tpu.memory_space<smem>>
      %633 = vector.broadcast %632 : f32 to vector<1x256xf32>
      %634 = arith.mulf %633, %21 : vector<1x256xf32>
      %635 = arith.addf %631, %634 : vector<1x256xf32>
      %c67 = arith.constant 67 : index
      %636 = memref.load %arg4[%c67] : memref<98xf32, #tpu.memory_space<smem>>
      %c255_i32_214 = arith.constant 255 : i32
      %637 = tpu.dynamic_rotate %21 by %c255_i32_214 dim 1 : vector<1x256xf32>, i32 -> vector<1x256xf32>
      %c15_i32_215 = arith.constant 15 : i32
      %638 = vector.broadcast %c15_i32_215 : i32 to vector<1x256xi32>
      %639 = arith.cmpi slt, %15, %638 : vector<1x256xi32>
      %cst_216 = arith.constant 0.000000e+00 : f32
      %640 = vector.broadcast %cst_216 : f32 to vector<1x256xf32>
      %641 = arith.select %639, %637, %640 : vector<1x256xi1>, vector<1x256xf32>
      %642 = vector.broadcast %636 : f32 to vector<1x256xf32>
      %643 = arith.mulf %642, %641 : vector<1x256xf32>
      %644 = arith.addf %635, %643 : vector<1x256xf32>
      %c68 = arith.constant 68 : index
      %645 = memref.load %arg4[%c68] : memref<98xf32, #tpu.memory_space<smem>>
      %c254_i32_217 = arith.constant 254 : i32
      %646 = tpu.dynamic_rotate %21 by %c254_i32_217 dim 1 : vector<1x256xf32>, i32 -> vector<1x256xf32>
      %c14_i32_218 = arith.constant 14 : i32
      %647 = vector.broadcast %c14_i32_218 : i32 to vector<1x256xi32>
      %648 = arith.cmpi slt, %15, %647 : vector<1x256xi32>
      %cst_219 = arith.constant 0.000000e+00 : f32
      %649 = vector.broadcast %cst_219 : f32 to vector<1x256xf32>
      %650 = arith.select %648, %646, %649 : vector<1x256xi1>, vector<1x256xf32>
      %651 = vector.broadcast %645 : f32 to vector<1x256xf32>
      %652 = arith.mulf %651, %650 : vector<1x256xf32>
      %653 = arith.addf %644, %652 : vector<1x256xf32>
      %c69 = arith.constant 69 : index
      %654 = memref.load %arg4[%c69] : memref<98xf32, #tpu.memory_space<smem>>
      %c253_i32_220 = arith.constant 253 : i32
      %655 = tpu.dynamic_rotate %21 by %c253_i32_220 dim 1 : vector<1x256xf32>, i32 -> vector<1x256xf32>
      %c13_i32_221 = arith.constant 13 : i32
      %656 = vector.broadcast %c13_i32_221 : i32 to vector<1x256xi32>
      %657 = arith.cmpi slt, %15, %656 : vector<1x256xi32>
      %cst_222 = arith.constant 0.000000e+00 : f32
      %658 = vector.broadcast %cst_222 : f32 to vector<1x256xf32>
      %659 = arith.select %657, %655, %658 : vector<1x256xi1>, vector<1x256xf32>
      %660 = vector.broadcast %654 : f32 to vector<1x256xf32>
      %661 = arith.mulf %660, %659 : vector<1x256xf32>
      %662 = arith.addf %653, %661 : vector<1x256xf32>
      %c16_i32_223 = arith.constant 16 : i32
      %663 = tpu.dynamic_rotate %662 by %c16_i32_223 dim 1 : vector<1x256xf32>, i32 -> vector<1x256xf32>
      %c1_i32_224 = arith.constant 1 : i32
      %664 = vector.broadcast %c1_i32_224 : i32 to vector<1x256xi32>
      %665 = arith.cmpi sge, %14, %664 : vector<1x256xi32>
      %cst_225 = arith.constant 0.000000e+00 : f32
      %666 = vector.broadcast %cst_225 : f32 to vector<1x256xf32>
      %667 = arith.select %665, %663, %666 : vector<1x256xi1>, vector<1x256xf32>
      %668 = arith.addf %603, %667 : vector<1x256xf32>
      %cst_226 = arith.constant 0.000000e+00 : f32
      %669 = vector.broadcast %cst_226 : f32 to vector<1x256xf32>
      %c70 = arith.constant 70 : index
      %670 = memref.load %arg4[%c70] : memref<98xf32, #tpu.memory_space<smem>>
      %c3_i32_227 = arith.constant 3 : i32
      %671 = tpu.dynamic_rotate %21 by %c3_i32_227 dim 1 : vector<1x256xf32>, i32 -> vector<1x256xf32>
      %c3_i32_228 = arith.constant 3 : i32
      %672 = vector.broadcast %c3_i32_228 : i32 to vector<1x256xi32>
      %673 = arith.cmpi sge, %15, %672 : vector<1x256xi32>
      %cst_229 = arith.constant 0.000000e+00 : f32
      %674 = vector.broadcast %cst_229 : f32 to vector<1x256xf32>
      %675 = arith.select %673, %671, %674 : vector<1x256xi1>, vector<1x256xf32>
      %676 = vector.broadcast %670 : f32 to vector<1x256xf32>
      %677 = arith.mulf %676, %675 : vector<1x256xf32>
      %678 = arith.addf %669, %677 : vector<1x256xf32>
      %c71 = arith.constant 71 : index
      %679 = memref.load %arg4[%c71] : memref<98xf32, #tpu.memory_space<smem>>
      %c2_i32_230 = arith.constant 2 : i32
      %680 = tpu.dynamic_rotate %21 by %c2_i32_230 dim 1 : vector<1x256xf32>, i32 -> vector<1x256xf32>
      %c2_i32_231 = arith.constant 2 : i32
      %681 = vector.broadcast %c2_i32_231 : i32 to vector<1x256xi32>
      %682 = arith.cmpi sge, %15, %681 : vector<1x256xi32>
      %cst_232 = arith.constant 0.000000e+00 : f32
      %683 = vector.broadcast %cst_232 : f32 to vector<1x256xf32>
      %684 = arith.select %682, %680, %683 : vector<1x256xi1>, vector<1x256xf32>
      %685 = vector.broadcast %679 : f32 to vector<1x256xf32>
      %686 = arith.mulf %685, %684 : vector<1x256xf32>
      %687 = arith.addf %678, %686 : vector<1x256xf32>
      %c72 = arith.constant 72 : index
      %688 = memref.load %arg4[%c72] : memref<98xf32, #tpu.memory_space<smem>>
      %c1_i32_233 = arith.constant 1 : i32
      %689 = tpu.dynamic_rotate %21 by %c1_i32_233 dim 1 : vector<1x256xf32>, i32 -> vector<1x256xf32>
      %c1_i32_234 = arith.constant 1 : i32
      %690 = vector.broadcast %c1_i32_234 : i32 to vector<1x256xi32>
      %691 = arith.cmpi sge, %15, %690 : vector<1x256xi32>
      %cst_235 = arith.constant 0.000000e+00 : f32
      %692 = vector.broadcast %cst_235 : f32 to vector<1x256xf32>
      %693 = arith.select %691, %689, %692 : vector<1x256xi1>, vector<1x256xf32>
      %694 = vector.broadcast %688 : f32 to vector<1x256xf32>
      %695 = arith.mulf %694, %693 : vector<1x256xf32>
      %696 = arith.addf %687, %695 : vector<1x256xf32>
      %c73 = arith.constant 73 : index
      %697 = memref.load %arg4[%c73] : memref<98xf32, #tpu.memory_space<smem>>
      %698 = vector.broadcast %697 : f32 to vector<1x256xf32>
      %699 = arith.mulf %698, %21 : vector<1x256xf32>
      %700 = arith.addf %696, %699 : vector<1x256xf32>
      %c74 = arith.constant 74 : index
      %701 = memref.load %arg4[%c74] : memref<98xf32, #tpu.memory_space<smem>>
      %c255_i32_236 = arith.constant 255 : i32
      %702 = tpu.dynamic_rotate %21 by %c255_i32_236 dim 1 : vector<1x256xf32>, i32 -> vector<1x256xf32>
      %c15_i32_237 = arith.constant 15 : i32
      %703 = vector.broadcast %c15_i32_237 : i32 to vector<1x256xi32>
      %704 = arith.cmpi slt, %15, %703 : vector<1x256xi32>
      %cst_238 = arith.constant 0.000000e+00 : f32
      %705 = vector.broadcast %cst_238 : f32 to vector<1x256xf32>
      %706 = arith.select %704, %702, %705 : vector<1x256xi1>, vector<1x256xf32>
      %707 = vector.broadcast %701 : f32 to vector<1x256xf32>
      %708 = arith.mulf %707, %706 : vector<1x256xf32>
      %709 = arith.addf %700, %708 : vector<1x256xf32>
      %c75 = arith.constant 75 : index
      %710 = memref.load %arg4[%c75] : memref<98xf32, #tpu.memory_space<smem>>
      %c254_i32_239 = arith.constant 254 : i32
      %711 = tpu.dynamic_rotate %21 by %c254_i32_239 dim 1 : vector<1x256xf32>, i32 -> vector<1x256xf32>
      %c14_i32_240 = arith.constant 14 : i32
      %712 = vector.broadcast %c14_i32_240 : i32 to vector<1x256xi32>
      %713 = arith.cmpi slt, %15, %712 : vector<1x256xi32>
      %cst_241 = arith.constant 0.000000e+00 : f32
      %714 = vector.broadcast %cst_241 : f32 to vector<1x256xf32>
      %715 = arith.select %713, %711, %714 : vector<1x256xi1>, vector<1x256xf32>
      %716 = vector.broadcast %710 : f32 to vector<1x256xf32>
      %717 = arith.mulf %716, %715 : vector<1x256xf32>
      %718 = arith.addf %709, %717 : vector<1x256xf32>
      %c76 = arith.constant 76 : index
      %719 = memref.load %arg4[%c76] : memref<98xf32, #tpu.memory_space<smem>>
      %c253_i32_242 = arith.constant 253 : i32
      %720 = tpu.dynamic_rotate %21 by %c253_i32_242 dim 1 : vector<1x256xf32>, i32 -> vector<1x256xf32>
      %c13_i32_243 = arith.constant 13 : i32
      %721 = vector.broadcast %c13_i32_243 : i32 to vector<1x256xi32>
      %722 = arith.cmpi slt, %15, %721 : vector<1x256xi32>
      %cst_244 = arith.constant 0.000000e+00 : f32
      %723 = vector.broadcast %cst_244 : f32 to vector<1x256xf32>
      %724 = arith.select %722, %720, %723 : vector<1x256xi1>, vector<1x256xf32>
      %725 = vector.broadcast %719 : f32 to vector<1x256xf32>
      %726 = arith.mulf %725, %724 : vector<1x256xf32>
      %727 = arith.addf %718, %726 : vector<1x256xf32>
      %728 = arith.addf %668, %727 : vector<1x256xf32>
      %cst_245 = arith.constant 0.000000e+00 : f32
      %729 = vector.broadcast %cst_245 : f32 to vector<1x256xf32>
      %c77 = arith.constant 77 : index
      %730 = memref.load %arg4[%c77] : memref<98xf32, #tpu.memory_space<smem>>
      %c3_i32_246 = arith.constant 3 : i32
      %731 = tpu.dynamic_rotate %21 by %c3_i32_246 dim 1 : vector<1x256xf32>, i32 -> vector<1x256xf32>
      %c3_i32_247 = arith.constant 3 : i32
      %732 = vector.broadcast %c3_i32_247 : i32 to vector<1x256xi32>
      %733 = arith.cmpi sge, %15, %732 : vector<1x256xi32>
      %cst_248 = arith.constant 0.000000e+00 : f32
      %734 = vector.broadcast %cst_248 : f32 to vector<1x256xf32>
      %735 = arith.select %733, %731, %734 : vector<1x256xi1>, vector<1x256xf32>
      %736 = vector.broadcast %730 : f32 to vector<1x256xf32>
      %737 = arith.mulf %736, %735 : vector<1x256xf32>
      %738 = arith.addf %729, %737 : vector<1x256xf32>
      %c78 = arith.constant 78 : index
      %739 = memref.load %arg4[%c78] : memref<98xf32, #tpu.memory_space<smem>>
      %c2_i32_249 = arith.constant 2 : i32
      %740 = tpu.dynamic_rotate %21 by %c2_i32_249 dim 1 : vector<1x256xf32>, i32 -> vector<1x256xf32>
      %c2_i32_250 = arith.constant 2 : i32
      %741 = vector.broadcast %c2_i32_250 : i32 to vector<1x256xi32>
      %742 = arith.cmpi sge, %15, %741 : vector<1x256xi32>
      %cst_251 = arith.constant 0.000000e+00 : f32
      %743 = vector.broadcast %cst_251 : f32 to vector<1x256xf32>
      %744 = arith.select %742, %740, %743 : vector<1x256xi1>, vector<1x256xf32>
      %745 = vector.broadcast %739 : f32 to vector<1x256xf32>
      %746 = arith.mulf %745, %744 : vector<1x256xf32>
      %747 = arith.addf %738, %746 : vector<1x256xf32>
      %c79 = arith.constant 79 : index
      %748 = memref.load %arg4[%c79] : memref<98xf32, #tpu.memory_space<smem>>
      %c1_i32_252 = arith.constant 1 : i32
      %749 = tpu.dynamic_rotate %21 by %c1_i32_252 dim 1 : vector<1x256xf32>, i32 -> vector<1x256xf32>
      %c1_i32_253 = arith.constant 1 : i32
      %750 = vector.broadcast %c1_i32_253 : i32 to vector<1x256xi32>
      %751 = arith.cmpi sge, %15, %750 : vector<1x256xi32>
      %cst_254 = arith.constant 0.000000e+00 : f32
      %752 = vector.broadcast %cst_254 : f32 to vector<1x256xf32>
      %753 = arith.select %751, %749, %752 : vector<1x256xi1>, vector<1x256xf32>
      %754 = vector.broadcast %748 : f32 to vector<1x256xf32>
      %755 = arith.mulf %754, %753 : vector<1x256xf32>
      %756 = arith.addf %747, %755 : vector<1x256xf32>
      %c80 = arith.constant 80 : index
      %757 = memref.load %arg4[%c80] : memref<98xf32, #tpu.memory_space<smem>>
      %758 = vector.broadcast %757 : f32 to vector<1x256xf32>
      %759 = arith.mulf %758, %21 : vector<1x256xf32>
      %760 = arith.addf %756, %759 : vector<1x256xf32>
      %c81 = arith.constant 81 : index
      %761 = memref.load %arg4[%c81] : memref<98xf32, #tpu.memory_space<smem>>
      %c255_i32_255 = arith.constant 255 : i32
      %762 = tpu.dynamic_rotate %21 by %c255_i32_255 dim 1 : vector<1x256xf32>, i32 -> vector<1x256xf32>
      %c15_i32_256 = arith.constant 15 : i32
      %763 = vector.broadcast %c15_i32_256 : i32 to vector<1x256xi32>
      %764 = arith.cmpi slt, %15, %763 : vector<1x256xi32>
      %cst_257 = arith.constant 0.000000e+00 : f32
      %765 = vector.broadcast %cst_257 : f32 to vector<1x256xf32>
      %766 = arith.select %764, %762, %765 : vector<1x256xi1>, vector<1x256xf32>
      %767 = vector.broadcast %761 : f32 to vector<1x256xf32>
      %768 = arith.mulf %767, %766 : vector<1x256xf32>
      %769 = arith.addf %760, %768 : vector<1x256xf32>
      %c82 = arith.constant 82 : index
      %770 = memref.load %arg4[%c82] : memref<98xf32, #tpu.memory_space<smem>>
      %c254_i32_258 = arith.constant 254 : i32
      %771 = tpu.dynamic_rotate %21 by %c254_i32_258 dim 1 : vector<1x256xf32>, i32 -> vector<1x256xf32>
      %c14_i32_259 = arith.constant 14 : i32
      %772 = vector.broadcast %c14_i32_259 : i32 to vector<1x256xi32>
      %773 = arith.cmpi slt, %15, %772 : vector<1x256xi32>
      %cst_260 = arith.constant 0.000000e+00 : f32
      %774 = vector.broadcast %cst_260 : f32 to vector<1x256xf32>
      %775 = arith.select %773, %771, %774 : vector<1x256xi1>, vector<1x256xf32>
      %776 = vector.broadcast %770 : f32 to vector<1x256xf32>
      %777 = arith.mulf %776, %775 : vector<1x256xf32>
      %778 = arith.addf %769, %777 : vector<1x256xf32>
      %c83 = arith.constant 83 : index
      %779 = memref.load %arg4[%c83] : memref<98xf32, #tpu.memory_space<smem>>
      %c253_i32_261 = arith.constant 253 : i32
      %780 = tpu.dynamic_rotate %21 by %c253_i32_261 dim 1 : vector<1x256xf32>, i32 -> vector<1x256xf32>
      %c13_i32_262 = arith.constant 13 : i32
      %781 = vector.broadcast %c13_i32_262 : i32 to vector<1x256xi32>
      %782 = arith.cmpi slt, %15, %781 : vector<1x256xi32>
      %cst_263 = arith.constant 0.000000e+00 : f32
      %783 = vector.broadcast %cst_263 : f32 to vector<1x256xf32>
      %784 = arith.select %782, %780, %783 : vector<1x256xi1>, vector<1x256xf32>
      %785 = vector.broadcast %779 : f32 to vector<1x256xf32>
      %786 = arith.mulf %785, %784 : vector<1x256xf32>
      %787 = arith.addf %778, %786 : vector<1x256xf32>
      %c240_i32_264 = arith.constant 240 : i32
      %788 = tpu.dynamic_rotate %787 by %c240_i32_264 dim 1 : vector<1x256xf32>, i32 -> vector<1x256xf32>
      %c15_i32_265 = arith.constant 15 : i32
      %789 = vector.broadcast %c15_i32_265 : i32 to vector<1x256xi32>
      %790 = arith.cmpi slt, %14, %789 : vector<1x256xi32>
      %cst_266 = arith.constant 0.000000e+00 : f32
      %791 = vector.broadcast %cst_266 : f32 to vector<1x256xf32>
      %792 = arith.select %790, %788, %791 : vector<1x256xi1>, vector<1x256xf32>
      %793 = arith.addf %728, %792 : vector<1x256xf32>
      %cst_267 = arith.constant 0.000000e+00 : f32
      %794 = vector.broadcast %cst_267 : f32 to vector<1x256xf32>
      %c84 = arith.constant 84 : index
      %795 = memref.load %arg4[%c84] : memref<98xf32, #tpu.memory_space<smem>>
      %c3_i32_268 = arith.constant 3 : i32
      %796 = tpu.dynamic_rotate %21 by %c3_i32_268 dim 1 : vector<1x256xf32>, i32 -> vector<1x256xf32>
      %c3_i32_269 = arith.constant 3 : i32
      %797 = vector.broadcast %c3_i32_269 : i32 to vector<1x256xi32>
      %798 = arith.cmpi sge, %15, %797 : vector<1x256xi32>
      %cst_270 = arith.constant 0.000000e+00 : f32
      %799 = vector.broadcast %cst_270 : f32 to vector<1x256xf32>
      %800 = arith.select %798, %796, %799 : vector<1x256xi1>, vector<1x256xf32>
      %801 = vector.broadcast %795 : f32 to vector<1x256xf32>
      %802 = arith.mulf %801, %800 : vector<1x256xf32>
      %803 = arith.addf %794, %802 : vector<1x256xf32>
      %c85 = arith.constant 85 : index
      %804 = memref.load %arg4[%c85] : memref<98xf32, #tpu.memory_space<smem>>
      %c2_i32_271 = arith.constant 2 : i32
      %805 = tpu.dynamic_rotate %21 by %c2_i32_271 dim 1 : vector<1x256xf32>, i32 -> vector<1x256xf32>
      %c2_i32_272 = arith.constant 2 : i32
      %806 = vector.broadcast %c2_i32_272 : i32 to vector<1x256xi32>
      %807 = arith.cmpi sge, %15, %806 : vector<1x256xi32>
      %cst_273 = arith.constant 0.000000e+00 : f32
      %808 = vector.broadcast %cst_273 : f32 to vector<1x256xf32>
      %809 = arith.select %807, %805, %808 : vector<1x256xi1>, vector<1x256xf32>
      %810 = vector.broadcast %804 : f32 to vector<1x256xf32>
      %811 = arith.mulf %810, %809 : vector<1x256xf32>
      %812 = arith.addf %803, %811 : vector<1x256xf32>
      %c86 = arith.constant 86 : index
      %813 = memref.load %arg4[%c86] : memref<98xf32, #tpu.memory_space<smem>>
      %c1_i32_274 = arith.constant 1 : i32
      %814 = tpu.dynamic_rotate %21 by %c1_i32_274 dim 1 : vector<1x256xf32>, i32 -> vector<1x256xf32>
      %c1_i32_275 = arith.constant 1 : i32
      %815 = vector.broadcast %c1_i32_275 : i32 to vector<1x256xi32>
      %816 = arith.cmpi sge, %15, %815 : vector<1x256xi32>
      %cst_276 = arith.constant 0.000000e+00 : f32
      %817 = vector.broadcast %cst_276 : f32 to vector<1x256xf32>
      %818 = arith.select %816, %814, %817 : vector<1x256xi1>, vector<1x256xf32>
      %819 = vector.broadcast %813 : f32 to vector<1x256xf32>
      %820 = arith.mulf %819, %818 : vector<1x256xf32>
      %821 = arith.addf %812, %820 : vector<1x256xf32>
      %c87 = arith.constant 87 : index
      %822 = memref.load %arg4[%c87] : memref<98xf32, #tpu.memory_space<smem>>
      %823 = vector.broadcast %822 : f32 to vector<1x256xf32>
      %824 = arith.mulf %823, %21 : vector<1x256xf32>
      %825 = arith.addf %821, %824 : vector<1x256xf32>
      %c88 = arith.constant 88 : index
      %826 = memref.load %arg4[%c88] : memref<98xf32, #tpu.memory_space<smem>>
      %c255_i32_277 = arith.constant 255 : i32
      %827 = tpu.dynamic_rotate %21 by %c255_i32_277 dim 1 : vector<1x256xf32>, i32 -> vector<1x256xf32>
      %c15_i32_278 = arith.constant 15 : i32
      %828 = vector.broadcast %c15_i32_278 : i32 to vector<1x256xi32>
      %829 = arith.cmpi slt, %15, %828 : vector<1x256xi32>
      %cst_279 = arith.constant 0.000000e+00 : f32
      %830 = vector.broadcast %cst_279 : f32 to vector<1x256xf32>
      %831 = arith.select %829, %827, %830 : vector<1x256xi1>, vector<1x256xf32>
      %832 = vector.broadcast %826 : f32 to vector<1x256xf32>
      %833 = arith.mulf %832, %831 : vector<1x256xf32>
      %834 = arith.addf %825, %833 : vector<1x256xf32>
      %c89 = arith.constant 89 : index
      %835 = memref.load %arg4[%c89] : memref<98xf32, #tpu.memory_space<smem>>
      %c254_i32_280 = arith.constant 254 : i32
      %836 = tpu.dynamic_rotate %21 by %c254_i32_280 dim 1 : vector<1x256xf32>, i32 -> vector<1x256xf32>
      %c14_i32_281 = arith.constant 14 : i32
      %837 = vector.broadcast %c14_i32_281 : i32 to vector<1x256xi32>
      %838 = arith.cmpi slt, %15, %837 : vector<1x256xi32>
      %cst_282 = arith.constant 0.000000e+00 : f32
      %839 = vector.broadcast %cst_282 : f32 to vector<1x256xf32>
      %840 = arith.select %838, %836, %839 : vector<1x256xi1>, vector<1x256xf32>
      %841 = vector.broadcast %835 : f32 to vector<1x256xf32>
      %842 = arith.mulf %841, %840 : vector<1x256xf32>
      %843 = arith.addf %834, %842 : vector<1x256xf32>
      %c90 = arith.constant 90 : index
      %844 = memref.load %arg4[%c90] : memref<98xf32, #tpu.memory_space<smem>>
      %c253_i32_283 = arith.constant 253 : i32
      %845 = tpu.dynamic_rotate %21 by %c253_i32_283 dim 1 : vector<1x256xf32>, i32 -> vector<1x256xf32>
      %c13_i32_284 = arith.constant 13 : i32
      %846 = vector.broadcast %c13_i32_284 : i32 to vector<1x256xi32>
      %847 = arith.cmpi slt, %15, %846 : vector<1x256xi32>
      %cst_285 = arith.constant 0.000000e+00 : f32
      %848 = vector.broadcast %cst_285 : f32 to vector<1x256xf32>
      %849 = arith.select %847, %845, %848 : vector<1x256xi1>, vector<1x256xf32>
      %850 = vector.broadcast %844 : f32 to vector<1x256xf32>
      %851 = arith.mulf %850, %849 : vector<1x256xf32>
      %852 = arith.addf %843, %851 : vector<1x256xf32>
      %c224_i32_286 = arith.constant 224 : i32
      %853 = tpu.dynamic_rotate %852 by %c224_i32_286 dim 1 : vector<1x256xf32>, i32 -> vector<1x256xf32>
      %c14_i32_287 = arith.constant 14 : i32
      %854 = vector.broadcast %c14_i32_287 : i32 to vector<1x256xi32>
      %855 = arith.cmpi slt, %14, %854 : vector<1x256xi32>
      %cst_288 = arith.constant 0.000000e+00 : f32
      %856 = vector.broadcast %cst_288 : f32 to vector<1x256xf32>
      %857 = arith.select %855, %853, %856 : vector<1x256xi1>, vector<1x256xf32>
      %858 = arith.addf %793, %857 : vector<1x256xf32>
      %cst_289 = arith.constant 0.000000e+00 : f32
      %859 = vector.broadcast %cst_289 : f32 to vector<1x256xf32>
      %c91 = arith.constant 91 : index
      %860 = memref.load %arg4[%c91] : memref<98xf32, #tpu.memory_space<smem>>
      %c3_i32_290 = arith.constant 3 : i32
      %861 = tpu.dynamic_rotate %21 by %c3_i32_290 dim 1 : vector<1x256xf32>, i32 -> vector<1x256xf32>
      %c3_i32_291 = arith.constant 3 : i32
      %862 = vector.broadcast %c3_i32_291 : i32 to vector<1x256xi32>
      %863 = arith.cmpi sge, %15, %862 : vector<1x256xi32>
      %cst_292 = arith.constant 0.000000e+00 : f32
      %864 = vector.broadcast %cst_292 : f32 to vector<1x256xf32>
      %865 = arith.select %863, %861, %864 : vector<1x256xi1>, vector<1x256xf32>
      %866 = vector.broadcast %860 : f32 to vector<1x256xf32>
      %867 = arith.mulf %866, %865 : vector<1x256xf32>
      %868 = arith.addf %859, %867 : vector<1x256xf32>
      %c92 = arith.constant 92 : index
      %869 = memref.load %arg4[%c92] : memref<98xf32, #tpu.memory_space<smem>>
      %c2_i32_293 = arith.constant 2 : i32
      %870 = tpu.dynamic_rotate %21 by %c2_i32_293 dim 1 : vector<1x256xf32>, i32 -> vector<1x256xf32>
      %c2_i32_294 = arith.constant 2 : i32
      %871 = vector.broadcast %c2_i32_294 : i32 to vector<1x256xi32>
      %872 = arith.cmpi sge, %15, %871 : vector<1x256xi32>
      %cst_295 = arith.constant 0.000000e+00 : f32
      %873 = vector.broadcast %cst_295 : f32 to vector<1x256xf32>
      %874 = arith.select %872, %870, %873 : vector<1x256xi1>, vector<1x256xf32>
      %875 = vector.broadcast %869 : f32 to vector<1x256xf32>
      %876 = arith.mulf %875, %874 : vector<1x256xf32>
      %877 = arith.addf %868, %876 : vector<1x256xf32>
      %c93 = arith.constant 93 : index
      %878 = memref.load %arg4[%c93] : memref<98xf32, #tpu.memory_space<smem>>
      %c1_i32_296 = arith.constant 1 : i32
      %879 = tpu.dynamic_rotate %21 by %c1_i32_296 dim 1 : vector<1x256xf32>, i32 -> vector<1x256xf32>
      %c1_i32_297 = arith.constant 1 : i32
      %880 = vector.broadcast %c1_i32_297 : i32 to vector<1x256xi32>
      %881 = arith.cmpi sge, %15, %880 : vector<1x256xi32>
      %cst_298 = arith.constant 0.000000e+00 : f32
      %882 = vector.broadcast %cst_298 : f32 to vector<1x256xf32>
      %883 = arith.select %881, %879, %882 : vector<1x256xi1>, vector<1x256xf32>
      %884 = vector.broadcast %878 : f32 to vector<1x256xf32>
      %885 = arith.mulf %884, %883 : vector<1x256xf32>
      %886 = arith.addf %877, %885 : vector<1x256xf32>
      %c94 = arith.constant 94 : index
      %887 = memref.load %arg4[%c94] : memref<98xf32, #tpu.memory_space<smem>>
      %888 = vector.broadcast %887 : f32 to vector<1x256xf32>
      %889 = arith.mulf %888, %21 : vector<1x256xf32>
      %890 = arith.addf %886, %889 : vector<1x256xf32>
      %c95 = arith.constant 95 : index
      %891 = memref.load %arg4[%c95] : memref<98xf32, #tpu.memory_space<smem>>
      %c255_i32_299 = arith.constant 255 : i32
      %892 = tpu.dynamic_rotate %21 by %c255_i32_299 dim 1 : vector<1x256xf32>, i32 -> vector<1x256xf32>
      %c15_i32_300 = arith.constant 15 : i32
      %893 = vector.broadcast %c15_i32_300 : i32 to vector<1x256xi32>
      %894 = arith.cmpi slt, %15, %893 : vector<1x256xi32>
      %cst_301 = arith.constant 0.000000e+00 : f32
      %895 = vector.broadcast %cst_301 : f32 to vector<1x256xf32>
      %896 = arith.select %894, %892, %895 : vector<1x256xi1>, vector<1x256xf32>
      %897 = vector.broadcast %891 : f32 to vector<1x256xf32>
      %898 = arith.mulf %897, %896 : vector<1x256xf32>
      %899 = arith.addf %890, %898 : vector<1x256xf32>
      %c96 = arith.constant 96 : index
      %900 = memref.load %arg4[%c96] : memref<98xf32, #tpu.memory_space<smem>>
      %c254_i32_302 = arith.constant 254 : i32
      %901 = tpu.dynamic_rotate %21 by %c254_i32_302 dim 1 : vector<1x256xf32>, i32 -> vector<1x256xf32>
      %c14_i32_303 = arith.constant 14 : i32
      %902 = vector.broadcast %c14_i32_303 : i32 to vector<1x256xi32>
      %903 = arith.cmpi slt, %15, %902 : vector<1x256xi32>
      %cst_304 = arith.constant 0.000000e+00 : f32
      %904 = vector.broadcast %cst_304 : f32 to vector<1x256xf32>
      %905 = arith.select %903, %901, %904 : vector<1x256xi1>, vector<1x256xf32>
      %906 = vector.broadcast %900 : f32 to vector<1x256xf32>
      %907 = arith.mulf %906, %905 : vector<1x256xf32>
      %908 = arith.addf %899, %907 : vector<1x256xf32>
      %c97 = arith.constant 97 : index
      %909 = memref.load %arg4[%c97] : memref<98xf32, #tpu.memory_space<smem>>
      %c253_i32_305 = arith.constant 253 : i32
      %910 = tpu.dynamic_rotate %21 by %c253_i32_305 dim 1 : vector<1x256xf32>, i32 -> vector<1x256xf32>
      %c13_i32_306 = arith.constant 13 : i32
      %911 = vector.broadcast %c13_i32_306 : i32 to vector<1x256xi32>
      %912 = arith.cmpi slt, %15, %911 : vector<1x256xi32>
      %cst_307 = arith.constant 0.000000e+00 : f32
      %913 = vector.broadcast %cst_307 : f32 to vector<1x256xf32>
      %914 = arith.select %912, %910, %913 : vector<1x256xi1>, vector<1x256xf32>
      %915 = vector.broadcast %909 : f32 to vector<1x256xf32>
      %916 = arith.mulf %915, %914 : vector<1x256xf32>
      %917 = arith.addf %908, %916 : vector<1x256xf32>
      %c208_i32_308 = arith.constant 208 : i32
      %918 = tpu.dynamic_rotate %917 by %c208_i32_308 dim 1 : vector<1x256xf32>, i32 -> vector<1x256xf32>
      %c13_i32_309 = arith.constant 13 : i32
      %919 = vector.broadcast %c13_i32_309 : i32 to vector<1x256xi32>
      %920 = arith.cmpi slt, %14, %919 : vector<1x256xi32>
      %cst_310 = arith.constant 0.000000e+00 : f32
      %921 = vector.broadcast %cst_310 : f32 to vector<1x256xf32>
      %922 = arith.select %920, %918, %921 : vector<1x256xi1>, vector<1x256xf32>
      %923 = arith.addf %858, %922 : vector<1x256xf32>
      %924 = arith.negf %923 : vector<1x256xf32>
      %925 = math.exp %924 : vector<1x256xf32>
      %cst_311 = arith.constant 1.000000e+00 : f32
      %926 = vector.broadcast %cst_311 : f32 to vector<1x256xf32>
      %927 = arith.addf %926, %925 : vector<1x256xf32>
      %928 = arith.divf %926, %927 : vector<1x256xf32>
      %c0_312 = arith.constant 0 : index
      %c0_313 = arith.constant 0 : index
      %c0_314 = arith.constant 0 : index
      %929 = vector.load %arg6[%c0_312, %c0_313, %c0_314] : memref<1x1x256xf32, #tpu.memory_space<vmem>>, vector<1x1x256xf32>
      %930 = vector.shape_cast %929 : vector<1x1x256xf32> to vector<1x256xf32>
      %931 = vector.shape_cast %928 : vector<1x256xf32> to vector<1x1x256xf32>
      tpu.vector_store %arg6[%c0_312, %c0_313, %c0_314], %931 {strides = array<i32>} : memref<1x1x256xf32, #tpu.memory_space<vmem>>, vector<1x1x256xf32>,
    } else {
    }
    return
  }
  func.func @transform_0(%arg0: i32, %arg1: i32) -> (i32, i32, i32) {
    %c0_i32 = arith.constant 0 : i32
    %c0_i32_0 = arith.constant 0 : i32
    return %arg0, %arg1, %c0_i32 : i32, i32, i32
  }
  func.func @transform_1(%arg0: i32, %arg1: i32) -> (i32, i32) {
    %c0_i32 = arith.constant 0 : i32
    %c0_i32_0 = arith.constant 0 : i32
    %c0_i32_1 = arith.constant 0 : i32
    return %c0_i32, %c0_i32_0 : i32, i32
  }
  func.func @transform_2(%arg0: i32, %arg1: i32) -> i32 {
    %c0_i32 = arith.constant 0 : i32
    %c0_i32_0 = arith.constant 0 : i32
    return %c0_i32 : i32
  }
  func.func @transform_3(%arg0: i32, %arg1: i32) -> i32 {
    %c0_i32 = arith.constant 0 : i32
    %c0_i32_0 = arith.constant 0 : i32
    return %c0_i32 : i32
  }
  func.func @transform_4(%arg0: i32, %arg1: i32) -> (i32, i32, i32) {
    %c0_i32 = arith.constant 0 : i32
    %c0_i32_0 = arith.constant 0 : i32
    %c0_i32_1 = arith.constant 0 : i32
    return %arg0, %c0_i32, %c0_i32_0 : i32, i32, i32
  }
}

</mosaic_0001>

<llo_original>
// kernel: tpu_custom_call.1
$region0: #{tpu_custom_call.1}
  #allocation0 [shape = 'u32[]', space=smem, size = 0x4, offset = 0x4, fixed_abs, tag = 'smem constant byte address 0x4 - core index']
  #allocation1 [shape = 'u32[144,128]{1,0:T(1,128)}', space=vmem, size = 0x12000, scoped, tag = 'internal scratch']
  #allocation2 [shape = 'f32[8,256]{1,0:T(8,128)}', space=vmem, size = 0x2000, scoped, tag = 'scratch operand']
  #allocation3 [shape = 'f32[8,256]{1,0:T(8,128)}', space=vmem, size = 0x2000, scoped, tag = 'scratch operand']
  #allocation4 [shape = 'f32[1]{0:T(128)S(6)}', space=smem, size = 0x200, scoped, tag = 'scoped memory for tpu_custom_call.1']
  %s0 = inlined_call_operand.hbm [shape: f32[2,4,256], index: 0, kind: input, shape index: {}]
  %s1 = inlined_call_operand.hbm [shape: s32[2,256], index: 1, kind: input, shape index: {}]
  %s2 = inlined_call_operand.vmem [shape: f32[98], index: 2, kind: input, shape index: {}]
  %s3 = inlined_call_operand.<no memory space> [shape: f32[1], index: 3, kind: input, shape index: {}]
  %s4 = inlined_call_operand.hbm [shape: f32[2,1,256], index: 4, kind: output, shape index: {}]
  %s5 = sld [smem:[#allocation0]]
  $region69: #{tpu_custom_call.1} parent=0
    _
  %s7 = ssub.s32 1, %s5
  %s8 = scalar_select 0, %s7, %s5
  %9 = sst [smem:[#allocation4]] %s3
  $region1: #{tpu_custom_call.1} parent=0
    #allocation5 [shape = 'u8[8192]{0}', space=vmem, size = 0x2000, scoped, tag = 'input window, operand 0']
    #allocation6 [shape = 's32[2]{0}', space=sflag, size = 0x8, scoped, tag = 'scoped memory for tpu_custom_call.1']
    #allocation7 [shape = 's32[2]{0}', space=sflag, size = 0x8, scoped, tag = 'scoped memory for tpu_custom_call.1']
    #allocation8 [shape = 's32[2]{0}', space=sflag, size = 0x8, scoped, tag = 'scoped memory for tpu_custom_call.1']
    #allocation9 [shape = 'u8[2048]{0}', space=vmem, size = 0x800, scoped, tag = 'input window, operand 1, single buffered']
    #allocation10 [shape = 's32[1]{0}', space=sflag, size = 0x4, scoped, tag = 'scoped memory for tpu_custom_call.1']
    #allocation11 [shape = 'u8[512]{0}', space=smem, size = 0x200, scoped, tag = 'input window, operand 2, single buffered']
    #allocation12 [shape = 'u8[2048]{0}', space=vmem, size = 0x800, scoped, tag = 'output window, operand 0']
    %10 = vsyncpa [#allocation6], 0
    %s11 = scalar_lea.sflag [#allocation6], 1
    %12 = vsyncpa %s11, 0
    %13 = vsyncpa [#allocation10], 0
    %14 = vsyncpa [#allocation8], 0
    %15 = vsyncpa [#allocation7], 0
    %s16 = scalar_lea.sflag [#allocation7], 1
    %17 = vsyncpa %s16, 0
    loop: start=0, step=1, limit=4
    $region2: #{tpu_custom_call.1} parent=1 // loop_pre_header
      _
    $region3: #{tpu_custom_call.1} parent=1 // loop_header
      %s19 = sphi 0, %s23
      %p20 = scmp.ge.s32.totalorder %s19, 4
      %s26 = sphi 0, %s38
      %s27 = sphi 0, %s34
      %s28 = sphi 0, %s26
      %s29 = sphi 0, %s27
      %s30 = sphi 0, %s28
      %s31 = sphi 0, %s29
      %s43 = sphi 0, %s45
      %s46 = sphi 0, %s43
      %s47 = sphi 0, %s46
      %s63 = sphi 0, %s47
      %s67 = sphi 0, %s67
      %s69 = sphi 0, %s67
      %s70 = sphi 0, %s69
      %s84 = sphi 0, %s70
      %s88 = sphi 0, %s88
      %s90 = sphi 0, %s88
      %s91 = sphi 0, %s90
      %s105 = sphi 0, %s91
      %s109 = sphi 0, %s109
      %s111 = sphi 0, %s109
      %s112 = sphi 0, %s111
      %s126 = sphi 0, %s112
      %s132 = sphi 0, %s134
      %s135 = sphi 0, %s132
      %s136 = sphi 0, %s135
      %s152 = sphi 0, %s136
    $region4: #{tpu_custom_call.1} parent=1 // loop_header_branch
      %22 = sbr.rel (%p20) target = $region8
    $region5: #{tpu_custom_call.1} parent=1 // loop_body
      %s24 = ssub.s32 %s19, 1
      %s25 = ssub.s32 %s19, 2
      %s32 = sadd.s32 1, %s27
      %p33 = scmp.ge.s32.totalorder %s32, 1
      %s34 = scalar_select %p33, 0, %s32
      %s35 = sadd.s32 1, %s26
      %s36 = scalar_select %p33, %s35, %s26
      %p37 = scmp.ge.s32.totalorder %s36, 2
      %s38 = scalar_select %p37, 0, %s36
      %s39 = ssub.s32 %s26, %s38
      %s40 = ssub.s32 %s27, %s34
      %s41 = sor.u32 %s39, %s40
      %p42 = scmp.eq.s32.totalorder %s41, 0
      %s44 = sadd.s32 %s43, 1
      %s45 = scalar_select %p42, %s43, %s44
      %p48 = pneg %p42
      %p49 = scmp.eq.s32.totalorder %s19, 1
      %p50 = por %p48, %p49
      %p51 = scmp.ne.s32.totalorder %s43, %s46
      %p52 = scmp.eq.s32.totalorder %s19, 0
      %p53 = por %p51, %p52
      %p54 = scmp.ne.s32.totalorder %s43, %s46
      %p55 = scmp.eq.s32.totalorder %s24, 1
      %p56 = por %p54, %p55
      %p57 = scmp.ne.s32.totalorder %s46, %s47
      %p58 = scmp.eq.s32.totalorder %s24, 0
      %p59 = por %p57, %p58
      %p60 = scmp.ne.s32.totalorder %s46, %s47
      %p61 = scmp.eq.s32.totalorder %s25, 1
      %p62 = por %p60, %p61
      %p64 = scmp.ne.s32.totalorder %s47, %s63
      %p65 = scmp.eq.s32.totalorder %s25, 0
      %p66 = por %p64, %p65
      %s68 = sadd.s32 %s67, 1
      %p71 = scmp.eq.s32.totalorder %s19, 1
      %p72 = scmp.ne.s32.totalorder %s67, %s69
      %p73 = scmp.eq.s32.totalorder %s19, 0
      %p74 = por %p72, %p73
      %p75 = scmp.ne.s32.totalorder %s67, %s69
      %p76 = scmp.eq.s32.totalorder %s24, 1
      %p77 = por %p75, %p76
      %p78 = scmp.ne.s32.totalorder %s69, %s70
      %p79 = scmp.eq.s32.totalorder %s24, 0
      %p80 = por %p78, %p79
      %p81 = scmp.ne.s32.totalorder %s69, %s70
      %p82 = scmp.eq.s32.totalorder %s25, 1
      %p83 = por %p81, %p82
      %p85 = scmp.ne.s32.totalorder %s70, %s84
      %p86 = scmp.eq.s32.totalorder %s25, 0
      %p87 = por %p85, %p86
      %s89 = sadd.s32 %s88, 1
      %p92 = scmp.eq.s32.totalorder %s19, 1
      %p93 = scmp.ne.s32.totalorder %s88, %s90
      %p94 = scmp.eq.s32.totalorder %s19, 0
      %p95 = por %p93, %p94
      %p96 = scmp.ne.s32.totalorder %s88, %s90
      %p97 = scmp.eq.s32.totalorder %s24, 1
      %p98 = por %p96, %p97
      %p99 = scmp.ne.s32.totalorder %s90, %s91
      %p100 = scmp.eq.s32.totalorder %s24, 0
      %p101 = por %p99, %p100
      %p102 = scmp.ne.s32.totalorder %s90, %s91
      %p103 = scmp.eq.s32.totalorder %s25, 1
      %p104 = por %p102, %p103
      %p106 = scmp.ne.s32.totalorder %s91, %s105
      %p107 = scmp.eq.s32.totalorder %s25, 0
      %p108 = por %p106, %p107
      %s110 = sadd.s32 %s109, 1
      %p113 = scmp.eq.s32.totalorder %s19, 1
      %p114 = scmp.ne.s32.totalorder %s109, %s111
      %p115 = scmp.eq.s32.totalorder %s19, 0
      %p116 = por %p114, %p115
      %p117 = scmp.ne.s32.totalorder %s109, %s111
      %p118 = scmp.eq.s32.totalorder %s24, 1
      %p119 = por %p117, %p118
      %p120 = scmp.ne.s32.totalorder %s111, %s112
      %p121 = scmp.eq.s32.totalorder %s24, 0
      %p122 = por %p120, %p121
      %p123 = scmp.ne.s32.totalorder %s111, %s112
      %p124 = scmp.eq.s32.totalorder %s25, 1
      %p125 = por %p123, %p124
      %p127 = scmp.ne.s32.totalorder %s112, %s126
      %p128 = scmp.eq.s32.totalorder %s25, 0
      %p129 = por %p127, %p128
      %s130 = ssub.s32 %s26, %s38
      %p131 = scmp.eq.s32.totalorder %s130, 0
      %s133 = sadd.s32 %s132, 1
      %s134 = scalar_select %p131, %s132, %s133
      %p137 = pneg %p131
      %p138 = scmp.eq.s32.totalorder %s19, 1
      %p139 = por %p137, %p138
      %p140 = scmp.ne.s32.totalorder %s132, %s135
      %p141 = scmp.eq.s32.totalorder %s19, 0
      %p142 = por %p140, %p141
      %p143 = scmp.ne.s32.totalorder %s132, %s135
      %p144 = scmp.eq.s32.totalorder %s24, 1
      %p145 = por %p143, %p144
      %p146 = scmp.ne.s32.totalorder %s135, %s136
      %p147 = scmp.eq.s32.totalorder %s24, 0
      %p148 = por %p146, %p147
      %p149 = scmp.ne.s32.totalorder %s135, %s136
      %p150 = scmp.eq.s32.totalorder %s25, 1
      %p151 = por %p149, %p150
      %p153 = scmp.ne.s32.totalorder %s136, %s152
      %p154 = scmp.eq.s32.totalorder %s25, 0
      %p155 = por %p153, %p154
      %p156 = scmp.le.s32.totalorder 1, %s19
      %p157 = scmp.lt.s32.totalorder %s19, 3
      %p158 = pnand %p156, %p157
      %p159 = pneg %p158
      // Predicated region
      $region9: #{tpu_custom_call.1} parent=5 // pred_check
        _
      $region10: #{tpu_custom_call.1} parent=5 // pred_check_branch
        %161 = sbr.rel (%p158) target = $region12
      $region11: #{tpu_custom_call.1} parent=5 // pred_region
        %s162 = ssub.s32 %s19, 1
        // Predicated region
        $region13: #{tpu_custom_call.1} parent=11 // pred_check
          %p163 = pneg %p80
        $region14: #{tpu_custom_call.1} parent=11 // pred_check_branch
          %165 = sbr.rel (%p163) target = $region16
        $region15: #{tpu_custom_call.1} parent=11 // pred_region
          %s167 = ssub.s32 64, 64
          %168 = vsyncadd [#allocation10], %s167
          %s170 = sshll.u32 [#allocation9], 4
          %s171 = int_to_ptr.vmem [resolvable:$true] %s170
          %173 = dma.hbm_to_vmem [thread:$0]  %s1, 64, %s171, [#allocation10]
        $region16: #{tpu_custom_call.1} parent=11 // pred_fallthru
          _
        // Predicated region
        $region17: #{tpu_custom_call.1} parent=11 // pred_check
          %p174 = pneg %p101
        $region18: #{tpu_custom_call.1} parent=11 // pred_check_branch
          %176 = sbr.rel (%p174) target = $region20
        $region19: #{tpu_custom_call.1} parent=11 // pred_region
          %s178 = ssub.s32 16, 16
          %179 = vsyncadd [#allocation8], %s178
          %s181 = sshll.u32 %s2, 4
          %s182 = int_to_ptr.vmem [resolvable:$true] %s181
          %184 = dma.vmem_to_smem %s182, 16, [#allocation11], [#allocation8]
        $region20: #{tpu_custom_call.1} parent=11 // pred_fallthru
          _
        // Predicated region
        $region21: #{tpu_custom_call.1} parent=11 // pred_check
          %p185 = pneg %p122
        $region22: #{tpu_custom_call.1} parent=11 // pred_check_branch
          %187 = sbr.rel (%p185) target = $region24
        $region23: #{tpu_custom_call.1} parent=11 // pred_region
          _
        $region24: #{tpu_custom_call.1} parent=11 // pred_fallthru
          _
      $region12: #{tpu_custom_call.1} parent=5 // pred_fallthru
        _
      %p188 = scmp.lt.s32.totalorder %s19, 2
      // Predicated region
      $region25: #{tpu_custom_call.1} parent=5 // pred_check
        %p189 = pneg %p188
      $region26: #{tpu_custom_call.1} parent=5 // pred_check_branch
        %191 = sbr.rel (%p189) target = $region28
      $region27: #{tpu_custom_call.1} parent=5 // pred_region
        // Predicated region
        $region29: #{tpu_custom_call.1} parent=27 // pred_check
          %p192 = pneg %p53
        $region30: #{tpu_custom_call.1} parent=27 // pred_check_branch
          %194 = sbr.rel (%p192) target = $region32
        $region31: #{tpu_custom_call.1} parent=27 // pred_region
          %s195 = sand.u32 %s43, 1
          %s196 = scalar_lea.sflag [#allocation6], %s195
          %s197 = sand.u32 %s43, 1
          %s198 = smul.addr %s197, 8
          %s199 = scalar_lea.vmem [#allocation5], %s198
          %s201 = ssub.s32 128, 128
          %202 = vsyncadd %s196, %s201
          %s203 = smul.addr %s27, 2
          %s204 = smul.addr %s26, 2
          %s205 = sadd.s32 %s203, %s204
          %s206 = smul.addr %s205, 64
          %s207 = scalar_lea.hbm %s0, %s206
          %s209 = sshll.u32 %s199, 4
          %s210 = int_to_ptr.vmem [resolvable:$true] %s209
          %212 = dma.hbm_to_vmem [thread:$0]  %s207, 128, %s210, %s196
        $region32: #{tpu_custom_call.1} parent=27 // pred_fallthru
          _
      $region28: #{tpu_custom_call.1} parent=5 // pred_fallthru
        _
      %p213 = scmp.le.s32.totalorder 1, %s19
      %p214 = scmp.lt.s32.totalorder %s19, 3
      %p215 = pnand %p213, %p214
      %p216 = pneg %p215
      // Predicated region
      $region33: #{tpu_custom_call.1} parent=5 // pred_check
        _
      $region34: #{tpu_custom_call.1} parent=5 // pred_check_branch
        %218 = sbr.rel (%p215) target = $region36
      $region35: #{tpu_custom_call.1} parent=5 // pred_region
        %s219 = ssub.s32 %s19, 1
        %s220 = sand.u32 %s46, 1
        %s221 = scalar_lea.sflag [#allocation6], %s220
        %s222 = sand.u32 %s46, 1
        %s223 = smul.addr %s222, 8
        %s224 = scalar_lea.vmem [#allocation5], %s223
        // Predicated region
        $region37: #{tpu_custom_call.1} parent=35 // pred_check
          %p225 = pneg %p59
        $region38: #{tpu_custom_call.1} parent=35 // pred_check_branch
          %227 = sbr.rel (%p225) target = $region40
        $region39: #{tpu_custom_call.1} parent=35 // pred_region
          %228 = dma.done %s221, 128
        $region40: #{tpu_custom_call.1} parent=35 // pred_fallthru
          _
        // Predicated region
        $region41: #{tpu_custom_call.1} parent=35 // pred_check
          %p229 = pneg %p80
        $region42: #{tpu_custom_call.1} parent=35 // pred_check_branch
          %231 = sbr.rel (%p229) target = $region44
        $region43: #{tpu_custom_call.1} parent=35 // pred_region
          %232 = dma.done [#allocation10], 64
        $region44: #{tpu_custom_call.1} parent=35 // pred_fallthru
          _
        // Predicated region
        $region45: #{tpu_custom_call.1} parent=35 // pred_check
          %p233 = pneg %p101
        $region46: #{tpu_custom_call.1} parent=35 // pred_check_branch
          %235 = sbr.rel (%p233) target = $region48
        $region47: #{tpu_custom_call.1} parent=35 // pred_region
          %236 = dma.done [#allocation8], 16
        $region48: #{tpu_custom_call.1} parent=35 // pred_fallthru
          _
        %237 = sfence
        %s238 = sand.u32 %s46, 1
        %s239 = scalar_lea.sflag [#allocation6], %s238
        %s240 = sand.u32 %s46, 1
        %s241 = smul.addr %s240, 8
        %s242 = scalar_lea.vmem [#allocation5], %s241
        %p243 = pneg %p59
        %p244 = pneg %p56
        %p245 = pneg %p80
        %p246 = pneg %p77
        %p247 = pneg %p101
        %p248 = pneg %p98
        %p249 = pneg %p122
        %p250 = pneg %p119
        %p251 = pneg %p148
        %p252 = pneg %p145
        %s253 = sand.u32 %s135, 1
        %s254 = scalar_lea.sflag [#allocation7], %s253
        %s255 = sand.u32 %s135, 1
        %s256 = smul.addr %s255, 2
        %s257 = scalar_lea.vmem [#allocation12], %s256
        %p258 = scmp.eq.s32.totalorder %s29, 0
        // Predicated region
        $region49: #{tpu_custom_call.1} parent=35 // pred_check
          %p259 = pneg %p258
        $region50: #{tpu_custom_call.1} parent=35 // pred_check_branch
          %261 = sbr.rel (%p259) target = $region52
        $region51: #{tpu_custom_call.1} parent=35 // pred_region
          %262 = vst [vmem:[#allocation2] sm:$0xff] -inf
          %263 = vst [vmem:[#allocation2 + $0x8] sm:$0xff] -inf
          %264 = vst [vmem:[#allocation3] sm:$0xff] 0.0
          %265 = vst [vmem:[#allocation3 + $0x8] sm:$0xff] 0.0
        $region52: #{tpu_custom_call.1} parent=35 // pred_fallthru
          _
        %v266 = vld [vmem:[%s224] sm:$0xff]
        %v267 = vld [vmem:[#allocation2] sm:$0xf]
        %v268 = vld [vmem:[#allocation2 + $0x8] sm:$0xf]
        %v270 = vcombine.high %v266, %v266
        %v272 = vmax.f32 %v267, %v266
        %v273 = vmax.f32 %v268, %v270
        %274 = vst [vmem:[#allocation2] sm:$0xf] %v272
        %275 = vst [vmem:[#allocation2 + $0x8] sm:$0xf] %v273
        %v276 = vld [vmem:[#allocation3] sm:$0xf]
        %v277 = vld [vmem:[#allocation3 + $0x8] sm:$0xf]
        %v278 = vadd.f32 %v276, %v266
        %v279 = vadd.f32 %v277, %v270
        %280 = vst [vmem:[#allocation3] sm:$0xf] %v278
        %281 = vst [vmem:[#allocation3 + $0x8] sm:$0xf] %v279
        // Predicated region
        $region53: #{tpu_custom_call.1} parent=35 // pred_check
          %p282 = pneg %p258
        $region54: #{tpu_custom_call.1} parent=35 // pred_check_branch
          %284 = sbr.rel (%p282) target = $region56
        $region55: #{tpu_custom_call.1} parent=35 // pred_region
          %v285 = vld [vmem:[#allocation9] ss:$2 sm:$0x3]
          %s286 = scalar_lea.vmem [#allocation9], 1
          %v287 = vld [vmem:[%s286] ss:$2 sm:$0x3]
          %v288 = vld [vmem:[#allocation2] sm:$0xff]
          %v289 = vld [vmem:[#allocation2 + $0x8] sm:$0xff]
          %v290 = vrot.slane %v288, 4
          %v291 = vmax.f32 %v288, %v290
          %v292 = vrot.slane %v291, 2
          %v293 = vmax.f32 %v291, %v292
          %v294 = vrot.slane %v293, 1
          %v295 = vmax.f32 %v293, %v294
          %v296 = vrot.slane %v289, 4
          %v297 = vmax.f32 %v289, %v296
          %v298 = vrot.slane %v297, 2
          %v299 = vmax.f32 %v297, %v298
          %v300 = vrot.slane %v299, 1
          %v301 = vmax.f32 %v299, %v300
          %v302 = vld [vmem:[#allocation3] sm:$0xff]
          %v303 = vld [vmem:[#allocation3 + $0x8] sm:$0xff]
          %v304 = vrot.slane %v302, 4
          %v305 = vadd.f32 %v302, %v304
          %v306 = vrot.slane %v305, 2
          %v307 = vadd.f32 %v305, %v306
          %v308 = vrot.slane %v307, 1
          %v309 = vadd.f32 %v307, %v308
          %v310 = vrot.slane %v303, 4
          %v311 = vadd.f32 %v303, %v310
          %v312 = vrot.slane %v311, 2
          %v313 = vadd.f32 %v311, %v312
          %v314 = vrot.slane %v313, 1
          %v315 = vadd.f32 %v313, %v314
          %s316 = sld [smem:[#allocation4]]
          %v317 = vstv %s316
          %s318 = sld [smem:[#allocation11]]
          %319 = vrot.lane.b32.xlu0 %v295, 3
          %v320 = vpop.permute.xlu0 %319
          %321 = vrot.lane.b32.xlu0 %v301, 3
          %v322 = vpop.permute.xlu0 %321
          %v323 = vlaneseq
          %v324 = vand.u32 %v323, 127
          %vm325 = vcmp.lt.s32.totalorder %v324, 3
          %v326 = vsel %vm325, %v320, %v322
          %v327 = vsel %vm325, %v322, %v320
          %vm328 = vcmp.ge.s32.totalorder %v287, 3
          %v331 = vcombine.low %v327, %v326
          %v333 = vunpack.c.l.s4 1966171168
          %v334 = vunpack.c.0.s8 %v333
          %v335 = vlaneseq
          %v336 = vshrl.u32 %v335, 7
          %v337 = vsub.s32 %v334, %v336
          %v338 = vrot.slane %v331, %v337
          %v340 = vunpack.c.l.s4 1966171168
          %v341 = vunpack.c.0.s8 %v340
          %v342 = vlaneseq
          %v343 = vshrl.u32 %v342, 7
          %v344 = vsub.s32 %v341, %v343
          %v345 = vrot.slane %v338, %v344
          %v347 = vsel %vm328, %v345, 0.0
          %v348 = vstv %s318
          %v349 = vmul.f32 %v348, %v347
          %v350 = vadd.f32 %v349, 0.0
          %s351 = sld [smem:[#allocation11 + $0x1]]
          %352 = vrot.lane.b32.xlu0 %v295, 2
          %v353 = vpop.permute.xlu0 %352
          %354 = vrot.lane.b32.xlu0 %v301, 2
          %v355 = vpop.permute.xlu0 %354
          %vm356 = vcmp.lt.s32.totalorder %v324, 2
          %v357 = vsel %vm356, %v353, %v355
          %v358 = vsel %vm356, %v355, %v353
          %vm359 = vcmp.ge.s32.totalorder %v287, 2
          %v362 = vcombine.low %v358, %v357
          %v364 = vunpack.c.l.s4 1966171168
          %v365 = vunpack.c.0.s8 %v364
          %v366 = vlaneseq
          %v367 = vshrl.u32 %v366, 7
          %v368 = vsub.s32 %v365, %v367
          %v369 = vrot.slane %v362, %v368
          %v371 = vunpack.c.l.s4 1966171168
          %v372 = vunpack.c.0.s8 %v371
          %v373 = vlaneseq
          %v374 = vshrl.u32 %v373, 7
          %v375 = vsub.s32 %v372, %v374
          %v376 = vrot.slane %v369, %v375
          %v378 = vsel %vm359, %v376, 0.0
          %v379 = vstv %s351
          %v380 = vmul.f32 %v379, %v378
          %v381 = vadd.f32 %v350, %v380
          %s382 = sld [smem:[#allocation11 + $0x2]]
          %383 = vrot.lane.b32.xlu0 %v295, 1
          %v384 = vpop.permute.xlu0 %383
          %385 = vrot.lane.b32.xlu0 %v301, 1
          %v386 = vpop.permute.xlu0 %385
          %vm387 = vcmp.lt.s32.totalorder %v324, 1
          %v388 = vsel %vm387, %v384, %v386
          %v389 = vsel %vm387, %v386, %v384
          %vm390 = vcmp.ge.s32.totalorder %v287, 1
          %v393 = vcombine.low %v389, %v388
          %v395 = vunpack.c.l.s4 1966171168
          %v396 = vunpack.c.0.s8 %v395
          %v397 = vlaneseq
          %v398 = vshrl.u32 %v397, 7
          %v399 = vsub.s32 %v396, %v398
          %v400 = vrot.slane %v393, %v399
          %v402 = vunpack.c.l.s4 1966171168
          %v403 = vunpack.c.0.s8 %v402
          %v404 = vlaneseq
          %v405 = vshrl.u32 %v404, 7
          %v406 = vsub.s32 %v403, %v405
          %v407 = vrot.slane %v400, %v406
          %v409 = vsel %vm390, %v407, 0.0
          %v410 = vstv %s382
          %v411 = vmul.f32 %v410, %v409
          %v412 = vadd.f32 %v381, %v411
          %s413 = sld [smem:[#allocation11 + $0x3]]
          %v414 = vstv %s413
          %v415 = vmul.f32 %v414, %v295
          %v416 = vmul.f32 %v414, %v301
          %v419 = vcombine.low %v415, %v416
          %v421 = vunpack.c.l.s4 1966171168
          %v422 = vunpack.c.0.s8 %v421
          %v423 = vlaneseq
          %v424 = vshrl.u32 %v423, 7
          %v425 = vsub.s32 %v422, %v424
          %v426 = vrot.slane %v419, %v425
          %v428 = vunpack.c.l.s4 1966171168
          %v429 = vunpack.c.0.s8 %v428
          %v430 = vlaneseq
          %v431 = vshrl.u32 %v430, 7
          %v432 = vsub.s32 %v429, %v431
          %v433 = vrot.slane %v426, %v432
          %v435 = vadd.f32 %v412, %v433
          %s436 = sld [smem:[#allocation11 + $0x4]]
          %437 = vrot.lane.b32.xlu0 %v295, 127
          %v438 = vpop.permute.xlu0 %437
          %439 = vrot.lane.b32.xlu0 %v301, 127
          %v440 = vpop.permute.xlu0 %439
          %vm441 = vcmp.lt.s32.totalorder %v324, 127
          %v442 = vsel %vm441, %v438, %v440
          %v443 = vsel %vm441, %v440, %v438
          %vm444 = vcmp.lt.s32.totalorder %v287, 15
          %v447 = vcombine.low %v442, %v443
          %v449 = vunpack.c.l.s4 1966171168
          %v450 = vunpack.c.0.s8 %v449
          %v451 = vlaneseq
          %v452 = vshrl.u32 %v451, 7
          %v453 = vsub.s32 %v450, %v452
          %v454 = vrot.slane %v447, %v453
          %v456 = vunpack.c.l.s4 1966171168
          %v457 = vunpack.c.0.s8 %v456
          %v458 = vlaneseq
          %v459 = vshrl.u32 %v458, 7
          %v460 = vsub.s32 %v457, %v459
          %v461 = vrot.slane %v454, %v460
          %v463 = vsel %vm444, %v461, 0.0
          %v464 = vstv %s436
          %v465 = vmul.f32 %v464, %v463
          %v466 = vadd.f32 %v435, %v465
          %s467 = sld [smem:[#allocation11 + $0x5]]
          %468 = vrot.lane.b32.xlu0 %v295, 126
          %v469 = vpop.permute.xlu0 %468
          %470 = vrot.lane.b32.xlu0 %v301, 126
          %v471 = vpop.permute.xlu0 %470
          %vm472 = vcmp.lt.s32.totalorder %v324, 126
          %v473 = vsel %vm472, %v469, %v471
          %v474 = vsel %vm472, %v471, %v469
          %vm475 = vcmp.lt.s32.totalorder %v287, 14
          %v478 = vcombine.low %v473, %v474
          %v480 = vunpack.c.l.s4 1966171168
          %v481 = vunpack.c.0.s8 %v480
          %v482 = vlaneseq
          %v483 = vshrl.u32 %v482, 7
          %v484 = vsub.s32 %v481, %v483
          %v485 = vrot.slane %v478, %v484
          %v487 = vunpack.c.l.s4 1966171168
          %v488 = vunpack.c.0.s8 %v487
          %v489 = vlaneseq
          %v490 = vshrl.u32 %v489, 7
          %v491 = vsub.s32 %v488, %v490
          %v492 = vrot.slane %v485, %v491
          %v494 = vsel %vm475, %v492, 0.0
          %v495 = vstv %s467
          %v496 = vmul.f32 %v495, %v494
          %v497 = vadd.f32 %v466, %v496
          %s498 = sld [smem:[#allocation11 + $0x6]]
          %499 = vrot.lane.b32.xlu0 %v295, 125
          %v500 = vpop.permute.xlu0 %499
          %501 = vrot.lane.b32.xlu0 %v301, 125
          %v502 = vpop.permute.xlu0 %501
          %vm503 = vcmp.lt.s32.totalorder %v324, 125
          %v504 = vsel %vm503, %v500, %v502
          %v505 = vsel %vm503, %v502, %v500
          %vm506 = vcmp.lt.s32.totalorder %v287, 13
          %v509 = vcombine.low %v504, %v505
          %v511 = vunpack.c.l.s4 1966171168
          %v512 = vunpack.c.0.s8 %v511
          %v513 = vlaneseq
          %v514 = vshrl.u32 %v513, 7
          %v515 = vsub.s32 %v512, %v514
          %v516 = vrot.slane %v509, %v515
          %v518 = vunpack.c.l.s4 1966171168
          %v519 = vunpack.c.0.s8 %v518
          %v520 = vlaneseq
          %v521 = vshrl.u32 %v520, 7
          %v522 = vsub.s32 %v519, %v521
          %v523 = vrot.slane %v516, %v522
          %v525 = vsel %vm506, %v523, 0.0
          %v526 = vstv %s498
          %v527 = vmul.f32 %v526, %v525
          %v528 = vadd.f32 %v497, %v527
          %v530 = vlaneseq
          %v531 = vshrl.u32 %v530, 7
          %v532 = vsub.s32 0, %v531
          %v533 = vrot.slane %v528, %v532
          %v534 = vlaneseq
          %v535 = vshrl.u32 %v534, 7
          %v536 = vsub.s32 1, %v535
          %v537 = vrot.slane %v528, %v536
          %540 = vrot.lane.b32.xlu0 %v533, 48
          %v541 = vpop.permute.xlu0 %540
          %542 = vrot.lane.b32.xlu0 %v537, 48
          %v543 = vpop.permute.xlu0 %542
          %vm544 = vcmp.lt.s32.totalorder %v324, 48
          %v545 = vsel %vm544, %v541, %v543
          %v546 = vsel %vm544, %v543, %v541
          %vm547 = vcmp.ge.s32.totalorder %v285, 3
          %v550 = vcombine.low %v546, %v545
          %v552 = vunpack.c.l.s4 1966171168
          %v553 = vunpack.c.0.s8 %v552
          %v554 = vlaneseq
          %v555 = vshrl.u32 %v554, 7
          %v556 = vsub.s32 %v553, %v555
          %v557 = vrot.slane %v550, %v556
          %v559 = vunpack.c.l.s4 1966171168
          %v560 = vunpack.c.0.s8 %v559
          %v561 = vlaneseq
          %v562 = vshrl.u32 %v561, 7
          %v563 = vsub.s32 %v560, %v562
          %v564 = vrot.slane %v557, %v563
          %v566 = vsel %vm547, %v564, 0.0
          %v567 = vadd.f32 %v317, %v566
          %s568 = sld [smem:[#allocation11 + $0x7]]
          %v569 = vstv %s568
          %v570 = vmul.f32 %v569, %v347
          %v571 = vadd.f32 %v570, 0.0
          %s572 = sld [smem:[#allocation11 + $0x8]]
          %v573 = vstv %s572
          %v574 = vmul.f32 %v573, %v378
          %v575 = vadd.f32 %v571, %v574
          %s576 = sld [smem:[#allocation11 + $0x9]]
          %v577 = vstv %s576
          %v578 = vmul.f32 %v577, %v409
          %v579 = vadd.f32 %v575, %v578
          %s580 = sld [smem:[#allocation11 + $0xa]]
          %v581 = vstv %s580
          %v582 = vmul.f32 %v581, %v295
          %v583 = vmul.f32 %v581, %v301
          %v586 = vcombine.low %v582, %v583
          %v588 = vunpack.c.l.s4 1966171168
          %v589 = vunpack.c.0.s8 %v588
          %v590 = vlaneseq
          %v591 = vshrl.u32 %v590, 7
          %v592 = vsub.s32 %v589, %v591
          %v593 = vrot.slane %v586, %v592
          %v595 = vunpack.c.l.s4 1966171168
          %v596 = vunpack.c.0.s8 %v595
          %v597 = vlaneseq
          %v598 = vshrl.u32 %v597, 7
          %v599 = vsub.s32 %v596, %v598
          %v600 = vrot.slane %v593, %v599
          %v602 = vadd.f32 %v579, %v600
          %s603 = sld [smem:[#allocation11 + $0xb]]
          %v604 = vstv %s603
          %v605 = vmul.f32 %v604, %v463
          %v606 = vadd.f32 %v602, %v605
          %s607 = sld [smem:[#allocation11 + $0xc]]
          %v608 = vstv %s607
          %v609 = vmul.f32 %v608, %v494
          %v610 = vadd.f32 %v606, %v609
          %s611 = sld [smem:[#allocation11 + $0xd]]
          %v612 = vstv %s611
          %v613 = vmul.f32 %v612, %v525
          %v614 = vadd.f32 %v610, %v613
          %v616 = vlaneseq
          %v617 = vshrl.u32 %v616, 7
          %v618 = vsub.s32 0, %v617
          %v619 = vrot.slane %v614, %v618
          %v620 = vlaneseq
          %v621 = vshrl.u32 %v620, 7
          %v622 = vsub.s32 1, %v621
          %v623 = vrot.slane %v614, %v622
          %626 = vrot.lane.b32.xlu0 %v619, 32
          %v627 = vpop.permute.xlu0 %626
          %628 = vrot.lane.b32.xlu0 %v623, 32
          %v629 = vpop.permute.xlu0 %628
          %vm630 = vcmp.lt.s32.totalorder %v324, 32
          %v631 = vsel %vm630, %v627, %v629
          %v632 = vsel %vm630, %v629, %v627
          %vm633 = vcmp.ge.s32.totalorder %v285, 2
          %v636 = vcombine.low %v632, %v631
          %v638 = vunpack.c.l.s4 1966171168
          %v639 = vunpack.c.0.s8 %v638
          %v640 = vlaneseq
          %v641 = vshrl.u32 %v640, 7
          %v642 = vsub.s32 %v639, %v641
          %v643 = vrot.slane %v636, %v642
          %v645 = vunpack.c.l.s4 1966171168
          %v646 = vunpack.c.0.s8 %v645
          %v647 = vlaneseq
          %v648 = vshrl.u32 %v647, 7
          %v649 = vsub.s32 %v646, %v648
          %v650 = vrot.slane %v643, %v649
          %v652 = vsel %vm633, %v650, 0.0
          %v653 = vadd.f32 %v567, %v652
          %s654 = sld [smem:[#allocation11 + $0xe]]
          %v655 = vstv %s654
          %v656 = vmul.f32 %v655, %v347
          %v657 = vadd.f32 %v656, 0.0
          %s658 = sld [smem:[#allocation11 + $0xf]]
          %v659 = vstv %s658
          %v660 = vmul.f32 %v659, %v378
          %v661 = vadd.f32 %v657, %v660
          %s662 = sld [smem:[#allocation11 + $0x10]]
          %v663 = vstv %s662
          %v664 = vmul.f32 %v663, %v409
          %v665 = vadd.f32 %v661, %v664
          %s666 = sld [smem:[#allocation11 + $0x11]]
          %v667 = vstv %s666
          %v668 = vmul.f32 %v667, %v295
          %v669 = vmul.f32 %v667, %v301
          %v672 = vcombine.low %v668, %v669
          %v674 = vunpack.c.l.s4 1966171168
          %v675 = vunpack.c.0.s8 %v674
          %v676 = vlaneseq
          %v677 = vshrl.u32 %v676, 7
          %v678 = vsub.s32 %v675, %v677
          %v679 = vrot.slane %v672, %v678
          %v681 = vunpack.c.l.s4 1966171168
          %v682 = vunpack.c.0.s8 %v681
          %v683 = vlaneseq
          %v684 = vshrl.u32 %v683, 7
          %v685 = vsub.s32 %v682, %v684
          %v686 = vrot.slane %v679, %v685
          %v688 = vadd.f32 %v665, %v686
          %s689 = sld [smem:[#allocation11 + $0x12]]
          %v690 = vstv %s689
          %v691 = vmul.f32 %v690, %v463
          %v692 = vadd.f32 %v688, %v691
          %s693 = sld [smem:[#allocation11 + $0x13]]
          %v694 = vstv %s693
          %v695 = vmul.f32 %v694, %v494
          %v696 = vadd.f32 %v692, %v695
          %s697 = sld [smem:[#allocation11 + $0x14]]
          %v698 = vstv %s697
          %v699 = vmul.f32 %v698, %v525
          %v700 = vadd.f32 %v696, %v699
          %v702 = vlaneseq
          %v703 = vshrl.u32 %v702, 7
          %v704 = vsub.s32 0, %v703
          %v705 = vrot.slane %v700, %v704
          %v706 = vlaneseq
          %v707 = vshrl.u32 %v706, 7
          %v708 = vsub.s32 1, %v707
          %v709 = vrot.slane %v700, %v708
          %712 = vrot.lane.b32.xlu0 %v705, 16
          %v713 = vpop.permute.xlu0 %712
          %714 = vrot.lane.b32.xlu0 %v709, 16
          %v715 = vpop.permute.xlu0 %714
          %vm716 = vcmp.lt.s32.totalorder %v324, 16
          %v717 = vsel %vm716, %v713, %v715
          %v718 = vsel %vm716, %v715, %v713
          %vm719 = vcmp.ge.s32.totalorder %v285, 1
          %v722 = vcombine.low %v718, %v717
          %v724 = vunpack.c.l.s4 1966171168
          %v725 = vunpack.c.0.s8 %v724
          %v726 = vlaneseq
          %v727 = vshrl.u32 %v726, 7
          %v728 = vsub.s32 %v725, %v727
          %v729 = vrot.slane %v722, %v728
          %v731 = vunpack.c.l.s4 1966171168
          %v732 = vunpack.c.0.s8 %v731
          %v733 = vlaneseq
          %v734 = vshrl.u32 %v733, 7
          %v735 = vsub.s32 %v732, %v734
          %v736 = vrot.slane %v729, %v735
          %v738 = vsel %vm719, %v736, 0.0
          %v739 = vadd.f32 %v653, %v738
          %s740 = sld [smem:[#allocation11 + $0x15]]
          %v741 = vstv %s740
          %v742 = vmul.f32 %v741, %v347
          %v743 = vadd.f32 %v742, 0.0
          %s744 = sld [smem:[#allocation11 + $0x16]]
          %v745 = vstv %s744
          %v746 = vmul.f32 %v745, %v378
          %v747 = vadd.f32 %v743, %v746
          %s748 = sld [smem:[#allocation11 + $0x17]]
          %v749 = vstv %s748
          %v750 = vmul.f32 %v749, %v409
          %v751 = vadd.f32 %v747, %v750
          %s752 = sld [smem:[#allocation11 + $0x18]]
          %v753 = vstv %s752
          %v754 = vmul.f32 %v753, %v295
          %v755 = vmul.f32 %v753, %v301
          %v758 = vcombine.low %v754, %v755
          %v760 = vunpack.c.l.s4 1966171168
          %v761 = vunpack.c.0.s8 %v760
          %v762 = vlaneseq
          %v763 = vshrl.u32 %v762, 7
          %v764 = vsub.s32 %v761, %v763
          %v765 = vrot.slane %v758, %v764
          %v767 = vunpack.c.l.s4 1966171168
          %v768 = vunpack.c.0.s8 %v767
          %v769 = vlaneseq
          %v770 = vshrl.u32 %v769, 7
          %v771 = vsub.s32 %v768, %v770
          %v772 = vrot.slane %v765, %v771
          %v774 = vadd.f32 %v751, %v772
          %s775 = sld [smem:[#allocation11 + $0x19]]
          %v776 = vstv %s775
          %v777 = vmul.f32 %v776, %v463
          %v778 = vadd.f32 %v774, %v777
          %s779 = sld [smem:[#allocation11 + $0x1a]]
          %v780 = vstv %s779
          %v781 = vmul.f32 %v780, %v494
          %v782 = vadd.f32 %v778, %v781
          %s783 = sld [smem:[#allocation11 + $0x1b]]
          %v784 = vstv %s783
          %v785 = vmul.f32 %v784, %v525
          %v786 = vadd.f32 %v782, %v785
          %v787 = vadd.f32 %v739, %v786
          %s788 = sld [smem:[#allocation11 + $0x1c]]
          %v789 = vstv %s788
          %v790 = vmul.f32 %v789, %v347
          %v791 = vadd.f32 %v790, 0.0
          %s792 = sld [smem:[#allocation11 + $0x1d]]
          %v793 = vstv %s792
          %v794 = vmul.f32 %v793, %v378
          %v795 = vadd.f32 %v791, %v794
          %s796 = sld [smem:[#allocation11 + $0x1e]]
          %v797 = vstv %s796
          %v798 = vmul.f32 %v797, %v409
          %v799 = vadd.f32 %v795, %v798
          %s800 = sld [smem:[#allocation11 + $0x1f]]
          %v801 = vstv %s800
          %v802 = vmul.f32 %v801, %v295
          %v803 = vmul.f32 %v801, %v301
          %v806 = vcombine.low %v802, %v803
          %v808 = vunpack.c.l.s4 1966171168
          %v809 = vunpack.c.0.s8 %v808
          %v810 = vlaneseq
          %v811 = vshrl.u32 %v810, 7
          %v812 = vsub.s32 %v809, %v811
          %v813 = vrot.slane %v806, %v812
          %v815 = vunpack.c.l.s4 1966171168
          %v816 = vunpack.c.0.s8 %v815
          %v817 = vlaneseq
          %v818 = vshrl.u32 %v817, 7
          %v819 = vsub.s32 %v816, %v818
          %v820 = vrot.slane %v813, %v819
          %v822 = vadd.f32 %v799, %v820
          %s823 = sld [smem:[#allocation11 + $0x20]]
          %v824 = vstv %s823
          %v825 = vmul.f32 %v824, %v463
          %v826 = vadd.f32 %v822, %v825
          %s827 = sld [smem:[#allocation11 + $0x21]]
          %v828 = vstv %s827
          %v829 = vmul.f32 %v828, %v494
          %v830 = vadd.f32 %v826, %v829
          %s831 = sld [smem:[#allocation11 + $0x22]]
          %v832 = vstv %s831
          %v833 = vmul.f32 %v832, %v525
          %v834 = vadd.f32 %v830, %v833
          %v836 = vlaneseq
          %v837 = vshrl.u32 %v836, 7
          %v838 = vsub.s32 0, %v837
          %v839 = vrot.slane %v834, %v838
          %v840 = vlaneseq
          %v841 = vshrl.u32 %v840, 7
          %v842 = vsub.s32 1, %v841
          %v843 = vrot.slane %v834, %v842
          %846 = vrot.lane.b32.xlu0 %v839, 112
          %v847 = vpop.permute.xlu0 %846
          %848 = vrot.lane.b32.xlu0 %v843, 112
          %v849 = vpop.permute.xlu0 %848
          %vm850 = vcmp.lt.s32.totalorder %v324, 112
          %v851 = vsel %vm850, %v847, %v849
          %v852 = vsel %vm850, %v849, %v847
          %vm853 = vcmp.lt.s32.totalorder %v285, 15
          %v856 = vcombine.low %v851, %v852
          %v858 = vunpack.c.l.s4 1966171168
          %v859 = vunpack.c.0.s8 %v858
          %v860 = vlaneseq
          %v861 = vshrl.u32 %v860, 7
          %v862 = vsub.s32 %v859, %v861
          %v863 = vrot.slane %v856, %v862
          %v865 = vunpack.c.l.s4 1966171168
          %v866 = vunpack.c.0.s8 %v865
          %v867 = vlaneseq
          %v868 = vshrl.u32 %v867, 7
          %v869 = vsub.s32 %v866, %v868
          %v870 = vrot.slane %v863, %v869
          %v872 = vsel %vm853, %v870, 0.0
          %v873 = vadd.f32 %v787, %v872
          %s874 = sld [smem:[#allocation11 + $0x23]]
          %v875 = vstv %s874
          %v876 = vmul.f32 %v875, %v347
          %v877 = vadd.f32 %v876, 0.0
          %s878 = sld [smem:[#allocation11 + $0x24]]
          %v879 = vstv %s878
          %v880 = vmul.f32 %v879, %v378
          %v881 = vadd.f32 %v877, %v880
          %s882 = sld [smem:[#allocation11 + $0x25]]
          %v883 = vstv %s882
          %v884 = vmul.f32 %v883, %v409
          %v885 = vadd.f32 %v881, %v884
          %s886 = sld [smem:[#allocation11 + $0x26]]
          %v887 = vstv %s886
          %v888 = vmul.f32 %v887, %v295
          %v889 = vmul.f32 %v887, %v301
          %v892 = vcombine.low %v888, %v889
          %v894 = vunpack.c.l.s4 1966171168
          %v895 = vunpack.c.0.s8 %v894
          %v896 = vlaneseq
          %v897 = vshrl.u32 %v896, 7
          %v898 = vsub.s32 %v895, %v897
          %v899 = vrot.slane %v892, %v898
          %v901 = vunpack.c.l.s4 1966171168
          %v902 = vunpack.c.0.s8 %v901
          %v903 = vlaneseq
          %v904 = vshrl.u32 %v903, 7
          %v905 = vsub.s32 %v902, %v904
          %v906 = vrot.slane %v899, %v905
          %v908 = vadd.f32 %v885, %v906
          %s909 = sld [smem:[#allocation11 + $0x27]]
          %v910 = vstv %s909
          %v911 = vmul.f32 %v910, %v463
          %v912 = vadd.f32 %v908, %v911
          %s913 = sld [smem:[#allocation11 + $0x28]]
          %v914 = vstv %s913
          %v915 = vmul.f32 %v914, %v494
          %v916 = vadd.f32 %v912, %v915
          %s917 = sld [smem:[#allocation11 + $0x29]]
          %v918 = vstv %s917
          %v919 = vmul.f32 %v918, %v525
          %v920 = vadd.f32 %v916, %v919
          %v922 = vlaneseq
          %v923 = vshrl.u32 %v922, 7
          %v924 = vsub.s32 0, %v923
          %v925 = vrot.slane %v920, %v924
          %v926 = vlaneseq
          %v927 = vshrl.u32 %v926, 7
          %v928 = vsub.s32 1, %v927
          %v929 = vrot.slane %v920, %v928
          %932 = vrot.lane.b32.xlu0 %v925, 96
          %v933 = vpop.permute.xlu0 %932
          %934 = vrot.lane.b32.xlu0 %v929, 96
          %v935 = vpop.permute.xlu0 %934
          %vm936 = vcmp.lt.s32.totalorder %v324, 96
          %v937 = vsel %vm936, %v933, %v935
          %v938 = vsel %vm936, %v935, %v933
          %vm939 = vcmp.lt.s32.totalorder %v285, 14
          %v942 = vcombine.low %v937, %v938
          %v944 = vunpack.c.l.s4 1966171168
          %v945 = vunpack.c.0.s8 %v944
          %v946 = vlaneseq
          %v947 = vshrl.u32 %v946, 7
          %v948 = vsub.s32 %v945, %v947
          %v949 = vrot.slane %v942, %v948
          %v951 = vunpack.c.l.s4 1966171168
          %v952 = vunpack.c.0.s8 %v951
          %v953 = vlaneseq
          %v954 = vshrl.u32 %v953, 7
          %v955 = vsub.s32 %v952, %v954
          %v956 = vrot.slane %v949, %v955
          %v958 = vsel %vm939, %v956, 0.0
          %v959 = vadd.f32 %v873, %v958
          %s960 = sld [smem:[#allocation11 + $0x2a]]
          %v961 = vstv %s960
          %v962 = vmul.f32 %v961, %v347
          %v963 = vadd.f32 %v962, 0.0
          %s964 = sld [smem:[#allocation11 + $0x2b]]
          %v965 = vstv %s964
          %v966 = vmul.f32 %v965, %v378
          %v967 = vadd.f32 %v963, %v966
          %s968 = sld [smem:[#allocation11 + $0x2c]]
          %v969 = vstv %s968
          %v970 = vmul.f32 %v969, %v409
          %v971 = vadd.f32 %v967, %v970
          %s972 = sld [smem:[#allocation11 + $0x2d]]
          %v973 = vstv %s972
          %v974 = vmul.f32 %v973, %v295
          %v975 = vmul.f32 %v973, %v301
          %v978 = vcombine.low %v974, %v975
          %v980 = vunpack.c.l.s4 1966171168
          %v981 = vunpack.c.0.s8 %v980
          %v982 = vlaneseq
          %v983 = vshrl.u32 %v982, 7
          %v984 = vsub.s32 %v981, %v983
          %v985 = vrot.slane %v978, %v984
          %v987 = vunpack.c.l.s4 1966171168
          %v988 = vunpack.c.0.s8 %v987
          %v989 = vlaneseq
          %v990 = vshrl.u32 %v989, 7
          %v991 = vsub.s32 %v988, %v990
          %v992 = vrot.slane %v985, %v991
          %v994 = vadd.f32 %v971, %v992
          %s995 = sld [smem:[#allocation11 + $0x2e]]
          %v996 = vstv %s995
          %v997 = vmul.f32 %v996, %v463
          %v998 = vadd.f32 %v994, %v997
          %s999 = sld [smem:[#allocation11 + $0x2f]]
          %v1000 = vstv %s999
          %v1001 = vmul.f32 %v1000, %v494
          %v1002 = vadd.f32 %v998, %v1001
          %s1003 = sld [smem:[#allocation11 + $0x30]]
          %v1004 = vstv %s1003
          %v1005 = vmul.f32 %v1004, %v525
          %v1006 = vadd.f32 %v1002, %v1005
          %v1008 = vlaneseq
          %v1009 = vshrl.u32 %v1008, 7
          %v1010 = vsub.s32 0, %v1009
          %v1011 = vrot.slane %v1006, %v1010
          %v1012 = vlaneseq
          %v1013 = vshrl.u32 %v1012, 7
          %v1014 = vsub.s32 1, %v1013
          %v1015 = vrot.slane %v1006, %v1014
          %1018 = vrot.lane.b32.xlu0 %v1011, 80
          %v1019 = vpop.permute.xlu0 %1018
          %1020 = vrot.lane.b32.xlu0 %v1015, 80
          %v1021 = vpop.permute.xlu0 %1020
          %vm1022 = vcmp.lt.s32.totalorder %v324, 80
          %v1023 = vsel %vm1022, %v1019, %v1021
          %v1024 = vsel %vm1022, %v1021, %v1019
          %vm1025 = vcmp.lt.s32.totalorder %v285, 13
          %v1028 = vcombine.low %v1023, %v1024
          %v1030 = vunpack.c.l.s4 1966171168
          %v1031 = vunpack.c.0.s8 %v1030
          %v1032 = vlaneseq
          %v1033 = vshrl.u32 %v1032, 7
          %v1034 = vsub.s32 %v1031, %v1033
          %v1035 = vrot.slane %v1028, %v1034
          %v1037 = vunpack.c.l.s4 1966171168
          %v1038 = vunpack.c.0.s8 %v1037
          %v1039 = vlaneseq
          %v1040 = vshrl.u32 %v1039, 7
          %v1041 = vsub.s32 %v1038, %v1040
          %v1042 = vrot.slane %v1035, %v1041
          %v1044 = vsel %vm1025, %v1042, 0.0
          %v1045 = vadd.f32 %v959, %v1044
          %s1046 = sld [smem:[#allocation11 + $0x31]]
          %1047 = vrot.lane.b32.xlu0 %v309, 3
          %v1048 = vpop.permute.xlu0 %1047
          %1049 = vrot.lane.b32.xlu0 %v315, 3
          %v1050 = vpop.permute.xlu0 %1049
          %v1051 = vsel %vm325, %v1048, %v1050
          %v1052 = vsel %vm325, %v1050, %v1048
          %v1055 = vcombine.low %v1052, %v1051
          %v1057 = vunpack.c.l.s4 1966171168
          %v1058 = vunpack.c.0.s8 %v1057
          %v1059 = vlaneseq
          %v1060 = vshrl.u32 %v1059, 7
          %v1061 = vsub.s32 %v1058, %v1060
          %v1062 = vrot.slane %v1055, %v1061
          %v1064 = vunpack.c.l.s4 1966171168
          %v1065 = vunpack.c.0.s8 %v1064
          %v1066 = vlaneseq
          %v1067 = vshrl.u32 %v1066, 7
          %v1068 = vsub.s32 %v1065, %v1067
          %v1069 = vrot.slane %v1062, %v1068
          %v1071 = vsel %vm328, %v1069, 0.0
          %v1072 = vstv %s1046
          %v1073 = vmul.f32 %v1072, %v1071
          %v1074 = vadd.f32 %v1073, 0.0
          %s1075 = sld [smem:[#allocation11 + $0x32]]
          %1076 = vrot.lane.b32.xlu0 %v309, 2
          %v1077 = vpop.permute.xlu0 %1076
          %1078 = vrot.lane.b32.xlu0 %v315, 2
          %v1079 = vpop.permute.xlu0 %1078
          %v1080 = vsel %vm356, %v1077, %v1079
          %v1081 = vsel %vm356, %v1079, %v1077
          %v1084 = vcombine.low %v1081, %v1080
          %v1086 = vunpack.c.l.s4 1966171168
          %v1087 = vunpack.c.0.s8 %v1086
          %v1088 = vlaneseq
          %v1089 = vshrl.u32 %v1088, 7
          %v1090 = vsub.s32 %v1087, %v1089
          %v1091 = vrot.slane %v1084, %v1090
          %v1093 = vunpack.c.l.s4 1966171168
          %v1094 = vunpack.c.0.s8 %v1093
          %v1095 = vlaneseq
          %v1096 = vshrl.u32 %v1095, 7
          %v1097 = vsub.s32 %v1094, %v1096
          %v1098 = vrot.slane %v1091, %v1097
          %v1100 = vsel %vm359, %v1098, 0.0
          %v1101 = vstv %s1075
          %v1102 = vmul.f32 %v1101, %v1100
          %v1103 = vadd.f32 %v1074, %v1102
          %s1104 = sld [smem:[#allocation11 + $0x33]]
          %1105 = vrot.lane.b32.xlu0 %v309, 1
          %v1106 = vpop.permute.xlu0 %1105
          %1107 = vrot.lane.b32.xlu0 %v315, 1
          %v1108 = vpop.permute.xlu0 %1107
          %v1109 = vsel %vm387, %v1106, %v1108
          %v1110 = vsel %vm387, %v1108, %v1106
          %v1113 = vcombine.low %v1110, %v1109
          %v1115 = vunpack.c.l.s4 1966171168
          %v1116 = vunpack.c.0.s8 %v1115
          %v1117 = vlaneseq
          %v1118 = vshrl.u32 %v1117, 7
          %v1119 = vsub.s32 %v1116, %v1118
          %v1120 = vrot.slane %v1113, %v1119
          %v1122 = vunpack.c.l.s4 1966171168
          %v1123 = vunpack.c.0.s8 %v1122
          %v1124 = vlaneseq
          %v1125 = vshrl.u32 %v1124, 7
          %v1126 = vsub.s32 %v1123, %v1125
          %v1127 = vrot.slane %v1120, %v1126
          %v1129 = vsel %vm390, %v1127, 0.0
          %v1130 = vstv %s1104
          %v1131 = vmul.f32 %v1130, %v1129
          %v1132 = vadd.f32 %v1103, %v1131
          %s1133 = sld [smem:[#allocation11 + $0x34]]
          %v1134 = vstv %s1133
          %v1135 = vmul.f32 %v1134, %v309
          %v1136 = vmul.f32 %v1134, %v315
          %v1139 = vcombine.low %v1135, %v1136
          %v1141 = vunpack.c.l.s4 1966171168
          %v1142 = vunpack.c.0.s8 %v1141
          %v1143 = vlaneseq
          %v1144 = vshrl.u32 %v1143, 7
          %v1145 = vsub.s32 %v1142, %v1144
          %v1146 = vrot.slane %v1139, %v1145
          %v1148 = vunpack.c.l.s4 1966171168
          %v1149 = vunpack.c.0.s8 %v1148
          %v1150 = vlaneseq
          %v1151 = vshrl.u32 %v1150, 7
          %v1152 = vsub.s32 %v1149, %v1151
          %v1153 = vrot.slane %v1146, %v1152
          %v1155 = vadd.f32 %v1132, %v1153
          %s1156 = sld [smem:[#allocation11 + $0x35]]
          %1157 = vrot.lane.b32.xlu0 %v309, 127
          %v1158 = vpop.permute.xlu0 %1157
          %1159 = vrot.lane.b32.xlu0 %v315, 127
          %v1160 = vpop.permute.xlu0 %1159
          %v1161 = vsel %vm441, %v1158, %v1160
          %v1162 = vsel %vm441, %v1160, %v1158
          %v1165 = vcombine.low %v1161, %v1162
          %v1167 = vunpack.c.l.s4 1966171168
          %v1168 = vunpack.c.0.s8 %v1167
          %v1169 = vlaneseq
          %v1170 = vshrl.u32 %v1169, 7
          %v1171 = vsub.s32 %v1168, %v1170
          %v1172 = vrot.slane %v1165, %v1171
          %v1174 = vunpack.c.l.s4 1966171168
          %v1175 = vunpack.c.0.s8 %v1174
          %v1176 = vlaneseq
          %v1177 = vshrl.u32 %v1176, 7
          %v1178 = vsub.s32 %v1175, %v1177
          %v1179 = vrot.slane %v1172, %v1178
          %v1181 = vsel %vm444, %v1179, 0.0
          %v1182 = vstv %s1156
          %v1183 = vmul.f32 %v1182, %v1181
          %v1184 = vadd.f32 %v1155, %v1183
          %s1185 = sld [smem:[#allocation11 + $0x36]]
          %1186 = vrot.lane.b32.xlu0 %v309, 126
          %v1187 = vpop.permute.xlu0 %1186
          %1188 = vrot.lane.b32.xlu0 %v315, 126
          %v1189 = vpop.permute.xlu0 %1188
          %v1190 = vsel %vm472, %v1187, %v1189
          %v1191 = vsel %vm472, %v1189, %v1187
          %v1194 = vcombine.low %v1190, %v1191
          %v1196 = vunpack.c.l.s4 1966171168
          %v1197 = vunpack.c.0.s8 %v1196
          %v1198 = vlaneseq
          %v1199 = vshrl.u32 %v1198, 7
          %v1200 = vsub.s32 %v1197, %v1199
          %v1201 = vrot.slane %v1194, %v1200
          %v1203 = vunpack.c.l.s4 1966171168
          %v1204 = vunpack.c.0.s8 %v1203
          %v1205 = vlaneseq
          %v1206 = vshrl.u32 %v1205, 7
          %v1207 = vsub.s32 %v1204, %v1206
          %v1208 = vrot.slane %v1201, %v1207
          %v1210 = vsel %vm475, %v1208, 0.0
          %v1211 = vstv %s1185
          %v1212 = vmul.f32 %v1211, %v1210
          %v1213 = vadd.f32 %v1184, %v1212
          %s1214 = sld [smem:[#allocation11 + $0x37]]
          %1215 = vrot.lane.b32.xlu0 %v309, 125
          %v1216 = vpop.permute.xlu0 %1215
          %1217 = vrot.lane.b32.xlu0 %v315, 125
          %v1218 = vpop.permute.xlu0 %1217
          %v1219 = vsel %vm503, %v1216, %v1218
          %v1220 = vsel %vm503, %v1218, %v1216
          %v1223 = vcombine.low %v1219, %v1220
          %v1225 = vunpack.c.l.s4 1966171168
          %v1226 = vunpack.c.0.s8 %v1225
          %v1227 = vlaneseq
          %v1228 = vshrl.u32 %v1227, 7
          %v1229 = vsub.s32 %v1226, %v1228
          %v1230 = vrot.slane %v1223, %v1229
          %v1232 = vunpack.c.l.s4 1966171168
          %v1233 = vunpack.c.0.s8 %v1232
          %v1234 = vlaneseq
          %v1235 = vshrl.u32 %v1234, 7
          %v1236 = vsub.s32 %v1233, %v1235
          %v1237 = vrot.slane %v1230, %v1236
          %v1239 = vsel %vm506, %v1237, 0.0
          %v1240 = vstv %s1214
          %v1241 = vmul.f32 %v1240, %v1239
          %v1242 = vadd.f32 %v1213, %v1241
          %v1244 = vlaneseq
          %v1245 = vshrl.u32 %v1244, 7
          %v1246 = vsub.s32 0, %v1245
          %v1247 = vrot.slane %v1242, %v1246
          %v1248 = vlaneseq
          %v1249 = vshrl.u32 %v1248, 7
          %v1250 = vsub.s32 1, %v1249
          %v1251 = vrot.slane %v1242, %v1250
          %1254 = vrot.lane.b32.xlu0 %v1247, 48
          %v1255 = vpop.permute.xlu0 %1254
          %1256 = vrot.lane.b32.xlu0 %v1251, 48
          %v1257 = vpop.permute.xlu0 %1256
          %v1258 = vsel %vm544, %v1255, %v1257
          %v1259 = vsel %vm544, %v1257, %v1255
          %v1262 = vcombine.low %v1259, %v1258
          %v1264 = vunpack.c.l.s4 1966171168
          %v1265 = vunpack.c.0.s8 %v1264
          %v1266 = vlaneseq
          %v1267 = vshrl.u32 %v1266, 7
          %v1268 = vsub.s32 %v1265, %v1267
          %v1269 = vrot.slane %v1262, %v1268
          %v1271 = vunpack.c.l.s4 1966171168
          %v1272 = vunpack.c.0.s8 %v1271
          %v1273 = vlaneseq
          %v1274 = vshrl.u32 %v1273, 7
          %v1275 = vsub.s32 %v1272, %v1274
          %v1276 = vrot.slane %v1269, %v1275
          %v1278 = vsel %vm547, %v1276, 0.0
          %v1279 = vadd.f32 %v1045, %v1278
          %s1280 = sld [smem:[#allocation11 + $0x38]]
          %v1281 = vstv %s1280
          %v1282 = vmul.f32 %v1281, %v1071
          %v1283 = vadd.f32 %v1282, 0.0
          %s1284 = sld [smem:[#allocation11 + $0x39]]
          %v1285 = vstv %s1284
          %v1286 = vmul.f32 %v1285, %v1100
          %v1287 = vadd.f32 %v1283, %v1286
          %s1288 = sld [smem:[#allocation11 + $0x3a]]
          %v1289 = vstv %s1288
          %v1290 = vmul.f32 %v1289, %v1129
          %v1291 = vadd.f32 %v1287, %v1290
          %s1292 = sld [smem:[#allocation11 + $0x3b]]
          %v1293 = vstv %s1292
          %v1294 = vmul.f32 %v1293, %v309
          %v1295 = vmul.f32 %v1293, %v315
          %v1298 = vcombine.low %v1294, %v1295
          %v1300 = vunpack.c.l.s4 1966171168
          %v1301 = vunpack.c.0.s8 %v1300
          %v1302 = vlaneseq
          %v1303 = vshrl.u32 %v1302, 7
          %v1304 = vsub.s32 %v1301, %v1303
          %v1305 = vrot.slane %v1298, %v1304
          %v1307 = vunpack.c.l.s4 1966171168
          %v1308 = vunpack.c.0.s8 %v1307
          %v1309 = vlaneseq
          %v1310 = vshrl.u32 %v1309, 7
          %v1311 = vsub.s32 %v1308, %v1310
          %v1312 = vrot.slane %v1305, %v1311
          %v1314 = vadd.f32 %v1291, %v1312
          %s1315 = sld [smem:[#allocation11 + $0x3c]]
          %v1316 = vstv %s1315
          %v1317 = vmul.f32 %v1316, %v1181
          %v1318 = vadd.f32 %v1314, %v1317
          %s1319 = sld [smem:[#allocation11 + $0x3d]]
          %v1320 = vstv %s1319
          %v1321 = vmul.f32 %v1320, %v1210
          %v1322 = vadd.f32 %v1318, %v1321
          %s1323 = sld [smem:[#allocation11 + $0x3e]]
          %v1324 = vstv %s1323
          %v1325 = vmul.f32 %v1324, %v1239
          %v1326 = vadd.f32 %v1322, %v1325
          %v1328 = vlaneseq
          %v1329 = vshrl.u32 %v1328, 7
          %v1330 = vsub.s32 0, %v1329
          %v1331 = vrot.slane %v1326, %v1330
          %v1332 = vlaneseq
          %v1333 = vshrl.u32 %v1332, 7
          %v1334 = vsub.s32 1, %v1333
          %v1335 = vrot.slane %v1326, %v1334
          %1338 = vrot.lane.b32.xlu0 %v1331, 32
          %v1339 = vpop.permute.xlu0 %1338
          %1340 = vrot.lane.b32.xlu0 %v1335, 32
          %v1341 = vpop.permute.xlu0 %1340
          %v1342 = vsel %vm630, %v1339, %v1341
          %v1343 = vsel %vm630, %v1341, %v1339
          %v1346 = vcombine.low %v1343, %v1342
          %v1348 = vunpack.c.l.s4 1966171168
          %v1349 = vunpack.c.0.s8 %v1348
          %v1350 = vlaneseq
          %v1351 = vshrl.u32 %v1350, 7
          %v1352 = vsub.s32 %v1349, %v1351
          %v1353 = vrot.slane %v1346, %v1352
          %v1355 = vunpack.c.l.s4 1966171168
          %v1356 = vunpack.c.0.s8 %v1355
          %v1357 = vlaneseq
          %v1358 = vshrl.u32 %v1357, 7
          %v1359 = vsub.s32 %v1356, %v1358
          %v1360 = vrot.slane %v1353, %v1359
          %v1362 = vsel %vm633, %v1360, 0.0
          %v1363 = vadd.f32 %v1279, %v1362
          %s1364 = sld [smem:[#allocation11 + $0x3f]]
          %v1365 = vstv %s1364
          %v1366 = vmul.f32 %v1365, %v1071
          %v1367 = vadd.f32 %v1366, 0.0
          %s1368 = sld [smem:[#allocation11 + $0x40]]
          %v1369 = vstv %s1368
          %v1370 = vmul.f32 %v1369, %v1100
          %v1371 = vadd.f32 %v1367, %v1370
          %s1372 = sld [smem:[#allocation11 + $0x41]]
          %v1373 = vstv %s1372
          %v1374 = vmul.f32 %v1373, %v1129
          %v1375 = vadd.f32 %v1371, %v1374
          %s1376 = sld [smem:[#allocation11 + $0x42]]
          %v1377 = vstv %s1376
          %v1378 = vmul.f32 %v1377, %v309
          %v1379 = vmul.f32 %v1377, %v315
          %v1382 = vcombine.low %v1378, %v1379
          %v1384 = vunpack.c.l.s4 1966171168
          %v1385 = vunpack.c.0.s8 %v1384
          %v1386 = vlaneseq
          %v1387 = vshrl.u32 %v1386, 7
          %v1388 = vsub.s32 %v1385, %v1387
          %v1389 = vrot.slane %v1382, %v1388
          %v1391 = vunpack.c.l.s4 1966171168
          %v1392 = vunpack.c.0.s8 %v1391
          %v1393 = vlaneseq
          %v1394 = vshrl.u32 %v1393, 7
          %v1395 = vsub.s32 %v1392, %v1394
          %v1396 = vrot.slane %v1389, %v1395
          %v1398 = vadd.f32 %v1375, %v1396
          %s1399 = sld [smem:[#allocation11 + $0x43]]
          %v1400 = vstv %s1399
          %v1401 = vmul.f32 %v1400, %v1181
          %v1402 = vadd.f32 %v1398, %v1401
          %s1403 = sld [smem:[#allocation11 + $0x44]]
          %v1404 = vstv %s1403
          %v1405 = vmul.f32 %v1404, %v1210
          %v1406 = vadd.f32 %v1402, %v1405
          %s1407 = sld [smem:[#allocation11 + $0x45]]
          %v1408 = vstv %s1407
          %v1409 = vmul.f32 %v1408, %v1239
          %v1410 = vadd.f32 %v1406, %v1409
          %v1412 = vlaneseq
          %v1413 = vshrl.u32 %v1412, 7
          %v1414 = vsub.s32 0, %v1413
          %v1415 = vrot.slane %v1410, %v1414
          %v1416 = vlaneseq
          %v1417 = vshrl.u32 %v1416, 7
          %v1418 = vsub.s32 1, %v1417
          %v1419 = vrot.slane %v1410, %v1418
          %1422 = vrot.lane.b32.xlu0 %v1415, 16
          %v1423 = vpop.permute.xlu0 %1422
          %1424 = vrot.lane.b32.xlu0 %v1419, 16
          %v1425 = vpop.permute.xlu0 %1424
          %v1426 = vsel %vm716, %v1423, %v1425
          %v1427 = vsel %vm716, %v1425, %v1423
          %v1430 = vcombine.low %v1427, %v1426
          %v1432 = vunpack.c.l.s4 1966171168
          %v1433 = vunpack.c.0.s8 %v1432
          %v1434 = vlaneseq
          %v1435 = vshrl.u32 %v1434, 7
          %v1436 = vsub.s32 %v1433, %v1435
          %v1437 = vrot.slane %v1430, %v1436
          %v1439 = vunpack.c.l.s4 1966171168
          %v1440 = vunpack.c.0.s8 %v1439
          %v1441 = vlaneseq
          %v1442 = vshrl.u32 %v1441, 7
          %v1443 = vsub.s32 %v1440, %v1442
          %v1444 = vrot.slane %v1437, %v1443
          %v1446 = vsel %vm719, %v1444, 0.0
          %v1447 = vadd.f32 %v1363, %v1446
          %s1448 = sld [smem:[#allocation11 + $0x46]]
          %v1449 = vstv %s1448
          %v1450 = vmul.f32 %v1449, %v1071
          %v1451 = vadd.f32 %v1450, 0.0
          %s1452 = sld [smem:[#allocation11 + $0x47]]
          %v1453 = vstv %s1452
          %v1454 = vmul.f32 %v1453, %v1100
          %v1455 = vadd.f32 %v1451, %v1454
          %s1456 = sld [smem:[#allocation11 + $0x48]]
          %v1457 = vstv %s1456
          %v1458 = vmul.f32 %v1457, %v1129
          %v1459 = vadd.f32 %v1455, %v1458
          %s1460 = sld [smem:[#allocation11 + $0x49]]
          %v1461 = vstv %s1460
          %v1462 = vmul.f32 %v1461, %v309
          %v1463 = vmul.f32 %v1461, %v315
          %v1466 = vcombine.low %v1462, %v1463
          %v1468 = vunpack.c.l.s4 1966171168
          %v1469 = vunpack.c.0.s8 %v1468
          %v1470 = vlaneseq
          %v1471 = vshrl.u32 %v1470, 7
          %v1472 = vsub.s32 %v1469, %v1471
          %v1473 = vrot.slane %v1466, %v1472
          %v1475 = vunpack.c.l.s4 1966171168
          %v1476 = vunpack.c.0.s8 %v1475
          %v1477 = vlaneseq
          %v1478 = vshrl.u32 %v1477, 7
          %v1479 = vsub.s32 %v1476, %v1478
          %v1480 = vrot.slane %v1473, %v1479
          %v1482 = vadd.f32 %v1459, %v1480
          %s1483 = sld [smem:[#allocation11 + $0x4a]]
          %v1484 = vstv %s1483
          %v1485 = vmul.f32 %v1484, %v1181
          %v1486 = vadd.f32 %v1482, %v1485
          %s1487 = sld [smem:[#allocation11 + $0x4b]]
          %v1488 = vstv %s1487
          %v1489 = vmul.f32 %v1488, %v1210
          %v1490 = vadd.f32 %v1486, %v1489
          %s1491 = sld [smem:[#allocation11 + $0x4c]]
          %v1492 = vstv %s1491
          %v1493 = vmul.f32 %v1492, %v1239
          %v1494 = vadd.f32 %v1490, %v1493
          %v1495 = vadd.f32 %v1447, %v1494
          %s1496 = sld [smem:[#allocation11 + $0x4d]]
          %v1497 = vstv %s1496
          %v1498 = vmul.f32 %v1497, %v1071
          %v1499 = vadd.f32 %v1498, 0.0
          %s1500 = sld [smem:[#allocation11 + $0x4e]]
          %v1501 = vstv %s1500
          %v1502 = vmul.f32 %v1501, %v1100
          %v1503 = vadd.f32 %v1499, %v1502
          %s1504 = sld [smem:[#allocation11 + $0x4f]]
          %v1505 = vstv %s1504
          %v1506 = vmul.f32 %v1505, %v1129
          %v1507 = vadd.f32 %v1503, %v1506
          %s1508 = sld [smem:[#allocation11 + $0x50]]
          %v1509 = vstv %s1508
          %v1510 = vmul.f32 %v1509, %v309
          %v1511 = vmul.f32 %v1509, %v315
          %v1514 = vcombine.low %v1510, %v1511
          %v1516 = vunpack.c.l.s4 1966171168
          %v1517 = vunpack.c.0.s8 %v1516
          %v1518 = vlaneseq
          %v1519 = vshrl.u32 %v1518, 7
          %v1520 = vsub.s32 %v1517, %v1519
          %v1521 = vrot.slane %v1514, %v1520
          %v1523 = vunpack.c.l.s4 1966171168
          %v1524 = vunpack.c.0.s8 %v1523
          %v1525 = vlaneseq
          %v1526 = vshrl.u32 %v1525, 7
          %v1527 = vsub.s32 %v1524, %v1526
          %v1528 = vrot.slane %v1521, %v1527
          %v1530 = vadd.f32 %v1507, %v1528
          %s1531 = sld [smem:[#allocation11 + $0x51]]
          %v1532 = vstv %s1531
          %v1533 = vmul.f32 %v1532, %v1181
          %v1534 = vadd.f32 %v1530, %v1533
          %s1535 = sld [smem:[#allocation11 + $0x52]]
          %v1536 = vstv %s1535
          %v1537 = vmul.f32 %v1536, %v1210
          %v1538 = vadd.f32 %v1534, %v1537
          %s1539 = sld [smem:[#allocation11 + $0x53]]
          %v1540 = vstv %s1539
          %v1541 = vmul.f32 %v1540, %v1239
          %v1542 = vadd.f32 %v1538, %v1541
          %v1544 = vlaneseq
          %v1545 = vshrl.u32 %v1544, 7
          %v1546 = vsub.s32 0, %v1545
          %v1547 = vrot.slane %v1542, %v1546
          %v1548 = vlaneseq
          %v1549 = vshrl.u32 %v1548, 7
          %v1550 = vsub.s32 1, %v1549
          %v1551 = vrot.slane %v1542, %v1550
          %1554 = vrot.lane.b32.xlu0 %v1547, 112
          %v1555 = vpop.permute.xlu0 %1554
          %1556 = vrot.lane.b32.xlu0 %v1551, 112
          %v1557 = vpop.permute.xlu0 %1556
          %v1558 = vsel %vm850, %v1555, %v1557
          %v1559 = vsel %vm850, %v1557, %v1555
          %v1562 = vcombine.low %v1558, %v1559
          %v1564 = vunpack.c.l.s4 1966171168
          %v1565 = vunpack.c.0.s8 %v1564
          %v1566 = vlaneseq
          %v1567 = vshrl.u32 %v1566, 7
          %v1568 = vsub.s32 %v1565, %v1567
          %v1569 = vrot.slane %v1562, %v1568
          %v1571 = vunpack.c.l.s4 1966171168
          %v1572 = vunpack.c.0.s8 %v1571
          %v1573 = vlaneseq
          %v1574 = vshrl.u32 %v1573, 7
          %v1575 = vsub.s32 %v1572, %v1574
          %v1576 = vrot.slane %v1569, %v1575
          %v1578 = vsel %vm853, %v1576, 0.0
          %v1579 = vadd.f32 %v1495, %v1578
          %s1580 = sld [smem:[#allocation11 + $0x54]]
          %v1581 = vstv %s1580
          %v1582 = vmul.f32 %v1581, %v1071
          %v1583 = vadd.f32 %v1582, 0.0
          %s1584 = sld [smem:[#allocation11 + $0x55]]
          %v1585 = vstv %s1584
          %v1586 = vmul.f32 %v1585, %v1100
          %v1587 = vadd.f32 %v1583, %v1586
          %s1588 = sld [smem:[#allocation11 + $0x56]]
          %v1589 = vstv %s1588
          %v1590 = vmul.f32 %v1589, %v1129
          %v1591 = vadd.f32 %v1587, %v1590
          %s1592 = sld [smem:[#allocation11 + $0x57]]
          %v1593 = vstv %s1592
          %v1594 = vmul.f32 %v1593, %v309
          %v1595 = vmul.f32 %v1593, %v315
          %v1598 = vcombine.low %v1594, %v1595
          %v1600 = vunpack.c.l.s4 1966171168
          %v1601 = vunpack.c.0.s8 %v1600
          %v1602 = vlaneseq
          %v1603 = vshrl.u32 %v1602, 7
          %v1604 = vsub.s32 %v1601, %v1603
          %v1605 = vrot.slane %v1598, %v1604
          %v1607 = vunpack.c.l.s4 1966171168
          %v1608 = vunpack.c.0.s8 %v1607
          %v1609 = vlaneseq
          %v1610 = vshrl.u32 %v1609, 7
          %v1611 = vsub.s32 %v1608, %v1610
          %v1612 = vrot.slane %v1605, %v1611
          %v1614 = vadd.f32 %v1591, %v1612
          %s1615 = sld [smem:[#allocation11 + $0x58]]
          %v1616 = vstv %s1615
          %v1617 = vmul.f32 %v1616, %v1181
          %v1618 = vadd.f32 %v1614, %v1617
          %s1619 = sld [smem:[#allocation11 + $0x59]]
          %v1620 = vstv %s1619
          %v1621 = vmul.f32 %v1620, %v1210
          %v1622 = vadd.f32 %v1618, %v1621
          %s1623 = sld [smem:[#allocation11 + $0x5a]]
          %v1624 = vstv %s1623
          %v1625 = vmul.f32 %v1624, %v1239
          %v1626 = vadd.f32 %v1622, %v1625
          %v1628 = vlaneseq
          %v1629 = vshrl.u32 %v1628, 7
          %v1630 = vsub.s32 0, %v1629
          %v1631 = vrot.slane %v1626, %v1630
          %v1632 = vlaneseq
          %v1633 = vshrl.u32 %v1632, 7
          %v1634 = vsub.s32 1, %v1633
          %v1635 = vrot.slane %v1626, %v1634
          %1638 = vrot.lane.b32.xlu0 %v1631, 96
          %v1639 = vpop.permute.xlu0 %1638
          %1640 = vrot.lane.b32.xlu0 %v1635, 96
          %v1641 = vpop.permute.xlu0 %1640
          %v1642 = vsel %vm936, %v1639, %v1641
          %v1643 = vsel %vm936, %v1641, %v1639
          %v1646 = vcombine.low %v1642, %v1643
          %v1648 = vunpack.c.l.s4 1966171168
          %v1649 = vunpack.c.0.s8 %v1648
          %v1650 = vlaneseq
          %v1651 = vshrl.u32 %v1650, 7
          %v1652 = vsub.s32 %v1649, %v1651
          %v1653 = vrot.slane %v1646, %v1652
          %v1655 = vunpack.c.l.s4 1966171168
          %v1656 = vunpack.c.0.s8 %v1655
          %v1657 = vlaneseq
          %v1658 = vshrl.u32 %v1657, 7
          %v1659 = vsub.s32 %v1656, %v1658
          %v1660 = vrot.slane %v1653, %v1659
          %v1662 = vsel %vm939, %v1660, 0.0
          %v1663 = vadd.f32 %v1579, %v1662
          %s1664 = sld [smem:[#allocation11 + $0x5b]]
          %v1665 = vstv %s1664
          %v1666 = vmul.f32 %v1665, %v1071
          %v1667 = vadd.f32 %v1666, 0.0
          %s1668 = sld [smem:[#allocation11 + $0x5c]]
          %v1669 = vstv %s1668
          %v1670 = vmul.f32 %v1669, %v1100
          %v1671 = vadd.f32 %v1667, %v1670
          %s1672 = sld [smem:[#allocation11 + $0x5d]]
          %v1673 = vstv %s1672
          %v1674 = vmul.f32 %v1673, %v1129
          %v1675 = vadd.f32 %v1671, %v1674
          %s1676 = sld [smem:[#allocation11 + $0x5e]]
          %v1677 = vstv %s1676
          %v1678 = vmul.f32 %v1677, %v309
          %v1679 = vmul.f32 %v1677, %v315
          %v1682 = vcombine.low %v1678, %v1679
          %v1684 = vunpack.c.l.s4 1966171168
          %v1685 = vunpack.c.0.s8 %v1684
          %v1686 = vlaneseq
          %v1687 = vshrl.u32 %v1686, 7
          %v1688 = vsub.s32 %v1685, %v1687
          %v1689 = vrot.slane %v1682, %v1688
          %v1691 = vunpack.c.l.s4 1966171168
          %v1692 = vunpack.c.0.s8 %v1691
          %v1693 = vlaneseq
          %v1694 = vshrl.u32 %v1693, 7
          %v1695 = vsub.s32 %v1692, %v1694
          %v1696 = vrot.slane %v1689, %v1695
          %v1698 = vadd.f32 %v1675, %v1696
          %s1699 = sld [smem:[#allocation11 + $0x5f]]
          %v1700 = vstv %s1699
          %v1701 = vmul.f32 %v1700, %v1181
          %v1702 = vadd.f32 %v1698, %v1701
          %s1703 = sld [smem:[#allocation11 + $0x60]]
          %v1704 = vstv %s1703
          %v1705 = vmul.f32 %v1704, %v1210
          %v1706 = vadd.f32 %v1702, %v1705
          %s1707 = sld [smem:[#allocation11 + $0x61]]
          %v1708 = vstv %s1707
          %v1709 = vmul.f32 %v1708, %v1239
          %v1710 = vadd.f32 %v1706, %v1709
          %v1712 = vlaneseq
          %v1713 = vshrl.u32 %v1712, 7
          %v1714 = vsub.s32 0, %v1713
          %v1715 = vrot.slane %v1710, %v1714
          %v1716 = vlaneseq
          %v1717 = vshrl.u32 %v1716, 7
          %v1718 = vsub.s32 1, %v1717
          %v1719 = vrot.slane %v1710, %v1718
          %1722 = vrot.lane.b32.xlu0 %v1715, 80
          %v1723 = vpop.permute.xlu0 %1722
          %1724 = vrot.lane.b32.xlu0 %v1719, 80
          %v1725 = vpop.permute.xlu0 %1724
          %v1726 = vsel %vm1022, %v1723, %v1725
          %v1727 = vsel %vm1022, %v1725, %v1723
          %v1730 = vcombine.low %v1726, %v1727
          %v1732 = vunpack.c.l.s4 1966171168
          %v1733 = vunpack.c.0.s8 %v1732
          %v1734 = vlaneseq
          %v1735 = vshrl.u32 %v1734, 7
          %v1736 = vsub.s32 %v1733, %v1735
          %v1737 = vrot.slane %v1730, %v1736
          %v1739 = vunpack.c.l.s4 1966171168
          %v1740 = vunpack.c.0.s8 %v1739
          %v1741 = vlaneseq
          %v1742 = vshrl.u32 %v1741, 7
          %v1743 = vsub.s32 %v1740, %v1742
          %v1744 = vrot.slane %v1737, %v1743
          %v1746 = vsel %vm1025, %v1744, 0.0
          %v1747 = vadd.f32 %v1663, %v1746
          %v1748 = vxor.u32 %v1747, 2147483648
          %v1749 = vmul.f32 %v1748, 1.442695
          %v1750 = vpow.pop %v1749
          %v1751 = vadd.f32 %v1750, 1.0
          %v1752 = vrcp.pop %v1751
          %v1753 = vmul.f32 1.0, %v1752
          %v1754 = vlaneseq
          %vm1755 = vcmp.ge.s32.totalorder %v1754, 0
          %vm1756 = vcmp.lt.s32.totalorder %v1754, 256
          %vm1757 = vmand %vm1755, %vm1756
          %1758 = vst.msk [vmem:[%s257] sm:$0x3] %vm1757, %v1753
        $region56: #{tpu_custom_call.1} parent=35 // pred_fallthru
          _
        %s1759 = sand.u32 %s135, 1
        %s1760 = scalar_lea.sflag [#allocation7], %s1759
        %s1761 = sand.u32 %s135, 1
        %s1762 = smul.addr %s1761, 2
        %s1763 = scalar_lea.vmem [#allocation12], %s1762
        // Predicated region
        $region57: #{tpu_custom_call.1} parent=35 // pred_check
          %p1764 = pneg %p145
        $region58: #{tpu_custom_call.1} parent=35 // pred_check_branch
          %1766 = sbr.rel (%p1764) target = $region60
        $region59: #{tpu_custom_call.1} parent=35 // pred_region
          %s1768 = ssub.s32 32, 32
          %1769 = vsyncadd %s1760, %s1768
          %s1770 = smul.addr %s28, 2
          %s1771 = smul.addr %s1770, 16
          %s1772 = scalar_lea.hbm %s4, %s1771
          %s1774 = sshll.u32 %s1763, 4
          %s1775 = int_to_ptr.vmem [resolvable:$true] %s1774
          %1777 = dma.vmem_to_hbm [thread:$0]  %s1775, 32, %s1772, %s1760
        $region60: #{tpu_custom_call.1} parent=35 // pred_fallthru
          _
      $region36: #{tpu_custom_call.1} parent=5 // pred_fallthru
        _
      %p1778 = scmp.le.s32.totalorder 2, %s19
      // Predicated region
      $region61: #{tpu_custom_call.1} parent=5 // pred_check
        %p1779 = pneg %p1778
      $region62: #{tpu_custom_call.1} parent=5 // pred_check_branch
        %1781 = sbr.rel (%p1779) target = $region64
      $region63: #{tpu_custom_call.1} parent=5 // pred_region
        %s1782 = ssub.s32 %s19, 2
        // Predicated region
        $region65: #{tpu_custom_call.1} parent=63 // pred_check
          %p1783 = pneg %p151
        $region66: #{tpu_custom_call.1} parent=63 // pred_check_branch
          %1785 = sbr.rel (%p1783) target = $region68
        $region67: #{tpu_custom_call.1} parent=63 // pred_region
          %s1786 = sand.u32 %s136, 1
          %s1787 = scalar_lea.sflag [#allocation7], %s1786
          %s1788 = sand.u32 %s136, 1
          %s1789 = smul.addr %s1788, 2
          %s1790 = scalar_lea.vmem [#allocation12], %s1789
          %1791 = dma.done %s1787, 32
        $region68: #{tpu_custom_call.1} parent=63 // pred_fallthru
          _
      $region64: #{tpu_custom_call.1} parent=5 // pred_fallthru
        _
    $region6: #{tpu_custom_call.1} parent=1 // loop_footer
      %s23 = sadd.s32 1, %s19
    $region7: #{tpu_custom_call.1} parent=1 // loop_footer_branch
      %18 = sbr.rel target = $region3
    $region8: #{tpu_custom_call.1} parent=1 // loop_exit
      _
    %1792 = vsyncpa [#allocation6], 1
    %s1793 = scalar_lea.sflag [#allocation6], 1
    %1794 = vsyncpa %s1793, 1
    %1795 = vsyncpa [#allocation10], 1
    %1796 = vsyncpa [#allocation7], 1
    %s1797 = scalar_lea.sflag [#allocation7], 1
    %1798 = vsyncpa %s1797, 1
    %1799 = vsyncpa [#allocation8], 1
    %s1800 = scalar_lea.sflag [#allocation8], 1
    %1801 = vsyncpa %s1800, 1

</llo_original>
